<compile_context>
chip_gen: v7x
topology: tpu7x:2x2x1
jax: 0.10.0
libtpu: 0.0.40
codegen_flags: <defaults>
</compile_context>

<pallas_src>
import jax
import jax.numpy as jnp
from jax.experimental import pallas as pl
from jax.experimental.pallas import tpu as pltpu


# ---------------------------------------------------------------------------
# In-kernel building blocks
# ---------------------------------------------------------------------------
def _gelu_tanh(x):
    # tanh-approximation of GELU (EUP tanh; torch default is exact erf).
    c = 0.7978845608028654  # sqrt(2/pi)
    return 0.5 * x * (1.0 + jnp.tanh(c * (x + 0.044715 * x * x * x)))


def _projection_head(x_f32, wp_ref, bp_ref, wf_ref, bf_ref, gamma_ref, beta_ref):
    """Linear -> GELU -> Linear -> (+residual) -> LayerNorm.  Dropout = eval/identity.

    Weights are shipped/stored in bf16; activations are cast to bf16 right before
    each dot; accumulation and the whole epilogue stay in f32.
    """
    p = jnp.dot(x_f32.astype(jnp.bfloat16), wp_ref[...],
                preferred_element_type=jnp.float32) + bp_ref[...]
    h = _gelu_tanh(p)
    h = jnp.dot(h.astype(jnp.bfloat16), wf_ref[...],
                preferred_element_type=jnp.float32) + bf_ref[...]
    r = h + p
    # Single-pass LayerNorm statistics: var = E[r^2] - mu^2 (independent reductions,
    # no second pass over (r - mu)).  NOTE: correct only because the feature width
    # is NOT lane-padded; if it ever is, mask the reductions to the true width.
    d = r.shape[-1]
    inv_d = 1.0 / d
    mu = jnp.sum(r, axis=-1, keepdims=True) * inv_d
    ms = jnp.sum(r * r, axis=-1, keepdims=True) * inv_d
    var = ms - mu * mu
    inv = jax.lax.rsqrt(var + 1e-5)
    return (r - mu) * inv * gamma_ref[...] + beta_ref[...]


def _lip_control_kernel(audio_ref, exp_cm_ref, exp_km_ref, *rest):
    """Fused lipControlNet forward for one row tile.

    rest = 24 ProjectionHead param refs (4 layers x 6) + wo_exp, wo_aud, bo
           (alpha already folded in) + out_ref.
    """
    ph_refs = rest[:24]
    wo_exp_ref, wo_aud_ref, bo_ref, out_ref = rest[24:]

    a = audio_ref[...]
    for layer in range(4):
        wp, bp, wf, bf, g, b = ph_refs[6 * layer:6 * layer + 6]
        a = _projection_head(a, wp, bp, wf, bf, g, b)

    # out_fc(concat([src_exp, audio_fea])) == exp @ Wexp + audio @ Waud + b
    delta = (jnp.dot(exp_cm_ref[...].astype(jnp.bfloat16), wo_exp_ref[...],
                     preferred_element_type=jnp.float32)
             + jnp.dot(a.astype(jnp.bfloat16), wo_aud_ref[...],
                       preferred_element_type=jnp.float32)
             + bo_ref[...])

    # residual on the keypoint-major flattened exp (== src_exp_in + alpha*delta)
    out_ref[...] = exp_km_ref[...] + delta


# ---------------------------------------------------------------------------
# Wrapper
# ---------------------------------------------------------------------------
def _round_up(x, m):
    return ((x + m - 1) // m) * m


def lip_control_net_forward(src_exp_in, drv_audio_fea, params, alpha=1.0,
                            block_rows=128):
    """src_exp_in: (B, 15, 3) f32, drv_audio_fea: (B, ..., ...) -> (B, 15, 3) f32."""
    B, num_kp, coord = src_exp_in.shape
    E = num_kp * coord

    # Flattened views (both tiny; the two orderings mirror the torch code).
    exp_cm = jnp.transpose(src_exp_in, (0, 2, 1)).reshape(B, E)   # permute->view
    exp_km = src_exp_in.reshape(B, E)                             # residual base
    audio = drv_audio_fea.reshape(B, -1).astype(jnp.float32)
    A = audio.shape[1]

    EP = _round_up(E, 128)                               # lane-dense exp / delta width
    # Cap the row tile so the grid has >= 2 steps (v7x megacore split + pipelining);
    # tm stays a multiple of 8 for (8,128) alignment.
    tm = min(block_rows, max(8, _round_up(pl.cdiv(B, 2), 8)))
    n_pad = _round_up(B, tm)
    grid = (n_pad // tm,)

    def pad_rows(x):
        return jnp.pad(x, ((0, n_pad - B), (0, 0)))

    def pad_cols(x, to):
        return jnp.pad(x, ((0, 0), (0, to - x.shape[1])))

    audio_p = pad_rows(audio)
    exp_cm_p = pad_rows(pad_cols(exp_cm, EP))
    exp_km_p = pad_rows(pad_cols(exp_km, EP))

    # out_fc split into exp / audio parts, alpha folded in, padded lane-dense,
    # weights shipped in bf16 (bias stays f32).
    out_w, out_b = params['out_w'], params['out_b']      # (d4+E, E), (1, E)
    alpha_f = jnp.float32(alpha)
    wo_exp_p = jnp.pad(alpha_f * out_w[:E, :],
                       ((0, EP - E), (0, EP - E))).astype(jnp.bfloat16)
    wo_aud_p = pad_cols(alpha_f * out_w[E:, :], EP).astype(jnp.bfloat16)
    bo_p = pad_cols(alpha_f * out_b, EP)                 # f32

    ph_params = []
    for name in ('ph1', 'ph2', 'ph3', 'ph4'):
        wp, bp, wf, bf, g, b = params[name]
        ph_params.extend([wp.astype(jnp.bfloat16), bp,          # bf16 matmul weights
                          wf.astype(jnp.bfloat16), bf, g, b])   # f32 bias/gamma/beta

    inputs = [audio_p, exp_cm_p, exp_km_p, *ph_params, wo_exp_p, wo_aud_p, bo_p]

    def row_spec(cols):
        return pl.BlockSpec((tm, cols), lambda i: (i, 0))

    def const_spec(arr):
        # Whole array resident; constant index map -> fetched once; single-buffered
        # so the weight set is not duplicated by the default double-buffering.
        return pl.BlockSpec(arr.shape, lambda i: (0, 0),
                            pipeline_mode=pl.Buffered(1))

    in_specs = ([row_spec(A), row_spec(EP), row_spec(EP)]
                + [const_spec(p) for p in ph_params]
                + [const_spec(wo_exp_p), const_spec(wo_aud_p), const_spec(bo_p)])

    # --- VMEM budget: weights (single-buffered) + double-buffered row tiles +
    #     activation scratch, with headroom; explicit so real dims don't hit the
    #     16/32 MiB default scoped limits.
    const_bytes = sum(int(p.size) * p.dtype.itemsize
                      for p in (*ph_params, wo_exp_p, wo_aud_p, bo_p))
    tile_bytes = 2 * (tm * (A + 3 * EP) * 4)             # in (audio, 2x exp) + out, x2 buf
    max_hidden = max(ph_params[6 * l].shape[1] for l in range(4))
    act_bytes = 6 * tm * max_hidden * 4                  # live f32 intermediates
    need = const_bytes + tile_bytes + act_bytes
    vmem_limit = int(min(max(2 * need + (4 << 20), 16 << 20), 56 << 20))

    # --- Cost estimate for the XLA scheduler.
    flops = 0
    transcendentals = 0
    for layer in range(4):
        wp = ph_params[6 * layer]
        wf = ph_params[6 * layer + 2]
        flops += 2 * n_pad * (wp.shape[0] * wp.shape[1] + wf.shape[0] * wf.shape[1])
        transcendentals += n_pad * wp.shape[1]           # tanh per GELU element
    flops += 2 * n_pad * (wo_exp_p.shape[0] * EP + wo_aud_p.shape[0] * EP)
    bytes_accessed = (sum(int(x.size) * x.dtype.itemsize for x in inputs)
                      + n_pad * EP * 4)
    cost = pl.CostEstimate(flops=flops, transcendentals=transcendentals,
                           bytes_accessed=bytes_accessed)

    out = pl.pallas_call(
        _lip_control_kernel,
        out_shape=jax.ShapeDtypeStruct((n_pad, EP), jnp.float32),
        grid_spec=pltpu.PrefetchScalarGridSpec(
            num_scalar_prefetch=0,
            grid=grid,
            in_specs=in_specs,
            out_specs=pl.BlockSpec((tm, EP), lambda i: (i, 0)),
        ),
        compiler_params=pltpu.CompilerParams(
            dimension_semantics=("parallel",),
            vmem_limit_bytes=vmem_limit),
        cost_estimate=cost,
    )(*inputs)

    # delta.view(B, -1, 3); residual already applied in-kernel.
    return out[:B, :E].reshape(B, num_kp, coord)


# ---------------------------------------------------------------------------
# Pure-JAX reference (mirrors the PyTorch forward; matmul_dtype lets us also
# mirror the kernel's bf16 matmul numerics for a tight check)
# ---------------------------------------------------------------------------
def _ref_projection_head(x, wp, bp, wf, bf, g, b, matmul_dtype):
    p = jnp.dot(x.astype(matmul_dtype), wp.astype(matmul_dtype),
                preferred_element_type=jnp.float32) + bp
    h = _gelu_tanh(p)
    h = jnp.dot(h.astype(matmul_dtype), wf.astype(matmul_dtype),
                preferred_element_type=jnp.float32) + bf
    r = h + p
    mu = jnp.mean(r, axis=-1, keepdims=True)
    xc = r - mu
    var = jnp.mean(xc * xc, axis=-1, keepdims=True)
    return xc * jax.lax.rsqrt(var + 1e-5) * g + b


def lip_control_net_reference(src_exp_in, drv_audio_fea, params, alpha=1.0,
                              matmul_dtype=jnp.float32):
    B = src_exp_in.shape[0]
    src_exp = jnp.transpose(src_exp_in, (0, 2, 1)).reshape(B, -1)
    a = drv_audio_fea.reshape(B, -1).astype(jnp.float32)
    for name in ('ph1', 'ph2', 'ph3', 'ph4'):
        a = _ref_projection_head(a, *params[name], matmul_dtype=matmul_dtype)
    concat_fea = jnp.concatenate([src_exp, a], axis=1)
    delta = jnp.dot(concat_fea.astype(matmul_dtype),
                    params['out_w'].astype(matmul_dtype),
                    preferred_element_type=jnp.float32) + params['out_b']
    delta = delta.reshape(B, -1, 3)
    return src_exp_in + delta * alpha


# ---------------------------------------------------------------------------
# Deterministic parameter init
# ---------------------------------------------------------------------------
def init_lip_control_params(key, audio_in, dims, exp_flat):
    d1, d2, d3, d4 = dims
    keys = iter(jax.random.split(key, 32))

    def ph(din, dout):
        wp = jax.random.normal(next(keys), (din, dout), jnp.float32) / jnp.sqrt(din)
        bp = 0.01 * jax.random.normal(next(keys), (1, dout), jnp.float32)
        wf = jax.random.normal(next(keys), (dout, dout), jnp.float32) / jnp.sqrt(dout)
        bf = 0.01 * jax.random.normal(next(keys), (1, dout), jnp.float32)
        g = 1.0 + 0.1 * jax.random.normal(next(keys), (1, dout), jnp.float32)
        b = 0.01 * jax.random.normal(next(keys), (1, dout), jnp.float32)
        return (wp, bp, wf, bf, g, b)

    params = {
        'ph1': ph(audio_in, d1),
        'ph2': ph(d1, d2),
        'ph3': ph(d2, d3),
        'ph4': ph(d3, d4),
    }
    # NOTE: the PyTorch module zero-initializes out_fc (so delta==0 at init);
    # small random weights are used here so the test exercises the full path.
    params['out_w'] = (0.1 * jax.random.normal(next(keys), (d4 + exp_flat, exp_flat),
                                               jnp.float32)
                       / jnp.sqrt(d4 + exp_flat))
    params['out_b'] = 0.01 * jax.random.normal(next(keys), (1, exp_flat), jnp.float32)
    return params


# ---------------------------------------------------------------------------
# Demo
# ---------------------------------------------------------------------------
if __name__ == "__main__":
    key = jax.random.PRNGKey(0)

    B = 16                            # enough rows for a 2-step "parallel" row grid
    NUM_KP, COORD = 15, 3             # out_fc = Linear(1024 + 3*15, 3*15) in the original
    HUBERT_DIM, SYNC_T = 128, 1       # scaled-down stand-in for 1024 * syncnet_audio_T * 2
    AUDIO_IN = HUBERT_DIM * SYNC_T * 2
    DIMS = (256, 128, 128, 256)       # scaled-down (2048, 1024, 512, 1024); lane-dense
    ALPHA = 0.8

    kp, ke, ka = jax.random.split(key, 3)
    params = init_lip_control_params(kp, AUDIO_IN, DIMS, NUM_KP * COORD)
    src_exp_in = 0.1 * jax.random.normal(ke, (B, NUM_KP, COORD), jnp.float32)
    drv_audio_fea = jax.random.normal(ka, (B, SYNC_T * 2, HUBERT_DIM), jnp.float32)

    out = lip_control_net_forward(src_exp_in, drv_audio_fea, params, alpha=ALPHA)
    out = jax.block_until_ready(out)
    assert out.shape == (B, NUM_KP, COORD)

    # Tight check against a reference that mirrors the kernel's bf16 matmul numerics.
    ref_bf16 = lip_control_net_reference(src_exp_in, drv_audio_fea, params,
                                         alpha=ALPHA, matmul_dtype=jnp.bfloat16)
    err_b = float(jnp.max(jnp.abs(out - ref_bf16)))
    assert jnp.allclose(out, ref_bf16, atol=5e-3, rtol=5e-3), f"bf16-mirror err {err_b}"

    # Loose check against the full-f32 torch-equivalent reference (bf16 weight
    # rounding is the only difference).
    ref_f32 = lip_control_net_reference(src_exp_in, drv_audio_fea, params,
                                        alpha=ALPHA, matmul_dtype=jnp.float32)
    err_f = float(jnp.max(jnp.abs(out - ref_f32)))
    assert jnp.allclose(out, ref_f32, atol=5e-2, rtol=5e-2), f"f32-ref err {err_f}"

    print("KERNEL_OK")
</pallas_src>

<mosaic_0001>
module attributes {stable_mosaic.version = 11 : i64} {
  func.func @_lip_control_kernel(%arg0: i32, %arg1: memref<8x256xf32, #tpu.memory_space<vmem>>, %arg2: memref<8x128xf32, #tpu.memory_space<vmem>>, %arg3: memref<8x128xf32, #tpu.memory_space<vmem>>, %arg4: memref<256x256xbf16, #tpu.memory_space<vmem>>, %arg5: memref<1x256xf32, #tpu.memory_space<vmem>>, %arg6: memref<256x256xbf16, #tpu.memory_space<vmem>>, %arg7: memref<1x256xf32, #tpu.memory_space<vmem>>, %arg8: memref<1x256xf32, #tpu.memory_space<vmem>>, %arg9: memref<1x256xf32, #tpu.memory_space<vmem>>, %arg10: memref<256x128xbf16, #tpu.memory_space<vmem>>, %arg11: memref<1x128xf32, #tpu.memory_space<vmem>>, %arg12: memref<128x128xbf16, #tpu.memory_space<vmem>>, %arg13: memref<1x128xf32, #tpu.memory_space<vmem>>, %arg14: memref<1x128xf32, #tpu.memory_space<vmem>>, %arg15: memref<1x128xf32, #tpu.memory_space<vmem>>, %arg16: memref<128x128xbf16, #tpu.memory_space<vmem>>, %arg17: memref<1x128xf32, #tpu.memory_space<vmem>>, %arg18: memref<128x128xbf16, #tpu.memory_space<vmem>>, %arg19: memref<1x128xf32, #tpu.memory_space<vmem>>, %arg20: memref<1x128xf32, #tpu.memory_space<vmem>>, %arg21: memref<1x128xf32, #tpu.memory_space<vmem>>, %arg22: memref<128x256xbf16, #tpu.memory_space<vmem>>, %arg23: memref<1x256xf32, #tpu.memory_space<vmem>>, %arg24: memref<256x256xbf16, #tpu.memory_space<vmem>>, %arg25: memref<1x256xf32, #tpu.memory_space<vmem>>, %arg26: memref<1x256xf32, #tpu.memory_space<vmem>>, %arg27: memref<1x256xf32, #tpu.memory_space<vmem>>, %arg28: memref<128x128xbf16, #tpu.memory_space<vmem>>, %arg29: memref<256x128xbf16, #tpu.memory_space<vmem>>, %arg30: memref<1x128xf32, #tpu.memory_space<vmem>>, %arg31: memref<8x128xf32, #tpu.memory_space<vmem>>) attributes {dimension_semantics = [#tpu.dimension_semantics<parallel>], iteration_bounds = array<i64: 2>, scalar_prefetch = 0 : i64, scratch_operands = 0 : i64, tpu.core_type = #tpu.core_type<tc>, window_params = [{transform_indices = @transform_0, window_bounds = array<i64: 8, 256>}, {transform_indices = @transform_1, window_bounds = array<i64: 8, 128>}, {transform_indices = @transform_2, window_bounds = array<i64: 8, 128>}, {pipeline_mode = #tpu.pipeline_mode<synchronous>, transform_indices = @transform_3, window_bounds = array<i64: 256, 256>}, {pipeline_mode = #tpu.pipeline_mode<synchronous>, transform_indices = @transform_4, window_bounds = array<i64: 1, 256>}, {pipeline_mode = #tpu.pipeline_mode<synchronous>, transform_indices = @transform_5, window_bounds = array<i64: 256, 256>}, {pipeline_mode = #tpu.pipeline_mode<synchronous>, transform_indices = @transform_6, window_bounds = array<i64: 1, 256>}, {pipeline_mode = #tpu.pipeline_mode<synchronous>, transform_indices = @transform_7, window_bounds = array<i64: 1, 256>}, {pipeline_mode = #tpu.pipeline_mode<synchronous>, transform_indices = @transform_8, window_bounds = array<i64: 1, 256>}, {pipeline_mode = #tpu.pipeline_mode<synchronous>, transform_indices = @transform_9, window_bounds = array<i64: 256, 128>}, {pipeline_mode = #tpu.pipeline_mode<synchronous>, transform_indices = @transform_10, window_bounds = array<i64: 1, 128>}, {pipeline_mode = #tpu.pipeline_mode<synchronous>, transform_indices = @transform_11, window_bounds = array<i64: 128, 128>}, {pipeline_mode = #tpu.pipeline_mode<synchronous>, transform_indices = @transform_12, window_bounds = array<i64: 1, 128>}, {pipeline_mode = #tpu.pipeline_mode<synchronous>, transform_indices = @transform_13, window_bounds = array<i64: 1, 128>}, {pipeline_mode = #tpu.pipeline_mode<synchronous>, transform_indices = @transform_14, window_bounds = array<i64: 1, 128>}, {pipeline_mode = #tpu.pipeline_mode<synchronous>, transform_indices = @transform_15, window_bounds = array<i64: 128, 128>}, {pipeline_mode = #tpu.pipeline_mode<synchronous>, transform_indices = @transform_16, window_bounds = array<i64: 1, 128>}, {pipeline_mode = #tpu.pipeline_mode<synchronous>, transform_indices = @transform_17, window_bounds = array<i64: 128, 128>}, {pipeline_mode = #tpu.pipeline_mode<synchronous>, transform_indices = @transform_18, window_bounds = array<i64: 1, 128>}, {pipeline_mode = #tpu.pipeline_mode<synchronous>, transform_indices = @transform_19, window_bounds = array<i64: 1, 128>}, {pipeline_mode = #tpu.pipeline_mode<synchronous>, transform_indices = @transform_20, window_bounds = array<i64: 1, 128>}, {pipeline_mode = #tpu.pipeline_mode<synchronous>, transform_indices = @transform_21, window_bounds = array<i64: 128, 256>}, {pipeline_mode = #tpu.pipeline_mode<synchronous>, transform_indices = @transform_22, window_bounds = array<i64: 1, 256>}, {pipeline_mode = #tpu.pipeline_mode<synchronous>, transform_indices = @transform_23, window_bounds = array<i64: 256, 256>}, {pipeline_mode = #tpu.pipeline_mode<synchronous>, transform_indices = @transform_24, window_bounds = array<i64: 1, 256>}, {pipeline_mode = #tpu.pipeline_mode<synchronous>, transform_indices = @transform_25, window_bounds = array<i64: 1, 256>}, {pipeline_mode = #tpu.pipeline_mode<synchronous>, transform_indices = @transform_26, window_bounds = array<i64: 1, 256>}, {pipeline_mode = #tpu.pipeline_mode<synchronous>, transform_indices = @transform_27, window_bounds = array<i64: 128, 128>}, {pipeline_mode = #tpu.pipeline_mode<synchronous>, transform_indices = @transform_28, window_bounds = array<i64: 256, 128>}, {pipeline_mode = #tpu.pipeline_mode<synchronous>, transform_indices = @transform_29, window_bounds = array<i64: 1, 128>}, {transform_indices = @transform_30, window_bounds = array<i64: 8, 128>}]} {
    %c0 = arith.constant 0 : index
    %c0_0 = arith.constant 0 : index
    %0 = vector.load %arg1[%c0, %c0_0] : memref<8x256xf32, #tpu.memory_space<vmem>>, vector<8x256xf32>
    %1 = arith.truncf %0 : vector<8x256xf32> to vector<8x256xbf16>
    %c0_1 = arith.constant 0 : index
    %c0_2 = arith.constant 0 : index
    %2 = vector.load %arg4[%c0_1, %c0_2] : memref<256x256xbf16, #tpu.memory_space<vmem>>, vector<256x256xbf16>
    %cst = arith.constant dense<0.000000e+00> : vector<8x256xf32>
    %3 = tpu.matmul %1, %2, %cst {dimension_numbers = #tpu.dot_dimension_numbers<[1], [0], [0], [1], [0, 0, 1, 1], [], []>} : vector<8x256xbf16>, vector<256x256xbf16>, vector<8x256xf32> -> vector<8x256xf32>
    %c0_3 = arith.constant 0 : index
    %c0_4 = arith.constant 0 : index
    %4 = vector.load %arg5[%c0_3, %c0_4] : memref<1x256xf32, #tpu.memory_space<vmem>>, vector<1x256xf32>
    %5 = vector.broadcast %4 : vector<1x256xf32> to vector<8x256xf32>
    %6 = arith.addf %3, %5 : vector<8x256xf32>
    %cst_5 = arith.constant 5.000000e-01 : f32
    %7 = vector.broadcast %cst_5 : f32 to vector<8x256xf32>
    %8 = arith.mulf %7, %6 : vector<8x256xf32>
    %cst_6 = arith.constant 4.471500e-02 : f32
    %9 = vector.broadcast %cst_6 : f32 to vector<8x256xf32>
    %10 = arith.mulf %9, %6 : vector<8x256xf32>
    %11 = arith.mulf %10, %6 : vector<8x256xf32>
    %12 = arith.mulf %11, %6 : vector<8x256xf32>
    %13 = arith.addf %6, %12 : vector<8x256xf32>
    %cst_7 = arith.constant 0.797884583 : f32
    %14 = vector.broadcast %cst_7 : f32 to vector<8x256xf32>
    %15 = arith.mulf %14, %13 : vector<8x256xf32>
    %16 = math.tanh %15 : vector<8x256xf32>
    %cst_8 = arith.constant 1.000000e+00 : f32
    %17 = vector.broadcast %cst_8 : f32 to vector<8x256xf32>
    %18 = arith.addf %17, %16 : vector<8x256xf32>
    %19 = arith.mulf %8, %18 : vector<8x256xf32>
    %20 = arith.truncf %19 : vector<8x256xf32> to vector<8x256xbf16>
    %c0_9 = arith.constant 0 : index
    %c0_10 = arith.constant 0 : index
    %21 = vector.load %arg6[%c0_9, %c0_10] : memref<256x256xbf16, #tpu.memory_space<vmem>>, vector<256x256xbf16>
    %cst_11 = arith.constant dense<0.000000e+00> : vector<8x256xf32>
    %22 = tpu.matmul %20, %21, %cst_11 {dimension_numbers = #tpu.dot_dimension_numbers<[1], [0], [0], [1], [0, 0, 1, 1], [], []>} : vector<8x256xbf16>, vector<256x256xbf16>, vector<8x256xf32> -> vector<8x256xf32>
    %c0_12 = arith.constant 0 : index
    %c0_13 = arith.constant 0 : index
    %23 = vector.load %arg7[%c0_12, %c0_13] : memref<1x256xf32, #tpu.memory_space<vmem>>, vector<1x256xf32>
    %24 = vector.broadcast %23 : vector<1x256xf32> to vector<8x256xf32>
    %25 = arith.addf %22, %24 : vector<8x256xf32>
    %26 = arith.addf %25, %6 : vector<8x256xf32>
    %cst_14 = arith.constant dense<0.000000e+00> : vector<8xf32>
    %27 = vector.multi_reduction <add>, %26, %cst_14 [1] : vector<8x256xf32> to vector<8xf32>
    %28 = vector.shape_cast %27 : vector<8xf32> to vector<8x1xf32>
    %cst_15 = arith.constant 3.906250e-03 : f32
    %29 = vector.broadcast %cst_15 : f32 to vector<8x1xf32>
    %30 = arith.mulf %28, %29 : vector<8x1xf32>
    %31 = arith.mulf %26, %26 : vector<8x256xf32>
    %cst_16 = arith.constant dense<0.000000e+00> : vector<8xf32>
    %32 = vector.multi_reduction <add>, %31, %cst_16 [1] : vector<8x256xf32> to vector<8xf32>
    %33 = vector.shape_cast %32 : vector<8xf32> to vector<8x1xf32>
    %cst_17 = arith.constant 3.906250e-03 : f32
    %34 = vector.broadcast %cst_17 : f32 to vector<8x1xf32>
    %35 = arith.mulf %33, %34 : vector<8x1xf32>
    %36 = arith.mulf %30, %30 : vector<8x1xf32>
    %37 = arith.subf %35, %36 : vector<8x1xf32>
    %cst_18 = arith.constant 9.99999974E-6 : f32
    %38 = vector.broadcast %cst_18 : f32 to vector<8x1xf32>
    %39 = arith.addf %37, %38 : vector<8x1xf32>
    %40 = math.rsqrt %39 : vector<8x1xf32>
    %41 = vector.broadcast %30 : vector<8x1xf32> to vector<8x256xf32>
    %42 = arith.subf %26, %41 : vector<8x256xf32>
    %43 = vector.broadcast %40 : vector<8x1xf32> to vector<8x256xf32>
    %44 = arith.mulf %42, %43 : vector<8x256xf32>
    %c0_19 = arith.constant 0 : index
    %c0_20 = arith.constant 0 : index
    %45 = vector.load %arg8[%c0_19, %c0_20] : memref<1x256xf32, #tpu.memory_space<vmem>>, vector<1x256xf32>
    %46 = vector.broadcast %45 : vector<1x256xf32> to vector<8x256xf32>
    %47 = arith.mulf %44, %46 : vector<8x256xf32>
    %c0_21 = arith.constant 0 : index
    %c0_22 = arith.constant 0 : index
    %48 = vector.load %arg9[%c0_21, %c0_22] : memref<1x256xf32, #tpu.memory_space<vmem>>, vector<1x256xf32>
    %49 = vector.broadcast %48 : vector<1x256xf32> to vector<8x256xf32>
    %50 = arith.addf %47, %49 : vector<8x256xf32>
    %51 = arith.truncf %50 : vector<8x256xf32> to vector<8x256xbf16>
    %c0_23 = arith.constant 0 : index
    %c0_24 = arith.constant 0 : index
    %52 = vector.load %arg10[%c0_23, %c0_24] : memref<256x128xbf16, #tpu.memory_space<vmem>>, vector<256x128xbf16>
    %cst_25 = arith.constant dense<0.000000e+00> : vector<8x128xf32>
    %53 = tpu.matmul %51, %52, %cst_25 {dimension_numbers = #tpu.dot_dimension_numbers<[1], [0], [0], [1], [0, 0, 1, 1], [], []>} : vector<8x256xbf16>, vector<256x128xbf16>, vector<8x128xf32> -> vector<8x128xf32>
    %c0_26 = arith.constant 0 : index
    %c0_27 = arith.constant 0 : index
    %54 = vector.load %arg11[%c0_26, %c0_27] : memref<1x128xf32, #tpu.memory_space<vmem>>, vector<1x128xf32>
    %55 = vector.broadcast %54 : vector<1x128xf32> to vector<8x128xf32>
    %56 = arith.addf %53, %55 : vector<8x128xf32>
    %cst_28 = arith.constant 5.000000e-01 : f32
    %57 = vector.broadcast %cst_28 : f32 to vector<8x128xf32>
    %58 = arith.mulf %57, %56 : vector<8x128xf32>
    %cst_29 = arith.constant 4.471500e-02 : f32
    %59 = vector.broadcast %cst_29 : f32 to vector<8x128xf32>
    %60 = arith.mulf %59, %56 : vector<8x128xf32>
    %61 = arith.mulf %60, %56 : vector<8x128xf32>
    %62 = arith.mulf %61, %56 : vector<8x128xf32>
    %63 = arith.addf %56, %62 : vector<8x128xf32>
    %cst_30 = arith.constant 0.797884583 : f32
    %64 = vector.broadcast %cst_30 : f32 to vector<8x128xf32>
    %65 = arith.mulf %64, %63 : vector<8x128xf32>
    %66 = math.tanh %65 : vector<8x128xf32>
    %cst_31 = arith.constant 1.000000e+00 : f32
    %67 = vector.broadcast %cst_31 : f32 to vector<8x128xf32>
    %68 = arith.addf %67, %66 : vector<8x128xf32>
    %69 = arith.mulf %58, %68 : vector<8x128xf32>
    %70 = arith.truncf %69 : vector<8x128xf32> to vector<8x128xbf16>
    %c0_32 = arith.constant 0 : index
    %c0_33 = arith.constant 0 : index
    %71 = vector.load %arg12[%c0_32, %c0_33] : memref<128x128xbf16, #tpu.memory_space<vmem>>, vector<128x128xbf16>
    %cst_34 = arith.constant dense<0.000000e+00> : vector<8x128xf32>
    %72 = tpu.matmul %70, %71, %cst_34 {dimension_numbers = #tpu.dot_dimension_numbers<[1], [0], [0], [1], [0, 0, 1, 1], [], []>} : vector<8x128xbf16>, vector<128x128xbf16>, vector<8x128xf32> -> vector<8x128xf32>
    %c0_35 = arith.constant 0 : index
    %c0_36 = arith.constant 0 : index
    %73 = vector.load %arg13[%c0_35, %c0_36] : memref<1x128xf32, #tpu.memory_space<vmem>>, vector<1x128xf32>
    %74 = vector.broadcast %73 : vector<1x128xf32> to vector<8x128xf32>
    %75 = arith.addf %72, %74 : vector<8x128xf32>
    %76 = arith.addf %75, %56 : vector<8x128xf32>
    %cst_37 = arith.constant dense<0.000000e+00> : vector<8xf32>
    %77 = vector.multi_reduction <add>, %76, %cst_37 [1] : vector<8x128xf32> to vector<8xf32>
    %78 = vector.shape_cast %77 : vector<8xf32> to vector<8x1xf32>
    %cst_38 = arith.constant 7.812500e-03 : f32
    %79 = vector.broadcast %cst_38 : f32 to vector<8x1xf32>
    %80 = arith.mulf %78, %79 : vector<8x1xf32>
    %81 = arith.mulf %76, %76 : vector<8x128xf32>
    %cst_39 = arith.constant dense<0.000000e+00> : vector<8xf32>
    %82 = vector.multi_reduction <add>, %81, %cst_39 [1] : vector<8x128xf32> to vector<8xf32>
    %83 = vector.shape_cast %82 : vector<8xf32> to vector<8x1xf32>
    %cst_40 = arith.constant 7.812500e-03 : f32
    %84 = vector.broadcast %cst_40 : f32 to vector<8x1xf32>
    %85 = arith.mulf %83, %84 : vector<8x1xf32>
    %86 = arith.mulf %80, %80 : vector<8x1xf32>
    %87 = arith.subf %85, %86 : vector<8x1xf32>
    %cst_41 = arith.constant 9.99999974E-6 : f32
    %88 = vector.broadcast %cst_41 : f32 to vector<8x1xf32>
    %89 = arith.addf %87, %88 : vector<8x1xf32>
    %90 = math.rsqrt %89 : vector<8x1xf32>
    %91 = vector.broadcast %80 : vector<8x1xf32> to vector<8x128xf32>
    %92 = arith.subf %76, %91 : vector<8x128xf32>
    %93 = vector.broadcast %90 : vector<8x1xf32> to vector<8x128xf32>
    %94 = arith.mulf %92, %93 : vector<8x128xf32>
    %c0_42 = arith.constant 0 : index
    %c0_43 = arith.constant 0 : index
    %95 = vector.load %arg14[%c0_42, %c0_43] : memref<1x128xf32, #tpu.memory_space<vmem>>, vector<1x128xf32>
    %96 = vector.broadcast %95 : vector<1x128xf32> to vector<8x128xf32>
    %97 = arith.mulf %94, %96 : vector<8x128xf32>
    %c0_44 = arith.constant 0 : index
    %c0_45 = arith.constant 0 : index
    %98 = vector.load %arg15[%c0_44, %c0_45] : memref<1x128xf32, #tpu.memory_space<vmem>>, vector<1x128xf32>
    %99 = vector.broadcast %98 : vector<1x128xf32> to vector<8x128xf32>
    %100 = arith.addf %97, %99 : vector<8x128xf32>
    %101 = arith.truncf %100 : vector<8x128xf32> to vector<8x128xbf16>
    %c0_46 = arith.constant 0 : index
    %c0_47 = arith.constant 0 : index
    %102 = vector.load %arg16[%c0_46, %c0_47] : memref<128x128xbf16, #tpu.memory_space<vmem>>, vector<128x128xbf16>
    %cst_48 = arith.constant dense<0.000000e+00> : vector<8x128xf32>
    %103 = tpu.matmul %101, %102, %cst_48 {dimension_numbers = #tpu.dot_dimension_numbers<[1], [0], [0], [1], [0, 0, 1, 1], [], []>} : vector<8x128xbf16>, vector<128x128xbf16>, vector<8x128xf32> -> vector<8x128xf32>
    %c0_49 = arith.constant 0 : index
    %c0_50 = arith.constant 0 : index
    %104 = vector.load %arg17[%c0_49, %c0_50] : memref<1x128xf32, #tpu.memory_space<vmem>>, vector<1x128xf32>
    %105 = vector.broadcast %104 : vector<1x128xf32> to vector<8x128xf32>
    %106 = arith.addf %103, %105 : vector<8x128xf32>
    %cst_51 = arith.constant 5.000000e-01 : f32
    %107 = vector.broadcast %cst_51 : f32 to vector<8x128xf32>
    %108 = arith.mulf %107, %106 : vector<8x128xf32>
    %cst_52 = arith.constant 4.471500e-02 : f32
    %109 = vector.broadcast %cst_52 : f32 to vector<8x128xf32>
    %110 = arith.mulf %109, %106 : vector<8x128xf32>
    %111 = arith.mulf %110, %106 : vector<8x128xf32>
    %112 = arith.mulf %111, %106 : vector<8x128xf32>
    %113 = arith.addf %106, %112 : vector<8x128xf32>
    %cst_53 = arith.constant 0.797884583 : f32
    %114 = vector.broadcast %cst_53 : f32 to vector<8x128xf32>
    %115 = arith.mulf %114, %113 : vector<8x128xf32>
    %116 = math.tanh %115 : vector<8x128xf32>
    %cst_54 = arith.constant 1.000000e+00 : f32
    %117 = vector.broadcast %cst_54 : f32 to vector<8x128xf32>
    %118 = arith.addf %117, %116 : vector<8x128xf32>
    %119 = arith.mulf %108, %118 : vector<8x128xf32>
    %120 = arith.truncf %119 : vector<8x128xf32> to vector<8x128xbf16>
    %c0_55 = arith.constant 0 : index
    %c0_56 = arith.constant 0 : index
    %121 = vector.load %arg18[%c0_55, %c0_56] : memref<128x128xbf16, #tpu.memory_space<vmem>>, vector<128x128xbf16>
    %cst_57 = arith.constant dense<0.000000e+00> : vector<8x128xf32>
    %122 = tpu.matmul %120, %121, %cst_57 {dimension_numbers = #tpu.dot_dimension_numbers<[1], [0], [0], [1], [0, 0, 1, 1], [], []>} : vector<8x128xbf16>, vector<128x128xbf16>, vector<8x128xf32> -> vector<8x128xf32>
    %c0_58 = arith.constant 0 : index
    %c0_59 = arith.constant 0 : index
    %123 = vector.load %arg19[%c0_58, %c0_59] : memref<1x128xf32, #tpu.memory_space<vmem>>, vector<1x128xf32>
    %124 = vector.broadcast %123 : vector<1x128xf32> to vector<8x128xf32>
    %125 = arith.addf %122, %124 : vector<8x128xf32>
    %126 = arith.addf %125, %106 : vector<8x128xf32>
    %cst_60 = arith.constant dense<0.000000e+00> : vector<8xf32>
    %127 = vector.multi_reduction <add>, %126, %cst_60 [1] : vector<8x128xf32> to vector<8xf32>
    %128 = vector.shape_cast %127 : vector<8xf32> to vector<8x1xf32>
    %cst_61 = arith.constant 7.812500e-03 : f32
    %129 = vector.broadcast %cst_61 : f32 to vector<8x1xf32>
    %130 = arith.mulf %128, %129 : vector<8x1xf32>
    %131 = arith.mulf %126, %126 : vector<8x128xf32>
    %cst_62 = arith.constant dense<0.000000e+00> : vector<8xf32>
    %132 = vector.multi_reduction <add>, %131, %cst_62 [1] : vector<8x128xf32> to vector<8xf32>
    %133 = vector.shape_cast %132 : vector<8xf32> to vector<8x1xf32>
    %cst_63 = arith.constant 7.812500e-03 : f32
    %134 = vector.broadcast %cst_63 : f32 to vector<8x1xf32>
    %135 = arith.mulf %133, %134 : vector<8x1xf32>
    %136 = arith.mulf %130, %130 : vector<8x1xf32>
    %137 = arith.subf %135, %136 : vector<8x1xf32>
    %cst_64 = arith.constant 9.99999974E-6 : f32
    %138 = vector.broadcast %cst_64 : f32 to vector<8x1xf32>
    %139 = arith.addf %137, %138 : vector<8x1xf32>
    %140 = math.rsqrt %139 : vector<8x1xf32>
    %141 = vector.broadcast %130 : vector<8x1xf32> to vector<8x128xf32>
    %142 = arith.subf %126, %141 : vector<8x128xf32>
    %143 = vector.broadcast %140 : vector<8x1xf32> to vector<8x128xf32>
    %144 = arith.mulf %142, %143 : vector<8x128xf32>
    %c0_65 = arith.constant 0 : index
    %c0_66 = arith.constant 0 : index
    %145 = vector.load %arg20[%c0_65, %c0_66] : memref<1x128xf32, #tpu.memory_space<vmem>>, vector<1x128xf32>
    %146 = vector.broadcast %145 : vector<1x128xf32> to vector<8x128xf32>
    %147 = arith.mulf %144, %146 : vector<8x128xf32>
    %c0_67 = arith.constant 0 : index
    %c0_68 = arith.constant 0 : index
    %148 = vector.load %arg21[%c0_67, %c0_68] : memref<1x128xf32, #tpu.memory_space<vmem>>, vector<1x128xf32>
    %149 = vector.broadcast %148 : vector<1x128xf32> to vector<8x128xf32>
    %150 = arith.addf %147, %149 : vector<8x128xf32>
    %151 = arith.truncf %150 : vector<8x128xf32> to vector<8x128xbf16>
    %c0_69 = arith.constant 0 : index
    %c0_70 = arith.constant 0 : index
    %152 = vector.load %arg22[%c0_69, %c0_70] : memref<128x256xbf16, #tpu.memory_space<vmem>>, vector<128x256xbf16>
    %cst_71 = arith.constant dense<0.000000e+00> : vector<8x256xf32>
    %153 = tpu.matmul %151, %152, %cst_71 {dimension_numbers = #tpu.dot_dimension_numbers<[1], [0], [0], [1], [0, 0, 1, 1], [], []>} : vector<8x128xbf16>, vector<128x256xbf16>, vector<8x256xf32> -> vector<8x256xf32>
    %c0_72 = arith.constant 0 : index
    %c0_73 = arith.constant 0 : index
    %154 = vector.load %arg23[%c0_72, %c0_73] : memref<1x256xf32, #tpu.memory_space<vmem>>, vector<1x256xf32>
    %155 = vector.broadcast %154 : vector<1x256xf32> to vector<8x256xf32>
    %156 = arith.addf %153, %155 : vector<8x256xf32>
    %cst_74 = arith.constant 5.000000e-01 : f32
    %157 = vector.broadcast %cst_74 : f32 to vector<8x256xf32>
    %158 = arith.mulf %157, %156 : vector<8x256xf32>
    %cst_75 = arith.constant 4.471500e-02 : f32
    %159 = vector.broadcast %cst_75 : f32 to vector<8x256xf32>
    %160 = arith.mulf %159, %156 : vector<8x256xf32>
    %161 = arith.mulf %160, %156 : vector<8x256xf32>
    %162 = arith.mulf %161, %156 : vector<8x256xf32>
    %163 = arith.addf %156, %162 : vector<8x256xf32>
    %cst_76 = arith.constant 0.797884583 : f32
    %164 = vector.broadcast %cst_76 : f32 to vector<8x256xf32>
    %165 = arith.mulf %164, %163 : vector<8x256xf32>
    %166 = math.tanh %165 : vector<8x256xf32>
    %cst_77 = arith.constant 1.000000e+00 : f32
    %167 = vector.broadcast %cst_77 : f32 to vector<8x256xf32>
    %168 = arith.addf %167, %166 : vector<8x256xf32>
    %169 = arith.mulf %158, %168 : vector<8x256xf32>
    %170 = arith.truncf %169 : vector<8x256xf32> to vector<8x256xbf16>
    %c0_78 = arith.constant 0 : index
    %c0_79 = arith.constant 0 : index
    %171 = vector.load %arg24[%c0_78, %c0_79] : memref<256x256xbf16, #tpu.memory_space<vmem>>, vector<256x256xbf16>
    %cst_80 = arith.constant dense<0.000000e+00> : vector<8x256xf32>
    %172 = tpu.matmul %170, %171, %cst_80 {dimension_numbers = #tpu.dot_dimension_numbers<[1], [0], [0], [1], [0, 0, 1, 1], [], []>} : vector<8x256xbf16>, vector<256x256xbf16>, vector<8x256xf32> -> vector<8x256xf32>
    %c0_81 = arith.constant 0 : index
    %c0_82 = arith.constant 0 : index
    %173 = vector.load %arg25[%c0_81, %c0_82] : memref<1x256xf32, #tpu.memory_space<vmem>>, vector<1x256xf32>
    %174 = vector.broadcast %173 : vector<1x256xf32> to vector<8x256xf32>
    %175 = arith.addf %172, %174 : vector<8x256xf32>
    %176 = arith.addf %175, %156 : vector<8x256xf32>
    %cst_83 = arith.constant dense<0.000000e+00> : vector<8xf32>
    %177 = vector.multi_reduction <add>, %176, %cst_83 [1] : vector<8x256xf32> to vector<8xf32>
    %178 = vector.shape_cast %177 : vector<8xf32> to vector<8x1xf32>
    %cst_84 = arith.constant 3.906250e-03 : f32
    %179 = vector.broadcast %cst_84 : f32 to vector<8x1xf32>
    %180 = arith.mulf %178, %179 : vector<8x1xf32>
    %181 = arith.mulf %176, %176 : vector<8x256xf32>
    %cst_85 = arith.constant dense<0.000000e+00> : vector<8xf32>
    %182 = vector.multi_reduction <add>, %181, %cst_85 [1] : vector<8x256xf32> to vector<8xf32>
    %183 = vector.shape_cast %182 : vector<8xf32> to vector<8x1xf32>
    %cst_86 = arith.constant 3.906250e-03 : f32
    %184 = vector.broadcast %cst_86 : f32 to vector<8x1xf32>
    %185 = arith.mulf %183, %184 : vector<8x1xf32>
    %186 = arith.mulf %180, %180 : vector<8x1xf32>
    %187 = arith.subf %185, %186 : vector<8x1xf32>
    %cst_87 = arith.constant 9.99999974E-6 : f32
    %188 = vector.broadcast %cst_87 : f32 to vector<8x1xf32>
    %189 = arith.addf %187, %188 : vector<8x1xf32>
    %190 = math.rsqrt %189 : vector<8x1xf32>
    %191 = vector.broadcast %180 : vector<8x1xf32> to vector<8x256xf32>
    %192 = arith.subf %176, %191 : vector<8x256xf32>
    %193 = vector.broadcast %190 : vector<8x1xf32> to vector<8x256xf32>
    %194 = arith.mulf %192, %193 : vector<8x256xf32>
    %c0_88 = arith.constant 0 : index
    %c0_89 = arith.constant 0 : index
    %195 = vector.load %arg26[%c0_88, %c0_89] : memref<1x256xf32, #tpu.memory_space<vmem>>, vector<1x256xf32>
    %196 = vector.broadcast %195 : vector<1x256xf32> to vector<8x256xf32>
    %197 = arith.mulf %194, %196 : vector<8x256xf32>
    %c0_90 = arith.constant 0 : index
    %c0_91 = arith.constant 0 : index
    %198 = vector.load %arg27[%c0_90, %c0_91] : memref<1x256xf32, #tpu.memory_space<vmem>>, vector<1x256xf32>
    %199 = vector.broadcast %198 : vector<1x256xf32> to vector<8x256xf32>
    %200 = arith.addf %197, %199 : vector<8x256xf32>
    %c0_92 = arith.constant 0 : index
    %c0_93 = arith.constant 0 : index
    %201 = vector.load %arg2[%c0_92, %c0_93] : memref<8x128xf32, #tpu.memory_space<vmem>>, vector<8x128xf32>
    %202 = arith.truncf %201 : vector<8x128xf32> to vector<8x128xbf16>
    %c0_94 = arith.constant 0 : index
    %c0_95 = arith.constant 0 : index
    %203 = vector.load %arg28[%c0_94, %c0_95] : memref<128x128xbf16, #tpu.memory_space<vmem>>, vector<128x128xbf16>
    %cst_96 = arith.constant dense<0.000000e+00> : vector<8x128xf32>
    %204 = tpu.matmul %202, %203, %cst_96 {dimension_numbers = #tpu.dot_dimension_numbers<[1], [0], [0], [1], [0, 0, 1, 1], [], []>} : vector<8x128xbf16>, vector<128x128xbf16>, vector<8x128xf32> -> vector<8x128xf32>
    %205 = arith.truncf %200 : vector<8x256xf32> to vector<8x256xbf16>
    %c0_97 = arith.constant 0 : index
    %c0_98 = arith.constant 0 : index
    %206 = vector.load %arg29[%c0_97, %c0_98] : memref<256x128xbf16, #tpu.memory_space<vmem>>, vector<256x128xbf16>
    %cst_99 = arith.constant dense<0.000000e+00> : vector<8x128xf32>
    %207 = tpu.matmul %205, %206, %cst_99 {dimension_numbers = #tpu.dot_dimension_numbers<[1], [0], [0], [1], [0, 0, 1, 1], [], []>} : vector<8x256xbf16>, vector<256x128xbf16>, vector<8x128xf32> -> vector<8x128xf32>
    %208 = arith.addf %204, %207 : vector<8x128xf32>
    %c0_100 = arith.constant 0 : index
    %c0_101 = arith.constant 0 : index
    %209 = vector.load %arg30[%c0_100, %c0_101] : memref<1x128xf32, #tpu.memory_space<vmem>>, vector<1x128xf32>
    %210 = vector.broadcast %209 : vector<1x128xf32> to vector<8x128xf32>
    %211 = arith.addf %208, %210 : vector<8x128xf32>
    %c0_102 = arith.constant 0 : index
    %c0_103 = arith.constant 0 : index
    %212 = vector.load %arg3[%c0_102, %c0_103] : memref<8x128xf32, #tpu.memory_space<vmem>>, vector<8x128xf32>
    %213 = arith.addf %212, %211 : vector<8x128xf32>
    %c0_104 = arith.constant 0 : index
    %c0_105 = arith.constant 0 : index
    %214 = vector.load %arg31[%c0_104, %c0_105] : memref<8x128xf32, #tpu.memory_space<vmem>>, vector<8x128xf32>
    tpu.vector_store %arg31[%c0_104, %c0_105], %213 {strides = array<i32>} : memref<8x128xf32, #tpu.memory_space<vmem>>, vector<8x128xf32>,
    return
  }
  func.func @transform_0(%arg0: i32) -> (i32, i32) {
    %c0_i32 = arith.constant 0 : i32
    %c0_i32_0 = arith.constant 0 : i32
    return %arg0, %c0_i32 : i32, i32
  }
  func.func @transform_1(%arg0: i32) -> (i32, i32) {
    %c0_i32 = arith.constant 0 : i32
    %c0_i32_0 = arith.constant 0 : i32
    return %arg0, %c0_i32 : i32, i32
  }
  func.func @transform_2(%arg0: i32) -> (i32, i32) {
    %c0_i32 = arith.constant 0 : i32
    %c0_i32_0 = arith.constant 0 : i32
    return %arg0, %c0_i32 : i32, i32
  }
  func.func @transform_3(%arg0: i32) -> (i32, i32) {
    %c0_i32 = arith.constant 0 : i32
    %c0_i32_0 = arith.constant 0 : i32
    %c0_i32_1 = arith.constant 0 : i32
    return %c0_i32, %c0_i32_0 : i32, i32
  }
  func.func @transform_4(%arg0: i32) -> (i32, i32) {
    %c0_i32 = arith.constant 0 : i32
    %c0_i32_0 = arith.constant 0 : i32
    %c0_i32_1 = arith.constant 0 : i32
    return %c0_i32, %c0_i32_0 : i32, i32
  }
  func.func @transform_5(%arg0: i32) -> (i32, i32) {
    %c0_i32 = arith.constant 0 : i32
    %c0_i32_0 = arith.constant 0 : i32
    %c0_i32_1 = arith.constant 0 : i32
    return %c0_i32, %c0_i32_0 : i32, i32
  }
  func.func @transform_6(%arg0: i32) -> (i32, i32) {
    %c0_i32 = arith.constant 0 : i32
    %c0_i32_0 = arith.constant 0 : i32
    %c0_i32_1 = arith.constant 0 : i32
    return %c0_i32, %c0_i32_0 : i32, i32
  }
  func.func @transform_7(%arg0: i32) -> (i32, i32) {
    %c0_i32 = arith.constant 0 : i32
    %c0_i32_0 = arith.constant 0 : i32
    %c0_i32_1 = arith.constant 0 : i32
    return %c0_i32, %c0_i32_0 : i32, i32
  }
  func.func @transform_8(%arg0: i32) -> (i32, i32) {
    %c0_i32 = arith.constant 0 : i32
    %c0_i32_0 = arith.constant 0 : i32
    %c0_i32_1 = arith.constant 0 : i32
    return %c0_i32, %c0_i32_0 : i32, i32
  }
  func.func @transform_9(%arg0: i32) -> (i32, i32) {
    %c0_i32 = arith.constant 0 : i32
    %c0_i32_0 = arith.constant 0 : i32
    %c0_i32_1 = arith.constant 0 : i32
    return %c0_i32, %c0_i32_0 : i32, i32
  }
  func.func @transform_10(%arg0: i32) -> (i32, i32) {
    %c0_i32 = arith.constant 0 : i32
    %c0_i32_0 = arith.constant 0 : i32
    %c0_i32_1 = arith.constant 0 : i32
    return %c0_i32, %c0_i32_0 : i32, i32
  }
  func.func @transform_11(%arg0: i32) -> (i32, i32) {
    %c0_i32 = arith.constant 0 : i32
    %c0_i32_0 = arith.constant 0 : i32
    %c0_i32_1 = arith.constant 0 : i32
    return %c0_i32, %c0_i32_0 : i32, i32
  }
  func.func @transform_12(%arg0: i32) -> (i32, i32) {
    %c0_i32 = arith.constant 0 : i32
    %c0_i32_0 = arith.constant 0 : i32
    %c0_i32_1 = arith.constant 0 : i32
    return %c0_i32, %c0_i32_0 : i32, i32
  }
  func.func @transform_13(%arg0: i32) -> (i32, i32) {
    %c0_i32 = arith.constant 0 : i32
    %c0_i32_0 = arith.constant 0 : i32
    %c0_i32_1 = arith.constant 0 : i32
    return %c0_i32, %c0_i32_0 : i32, i32
  }
  func.func @transform_14(%arg0: i32) -> (i32, i32) {
    %c0_i32 = arith.constant 0 : i32
    %c0_i32_0 = arith.constant 0 : i32
    %c0_i32_1 = arith.constant 0 : i32
    return %c0_i32, %c0_i32_0 : i32, i32
  }
  func.func @transform_15(%arg0: i32) -> (i32, i32) {
    %c0_i32 = arith.constant 0 : i32
    %c0_i32_0 = arith.constant 0 : i32
    %c0_i32_1 = arith.constant 0 : i32
    return %c0_i32, %c0_i32_0 : i32, i32
  }
  func.func @transform_16(%arg0: i32) -> (i32, i32) {
    %c0_i32 = arith.constant 0 : i32
    %c0_i32_0 = arith.constant 0 : i32
    %c0_i32_1 = arith.constant 0 : i32
    return %c0_i32, %c0_i32_0 : i32, i32
  }
  func.func @transform_17(%arg0: i32) -> (i32, i32) {
    %c0_i32 = arith.constant 0 : i32
    %c0_i32_0 = arith.constant 0 : i32
    %c0_i32_1 = arith.constant 0 : i32
    return %c0_i32, %c0_i32_0 : i32, i32
  }
  func.func @transform_18(%arg0: i32) -> (i32, i32) {
    %c0_i32 = arith.constant 0 : i32
    %c0_i32_0 = arith.constant 0 : i32
    %c0_i32_1 = arith.constant 0 : i32
    return %c0_i32, %c0_i32_0 : i32, i32
  }
  func.func @transform_19(%arg0: i32) -> (i32, i32) {
    %c0_i32 = arith.constant 0 : i32
    %c0_i32_0 = arith.constant 0 : i32
    %c0_i32_1 = arith.constant 0 : i32
    return %c0_i32, %c0_i32_0 : i32, i32
  }
  func.func @transform_20(%arg0: i32) -> (i32, i32) {
    %c0_i32 = arith.constant 0 : i32
    %c0_i32_0 = arith.constant 0 : i32
    %c0_i32_1 = arith.constant 0 : i32
    return %c0_i32, %c0_i32_0 : i32, i32
  }
  func.func @transform_21(%arg0: i32) -> (i32, i32) {
    %c0_i32 = arith.constant 0 : i32
    %c0_i32_0 = arith.constant 0 : i32
    %c0_i32_1 = arith.constant 0 : i32
    return %c0_i32, %c0_i32_0 : i32, i32
  }
  func.func @transform_22(%arg0: i32) -> (i32, i32) {
    %c0_i32 = arith.constant 0 : i32
    %c0_i32_0 = arith.constant 0 : i32
    %c0_i32_1 = arith.constant 0 : i32
    return %c0_i32, %c0_i32_0 : i32, i32
  }
  func.func @transform_23(%arg0: i32) -> (i32, i32) {
    %c0_i32 = arith.constant 0 : i32
    %c0_i32_0 = arith.constant 0 : i32
    %c0_i32_1 = arith.constant 0 : i32
    return %c0_i32, %c0_i32_0 : i32, i32
  }
  func.func @transform_24(%arg0: i32) -> (i32, i32) {
    %c0_i32 = arith.constant 0 : i32
    %c0_i32_0 = arith.constant 0 : i32
    %c0_i32_1 = arith.constant 0 : i32
    return %c0_i32, %c0_i32_0 : i32, i32
  }
  func.func @transform_25(%arg0: i32) -> (i32, i32) {
    %c0_i32 = arith.constant 0 : i32
    %c0_i32_0 = arith.constant 0 : i32
    %c0_i32_1 = arith.constant 0 : i32
    return %c0_i32, %c0_i32_0 : i32, i32
  }
  func.func @transform_26(%arg0: i32) -> (i32, i32) {
    %c0_i32 = arith.constant 0 : i32
    %c0_i32_0 = arith.constant 0 : i32
    %c0_i32_1 = arith.constant 0 : i32
    return %c0_i32, %c0_i32_0 : i32, i32
  }
  func.func @transform_27(%arg0: i32) -> (i32, i32) {
    %c0_i32 = arith.constant 0 : i32
    %c0_i32_0 = arith.constant 0 : i32
    %c0_i32_1 = arith.constant 0 : i32
    return %c0_i32, %c0_i32_0 : i32, i32
  }
  func.func @transform_28(%arg0: i32) -> (i32, i32) {
    %c0_i32 = arith.constant 0 : i32
    %c0_i32_0 = arith.constant 0 : i32
    %c0_i32_1 = arith.constant 0 : i32
    return %c0_i32, %c0_i32_0 : i32, i32
  }
  func.func @transform_29(%arg0: i32) -> (i32, i32) {
    %c0_i32 = arith.constant 0 : i32
    %c0_i32_0 = arith.constant 0 : i32
    %c0_i32_1 = arith.constant 0 : i32
    return %c0_i32, %c0_i32_0 : i32, i32
  }
  func.func @transform_30(%arg0: i32) -> (i32, i32) {
    %c0_i32 = arith.constant 0 : i32
    %c0_i32_0 = arith.constant 0 : i32
    return %arg0, %c0_i32 : i32, i32
  }
}

</mosaic_0001>

<llo_original>
// kernel: tpu_custom_call.1
$region0: #{tpu_custom_call.1}
  #allocation0 [shape = 'u32[]', space=smem, size = 0x4, offset = 0x4, fixed_abs, tag = 'smem constant byte address 0x4 - core index']
  #allocation1 [shape = 'u32[144,128]{1,0:T(1,128)}', space=vmem, size = 0x12000, scoped, tag = 'internal scratch']
  %s0 = inlined_call_operand.smem [shape: u32[31], index: -1, kind: input, shape index: {}]
  %s1 = sld [smem:[%s0]]
  %s2 = scalar_lea.smem %s0, 1
  %s3 = sld [smem:[%s2]]
  %s4 = scalar_lea.smem %s0, 2
  %s5 = sld [smem:[%s4]]
  %s6 = scalar_lea.smem %s0, 3
  %s7 = sld [smem:[%s6]]
  %s8 = scalar_lea.smem %s0, 4
  %s9 = sld [smem:[%s8]]
  %s10 = scalar_lea.smem %s0, 5
  %s11 = sld [smem:[%s10]]
  %s12 = scalar_lea.smem %s0, 6
  %s13 = sld [smem:[%s12]]
  %s14 = scalar_lea.smem %s0, 7
  %s15 = sld [smem:[%s14]]
  %s16 = scalar_lea.smem %s0, 8
  %s17 = sld [smem:[%s16]]
  %s18 = scalar_lea.smem %s0, 9
  %s19 = sld [smem:[%s18]]
  %s20 = scalar_lea.smem %s0, 10
  %s21 = sld [smem:[%s20]]
  %s22 = scalar_lea.smem %s0, 11
  %s23 = sld [smem:[%s22]]
  %s24 = scalar_lea.smem %s0, 12
  %s25 = sld [smem:[%s24]]
  %s26 = scalar_lea.smem %s0, 13
  %s27 = sld [smem:[%s26]]
  %s28 = scalar_lea.smem %s0, 14
  %s29 = sld [smem:[%s28]]
  %s30 = scalar_lea.smem %s0, 15
  %s31 = sld [smem:[%s30]]
  %s32 = scalar_lea.smem %s0, 16
  %s33 = sld [smem:[%s32]]
  %s34 = scalar_lea.smem %s0, 17
  %s35 = sld [smem:[%s34]]
  %s36 = scalar_lea.smem %s0, 18
  %s37 = sld [smem:[%s36]]
  %s38 = scalar_lea.smem %s0, 19
  %s39 = sld [smem:[%s38]]
  %s40 = scalar_lea.smem %s0, 20
  %s41 = sld [smem:[%s40]]
  %s42 = scalar_lea.smem %s0, 21
  %s43 = sld [smem:[%s42]]
  %s44 = scalar_lea.smem %s0, 22
  %s45 = sld [smem:[%s44]]
  %s46 = scalar_lea.smem %s0, 23
  %s47 = sld [smem:[%s46]]
  %s48 = scalar_lea.smem %s0, 24
  %s49 = sld [smem:[%s48]]
  %s50 = scalar_lea.smem %s0, 25
  %s51 = sld [smem:[%s50]]
  %s52 = scalar_lea.smem %s0, 26
  %s53 = sld [smem:[%s52]]
  %s54 = scalar_lea.smem %s0, 27
  %s55 = sld [smem:[%s54]]
  %s56 = scalar_lea.smem %s0, 28
  %s57 = sld [smem:[%s56]]
  %s58 = scalar_lea.smem %s0, 29
  %s59 = sld [smem:[%s58]]
  %s60 = scalar_lea.smem %s0, 30
  %s61 = sld [smem:[%s60]]
  %s62 = sld [smem:[#allocation0]]
  $region241: #{tpu_custom_call.1} parent=0
    _
  %s64 = ssub.s32 1, %s62
  %s65 = scalar_select 0, %s64, %s62
  $region1: #{tpu_custom_call.1} parent=0
    #allocation2 [shape = 'u8[16384]{0}', space=vmem, size = 0x4000, scoped, tag = 'input window, operand 0']
    #allocation3 [shape = 's32[2]{0}', space=sflag, size = 0x8, scoped, tag = 'scoped memory for tpu_custom_call.1']
    #allocation4 [shape = 's32[2]{0}', space=sflag, size = 0x8, scoped, tag = 'scoped memory for tpu_custom_call.1']
    #allocation5 [shape = 'u8[8192]{0}', space=vmem, size = 0x2000, scoped, tag = 'input window, operand 1']
    #allocation6 [shape = 's32[2]{0}', space=sflag, size = 0x8, scoped, tag = 'scoped memory for tpu_custom_call.1']
    #allocation7 [shape = 'u8[8192]{0}', space=vmem, size = 0x2000, scoped, tag = 'input window, operand 2']
    #allocation8 [shape = 'u8[131072]{0}', space=vmem, size = 0x20000, scoped, tag = 'input window, operand 3, single buffered']
    #allocation9 [shape = 's32[1]{0}', space=sflag, size = 0x4, scoped, tag = 'scoped memory for tpu_custom_call.1']
    #allocation10 [shape = 'u8[1024]{0}', space=vmem, size = 0x400, scoped, tag = 'input window, operand 4, single buffered']
    #allocation11 [shape = 'u8[131072]{0}', space=vmem, size = 0x20000, scoped, tag = 'input window, operand 5, single buffered']
    #allocation12 [shape = 's32[1]{0}', space=sflag, size = 0x4, scoped, tag = 'scoped memory for tpu_custom_call.1']
    #allocation13 [shape = 'u8[1024]{0}', space=vmem, size = 0x400, scoped, tag = 'input window, operand 6, single buffered']
    #allocation14 [shape = 'u8[1024]{0}', space=vmem, size = 0x400, scoped, tag = 'input window, operand 7, single buffered']
    #allocation15 [shape = 's32[1]{0}', space=sflag, size = 0x4, scoped, tag = 'scoped memory for tpu_custom_call.1']
    #allocation16 [shape = 'u8[1024]{0}', space=vmem, size = 0x400, scoped, tag = 'input window, operand 8, single buffered']
    #allocation17 [shape = 'u8[65536]{0}', space=vmem, size = 0x10000, scoped, tag = 'input window, operand 9, single buffered']
    #allocation18 [shape = 's32[1]{0}', space=sflag, size = 0x4, scoped, tag = 'scoped memory for tpu_custom_call.1']
    #allocation19 [shape = 'u8[512]{0}', space=vmem, size = 0x400, scoped, tag = 'input window, operand 10, single buffered']
    #allocation20 [shape = 'u8[32768]{0}', space=vmem, size = 0x8000, scoped, tag = 'input window, operand 11, single buffered']
    #allocation21 [shape = 's32[1]{0}', space=sflag, size = 0x4, scoped, tag = 'scoped memory for tpu_custom_call.1']
    #allocation22 [shape = 'u8[512]{0}', space=vmem, size = 0x400, scoped, tag = 'input window, operand 12, single buffered']
    #allocation23 [shape = 'u8[512]{0}', space=vmem, size = 0x400, scoped, tag = 'input window, operand 13, single buffered']
    #allocation24 [shape = 's32[1]{0}', space=sflag, size = 0x4, scoped, tag = 'scoped memory for tpu_custom_call.1']
    #allocation25 [shape = 'u8[512]{0}', space=vmem, size = 0x400, scoped, tag = 'input window, operand 14, single buffered']
    #allocation26 [shape = 'u8[32768]{0}', space=vmem, size = 0x8000, scoped, tag = 'input window, operand 15, single buffered']
    #allocation27 [shape = 's32[1]{0}', space=sflag, size = 0x4, scoped, tag = 'scoped memory for tpu_custom_call.1']
    #allocation28 [shape = 'u8[512]{0}', space=vmem, size = 0x400, scoped, tag = 'input window, operand 16, single buffered']
    #allocation29 [shape = 'u8[512]{0}', space=vmem, size = 0x400, scoped, tag = 'input window, operand 18, single buffered']
    #allocation30 [shape = 's32[1]{0}', space=sflag, size = 0x4, scoped, tag = 'scoped memory for tpu_custom_call.1']
    #allocation31 [shape = 'u8[65536]{0}', space=vmem, size = 0x10000, scoped, tag = 'input window, operand 21, single buffered']
    #allocation32 [shape = 'u8[131072]{0}', space=vmem, size = 0x20000, scoped, tag = 'input window, operand 23, single buffered']
    #allocation33 [shape = 's32[1]{0}', space=sflag, size = 0x4, scoped, tag = 'scoped memory for tpu_custom_call.1']
    #allocation34 [shape = 'u8[32768]{0}', space=vmem, size = 0x8000, scoped, tag = 'input window, operand 27, single buffered']
    #allocation35 [shape = 'u8[65536]{0}', space=vmem, size = 0x10000, scoped, tag = 'input window, operand 28, single buffered']
    #allocation36 [shape = 's32[1]{0}', space=sflag, size = 0x4, scoped, tag = 'scoped memory for tpu_custom_call.1']
    #allocation37 [shape = 'u8[8192]{0}', space=vmem, size = 0x2000, scoped, tag = 'output window, operand 0']
    %66 = vsyncpa [#allocation3], 0
    %s67 = scalar_lea.sflag [#allocation3], 1
    %68 = vsyncpa %s67, 0
    %69 = vsyncpa [#allocation6], 0
    %s70 = scalar_lea.sflag [#allocation6], 1
    %71 = vsyncpa %s70, 0
    %72 = vsyncpa [#allocation9], 0
    %73 = vsyncpa [#allocation12], 0
    %74 = vsyncpa [#allocation15], 0
    %75 = vsyncpa [#allocation18], 0
    %76 = vsyncpa [#allocation21], 0
    %77 = vsyncpa [#allocation24], 0
    %78 = vsyncpa [#allocation27], 0
    %79 = vsyncpa [#allocation30], 0
    %80 = vsyncpa [#allocation33], 0
    %81 = vsyncpa [#allocation36], 0
    %82 = vsyncpa [#allocation4], 0
    %s83 = scalar_lea.sflag [#allocation4], 1
    %84 = vsyncpa %s83, 0
    loop: start=0, step=1, limit=4
    $region2: #{tpu_custom_call.1} parent=1 // loop_pre_header
      _
    $region3: #{tpu_custom_call.1} parent=1 // loop_header
      %s86 = sphi 0, %s90
      %p87 = scmp.ge.s32.totalorder %s86, 4
      %s96 = sphi 0, %s98
      %s99 = sphi 0, %s96
      %s100 = sphi 0, %s99
      %s116 = sphi 0, %s100
      %s122 = sphi 0, %s124
      %s125 = sphi 0, %s122
      %s126 = sphi 0, %s125
      %s142 = sphi 0, %s126
      %s148 = sphi 0, %s150
      %s151 = sphi 0, %s148
      %s152 = sphi 0, %s151
      %s168 = sphi 0, %s152
      %s172 = sphi 0, %s172
      %s174 = sphi 0, %s172
      %s175 = sphi 0, %s174
      %s189 = sphi 0, %s175
      %s193 = sphi 0, %s193
      %s195 = sphi 0, %s193
      %s196 = sphi 0, %s195
      %s210 = sphi 0, %s196
      %s214 = sphi 0, %s214
      %s216 = sphi 0, %s214
      %s217 = sphi 0, %s216
      %s231 = sphi 0, %s217
      %s235 = sphi 0, %s235
      %s237 = sphi 0, %s235
      %s238 = sphi 0, %s237
      %s252 = sphi 0, %s238
      %s256 = sphi 0, %s256
      %s258 = sphi 0, %s256
      %s259 = sphi 0, %s258
      %s273 = sphi 0, %s259
      %s277 = sphi 0, %s277
      %s279 = sphi 0, %s277
      %s280 = sphi 0, %s279
      %s294 = sphi 0, %s280
      %s298 = sphi 0, %s298
      %s300 = sphi 0, %s298
      %s301 = sphi 0, %s300
      %s315 = sphi 0, %s301
      %s319 = sphi 0, %s319
      %s321 = sphi 0, %s319
      %s322 = sphi 0, %s321
      %s336 = sphi 0, %s322
      %s340 = sphi 0, %s340
      %s342 = sphi 0, %s340
      %s343 = sphi 0, %s342
      %s357 = sphi 0, %s343
      %s361 = sphi 0, %s361
      %s363 = sphi 0, %s361
      %s364 = sphi 0, %s363
      %s378 = sphi 0, %s364
      %s382 = sphi 0, %s382
      %s384 = sphi 0, %s382
      %s385 = sphi 0, %s384
      %s399 = sphi 0, %s385
      %s403 = sphi 0, %s403
      %s405 = sphi 0, %s403
      %s406 = sphi 0, %s405
      %s420 = sphi 0, %s406
      %s424 = sphi 0, %s424
      %s426 = sphi 0, %s424
      %s427 = sphi 0, %s426
      %s441 = sphi 0, %s427
      %s445 = sphi 0, %s445
      %s447 = sphi 0, %s445
      %s448 = sphi 0, %s447
      %s462 = sphi 0, %s448
      %s466 = sphi 0, %s466
      %s468 = sphi 0, %s466
      %s469 = sphi 0, %s468
      %s483 = sphi 0, %s469
      %s487 = sphi 0, %s487
      %s489 = sphi 0, %s487
      %s490 = sphi 0, %s489
      %s504 = sphi 0, %s490
      %s508 = sphi 0, %s508
      %s510 = sphi 0, %s508
      %s511 = sphi 0, %s510
      %s525 = sphi 0, %s511
      %s529 = sphi 0, %s529
      %s531 = sphi 0, %s529
      %s532 = sphi 0, %s531
      %s546 = sphi 0, %s532
      %s550 = sphi 0, %s550
      %s552 = sphi 0, %s550
      %s553 = sphi 0, %s552
      %s567 = sphi 0, %s553
      %s571 = sphi 0, %s571
      %s573 = sphi 0, %s571
      %s574 = sphi 0, %s573
      %s588 = sphi 0, %s574
      %s592 = sphi 0, %s592
      %s594 = sphi 0, %s592
      %s595 = sphi 0, %s594
      %s609 = sphi 0, %s595
      %s613 = sphi 0, %s613
      %s615 = sphi 0, %s613
      %s616 = sphi 0, %s615
      %s630 = sphi 0, %s616
      %s634 = sphi 0, %s634
      %s636 = sphi 0, %s634
      %s637 = sphi 0, %s636
      %s651 = sphi 0, %s637
      %s655 = sphi 0, %s655
      %s657 = sphi 0, %s655
      %s658 = sphi 0, %s657
      %s672 = sphi 0, %s658
      %s676 = sphi 0, %s676
      %s678 = sphi 0, %s676
      %s679 = sphi 0, %s678
      %s693 = sphi 0, %s679
      %s697 = sphi 0, %s697
      %s699 = sphi 0, %s697
      %s700 = sphi 0, %s699
      %s714 = sphi 0, %s700
      %s718 = sphi 0, %s718
      %s720 = sphi 0, %s718
      %s721 = sphi 0, %s720
      %s735 = sphi 0, %s721
      %s741 = sphi 0, %s743
      %s744 = sphi 0, %s741
      %s745 = sphi 0, %s744
      %s761 = sphi 0, %s745
    $region4: #{tpu_custom_call.1} parent=1 // loop_header_branch
      %89 = sbr.rel (%p87) target = $region8
    $region5: #{tpu_custom_call.1} parent=1 // loop_body
      %s91 = ssub.s32 %s86, 1
      %s92 = ssub.s32 %s86, 2
      %s93 = sadd.s32 %s86, 1
      %s94 = ssub.s32 %s86, %s93
      %p95 = scmp.eq.s32.totalorder %s94, 0
      %s97 = sadd.s32 %s96, 1
      %s98 = scalar_select %p95, %s96, %s97
      %p101 = pneg %p95
      %p102 = scmp.eq.s32.totalorder %s86, 1
      %p103 = por %p101, %p102
      %p104 = scmp.ne.s32.totalorder %s96, %s99
      %p105 = scmp.eq.s32.totalorder %s86, 0
      %p106 = por %p104, %p105
      %p107 = scmp.ne.s32.totalorder %s96, %s99
      %p108 = scmp.eq.s32.totalorder %s91, 1
      %p109 = por %p107, %p108
      %p110 = scmp.ne.s32.totalorder %s99, %s100
      %p111 = scmp.eq.s32.totalorder %s91, 0
      %p112 = por %p110, %p111
      %p113 = scmp.ne.s32.totalorder %s99, %s100
      %p114 = scmp.eq.s32.totalorder %s92, 1
      %p115 = por %p113, %p114
      %p117 = scmp.ne.s32.totalorder %s100, %s116
      %p118 = scmp.eq.s32.totalorder %s92, 0
      %p119 = por %p117, %p118
      %s120 = ssub.s32 %s86, %s93
      %p121 = scmp.eq.s32.totalorder %s120, 0
      %s123 = sadd.s32 %s122, 1
      %s124 = scalar_select %p121, %s122, %s123
      %p127 = pneg %p121
      %p128 = scmp.eq.s32.totalorder %s86, 1
      %p129 = por %p127, %p128
      %p130 = scmp.ne.s32.totalorder %s122, %s125
      %p131 = scmp.eq.s32.totalorder %s86, 0
      %p132 = por %p130, %p131
      %p133 = scmp.ne.s32.totalorder %s122, %s125
      %p134 = scmp.eq.s32.totalorder %s91, 1
      %p135 = por %p133, %p134
      %p136 = scmp.ne.s32.totalorder %s125, %s126
      %p137 = scmp.eq.s32.totalorder %s91, 0
      %p138 = por %p136, %p137
      %p139 = scmp.ne.s32.totalorder %s125, %s126
      %p140 = scmp.eq.s32.totalorder %s92, 1
      %p141 = por %p139, %p140
      %p143 = scmp.ne.s32.totalorder %s126, %s142
      %p144 = scmp.eq.s32.totalorder %s92, 0
      %p145 = por %p143, %p144
      %s146 = ssub.s32 %s86, %s93
      %p147 = scmp.eq.s32.totalorder %s146, 0
      %s149 = sadd.s32 %s148, 1
      %s150 = scalar_select %p147, %s148, %s149
      %p153 = pneg %p147
      %p154 = scmp.eq.s32.totalorder %s86, 1
      %p155 = por %p153, %p154
      %p156 = scmp.ne.s32.totalorder %s148, %s151
      %p157 = scmp.eq.s32.totalorder %s86, 0
      %p158 = por %p156, %p157
      %p159 = scmp.ne.s32.totalorder %s148, %s151
      %p160 = scmp.eq.s32.totalorder %s91, 1
      %p161 = por %p159, %p160
      %p162 = scmp.ne.s32.totalorder %s151, %s152
      %p163 = scmp.eq.s32.totalorder %s91, 0
      %p164 = por %p162, %p163
      %p165 = scmp.ne.s32.totalorder %s151, %s152
      %p166 = scmp.eq.s32.totalorder %s92, 1
      %p167 = por %p165, %p166
      %p169 = scmp.ne.s32.totalorder %s152, %s168
      %p170 = scmp.eq.s32.totalorder %s92, 0
      %p171 = por %p169, %p170
      %s173 = sadd.s32 %s172, 1
      %p176 = scmp.eq.s32.totalorder %s86, 1
      %p177 = scmp.ne.s32.totalorder %s172, %s174
      %p178 = scmp.eq.s32.totalorder %s86, 0
      %p179 = por %p177, %p178
      %p180 = scmp.ne.s32.totalorder %s172, %s174
      %p181 = scmp.eq.s32.totalorder %s91, 1
      %p182 = por %p180, %p181
      %p183 = scmp.ne.s32.totalorder %s174, %s175
      %p184 = scmp.eq.s32.totalorder %s91, 0
      %p185 = por %p183, %p184
      %p186 = scmp.ne.s32.totalorder %s174, %s175
      %p187 = scmp.eq.s32.totalorder %s92, 1
      %p188 = por %p186, %p187
      %p190 = scmp.ne.s32.totalorder %s175, %s189
      %p191 = scmp.eq.s32.totalorder %s92, 0
      %p192 = por %p190, %p191
      %s194 = sadd.s32 %s193, 1
      %p197 = scmp.eq.s32.totalorder %s86, 1
      %p198 = scmp.ne.s32.totalorder %s193, %s195
      %p199 = scmp.eq.s32.totalorder %s86, 0
      %p200 = por %p198, %p199
      %p201 = scmp.ne.s32.totalorder %s193, %s195
      %p202 = scmp.eq.s32.totalorder %s91, 1
      %p203 = por %p201, %p202
      %p204 = scmp.ne.s32.totalorder %s195, %s196
      %p205 = scmp.eq.s32.totalorder %s91, 0
      %p206 = por %p204, %p205
      %p207 = scmp.ne.s32.totalorder %s195, %s196
      %p208 = scmp.eq.s32.totalorder %s92, 1
      %p209 = por %p207, %p208
      %p211 = scmp.ne.s32.totalorder %s196, %s210
      %p212 = scmp.eq.s32.totalorder %s92, 0
      %p213 = por %p211, %p212
      %s215 = sadd.s32 %s214, 1
      %p218 = scmp.eq.s32.totalorder %s86, 1
      %p219 = scmp.ne.s32.totalorder %s214, %s216
      %p220 = scmp.eq.s32.totalorder %s86, 0
      %p221 = por %p219, %p220
      %p222 = scmp.ne.s32.totalorder %s214, %s216
      %p223 = scmp.eq.s32.totalorder %s91, 1
      %p224 = por %p222, %p223
      %p225 = scmp.ne.s32.totalorder %s216, %s217
      %p226 = scmp.eq.s32.totalorder %s91, 0
      %p227 = por %p225, %p226
      %p228 = scmp.ne.s32.totalorder %s216, %s217
      %p229 = scmp.eq.s32.totalorder %s92, 1
      %p230 = por %p228, %p229
      %p232 = scmp.ne.s32.totalorder %s217, %s231
      %p233 = scmp.eq.s32.totalorder %s92, 0
      %p234 = por %p232, %p233
      %s236 = sadd.s32 %s235, 1
      %p239 = scmp.eq.s32.totalorder %s86, 1
      %p240 = scmp.ne.s32.totalorder %s235, %s237
      %p241 = scmp.eq.s32.totalorder %s86, 0
      %p242 = por %p240, %p241
      %p243 = scmp.ne.s32.totalorder %s235, %s237
      %p244 = scmp.eq.s32.totalorder %s91, 1
      %p245 = por %p243, %p244
      %p246 = scmp.ne.s32.totalorder %s237, %s238
      %p247 = scmp.eq.s32.totalorder %s91, 0
      %p248 = por %p246, %p247
      %p249 = scmp.ne.s32.totalorder %s237, %s238
      %p250 = scmp.eq.s32.totalorder %s92, 1
      %p251 = por %p249, %p250
      %p253 = scmp.ne.s32.totalorder %s238, %s252
      %p254 = scmp.eq.s32.totalorder %s92, 0
      %p255 = por %p253, %p254
      %s257 = sadd.s32 %s256, 1
      %p260 = scmp.eq.s32.totalorder %s86, 1
      %p261 = scmp.ne.s32.totalorder %s256, %s258
      %p262 = scmp.eq.s32.totalorder %s86, 0
      %p263 = por %p261, %p262
      %p264 = scmp.ne.s32.totalorder %s256, %s258
      %p265 = scmp.eq.s32.totalorder %s91, 1
      %p266 = por %p264, %p265
      %p267 = scmp.ne.s32.totalorder %s258, %s259
      %p268 = scmp.eq.s32.totalorder %s91, 0
      %p269 = por %p267, %p268
      %p270 = scmp.ne.s32.totalorder %s258, %s259
      %p271 = scmp.eq.s32.totalorder %s92, 1
      %p272 = por %p270, %p271
      %p274 = scmp.ne.s32.totalorder %s259, %s273
      %p275 = scmp.eq.s32.totalorder %s92, 0
      %p276 = por %p274, %p275
      %s278 = sadd.s32 %s277, 1
      %p281 = scmp.eq.s32.totalorder %s86, 1
      %p282 = scmp.ne.s32.totalorder %s277, %s279
      %p283 = scmp.eq.s32.totalorder %s86, 0
      %p284 = por %p282, %p283
      %p285 = scmp.ne.s32.totalorder %s277, %s279
      %p286 = scmp.eq.s32.totalorder %s91, 1
      %p287 = por %p285, %p286
      %p288 = scmp.ne.s32.totalorder %s279, %s280
      %p289 = scmp.eq.s32.totalorder %s91, 0
      %p290 = por %p288, %p289
      %p291 = scmp.ne.s32.totalorder %s279, %s280
      %p292 = scmp.eq.s32.totalorder %s92, 1
      %p293 = por %p291, %p292
      %p295 = scmp.ne.s32.totalorder %s280, %s294
      %p296 = scmp.eq.s32.totalorder %s92, 0
      %p297 = por %p295, %p296
      %s299 = sadd.s32 %s298, 1
      %p302 = scmp.eq.s32.totalorder %s86, 1
      %p303 = scmp.ne.s32.totalorder %s298, %s300
      %p304 = scmp.eq.s32.totalorder %s86, 0
      %p305 = por %p303, %p304
      %p306 = scmp.ne.s32.totalorder %s298, %s300
      %p307 = scmp.eq.s32.totalorder %s91, 1
      %p308 = por %p306, %p307
      %p309 = scmp.ne.s32.totalorder %s300, %s301
      %p310 = scmp.eq.s32.totalorder %s91, 0
      %p311 = por %p309, %p310
      %p312 = scmp.ne.s32.totalorder %s300, %s301
      %p313 = scmp.eq.s32.totalorder %s92, 1
      %p314 = por %p312, %p313
      %p316 = scmp.ne.s32.totalorder %s301, %s315
      %p317 = scmp.eq.s32.totalorder %s92, 0
      %p318 = por %p316, %p317
      %s320 = sadd.s32 %s319, 1
      %p323 = scmp.eq.s32.totalorder %s86, 1
      %p324 = scmp.ne.s32.totalorder %s319, %s321
      %p325 = scmp.eq.s32.totalorder %s86, 0
      %p326 = por %p324, %p325
      %p327 = scmp.ne.s32.totalorder %s319, %s321
      %p328 = scmp.eq.s32.totalorder %s91, 1
      %p329 = por %p327, %p328
      %p330 = scmp.ne.s32.totalorder %s321, %s322
      %p331 = scmp.eq.s32.totalorder %s91, 0
      %p332 = por %p330, %p331
      %p333 = scmp.ne.s32.totalorder %s321, %s322
      %p334 = scmp.eq.s32.totalorder %s92, 1
      %p335 = por %p333, %p334
      %p337 = scmp.ne.s32.totalorder %s322, %s336
      %p338 = scmp.eq.s32.totalorder %s92, 0
      %p339 = por %p337, %p338
      %s341 = sadd.s32 %s340, 1
      %p344 = scmp.eq.s32.totalorder %s86, 1
      %p345 = scmp.ne.s32.totalorder %s340, %s342
      %p346 = scmp.eq.s32.totalorder %s86, 0
      %p347 = por %p345, %p346
      %p348 = scmp.ne.s32.totalorder %s340, %s342
      %p349 = scmp.eq.s32.totalorder %s91, 1
      %p350 = por %p348, %p349
      %p351 = scmp.ne.s32.totalorder %s342, %s343
      %p352 = scmp.eq.s32.totalorder %s91, 0
      %p353 = por %p351, %p352
      %p354 = scmp.ne.s32.totalorder %s342, %s343
      %p355 = scmp.eq.s32.totalorder %s92, 1
      %p356 = por %p354, %p355
      %p358 = scmp.ne.s32.totalorder %s343, %s357
      %p359 = scmp.eq.s32.totalorder %s92, 0
      %p360 = por %p358, %p359
      %s362 = sadd.s32 %s361, 1
      %p365 = scmp.eq.s32.totalorder %s86, 1
      %p366 = scmp.ne.s32.totalorder %s361, %s363
      %p367 = scmp.eq.s32.totalorder %s86, 0
      %p368 = por %p366, %p367
      %p369 = scmp.ne.s32.totalorder %s361, %s363
      %p370 = scmp.eq.s32.totalorder %s91, 1
      %p371 = por %p369, %p370
      %p372 = scmp.ne.s32.totalorder %s363, %s364
      %p373 = scmp.eq.s32.totalorder %s91, 0
      %p374 = por %p372, %p373
      %p375 = scmp.ne.s32.totalorder %s363, %s364
      %p376 = scmp.eq.s32.totalorder %s92, 1
      %p377 = por %p375, %p376
      %p379 = scmp.ne.s32.totalorder %s364, %s378
      %p380 = scmp.eq.s32.totalorder %s92, 0
      %p381 = por %p379, %p380
      %s383 = sadd.s32 %s382, 1
      %p386 = scmp.eq.s32.totalorder %s86, 1
      %p387 = scmp.ne.s32.totalorder %s382, %s384
      %p388 = scmp.eq.s32.totalorder %s86, 0
      %p389 = por %p387, %p388
      %p390 = scmp.ne.s32.totalorder %s382, %s384
      %p391 = scmp.eq.s32.totalorder %s91, 1
      %p392 = por %p390, %p391
      %p393 = scmp.ne.s32.totalorder %s384, %s385
      %p394 = scmp.eq.s32.totalorder %s91, 0
      %p395 = por %p393, %p394
      %p396 = scmp.ne.s32.totalorder %s384, %s385
      %p397 = scmp.eq.s32.totalorder %s92, 1
      %p398 = por %p396, %p397
      %p400 = scmp.ne.s32.totalorder %s385, %s399
      %p401 = scmp.eq.s32.totalorder %s92, 0
      %p402 = por %p400, %p401
      %s404 = sadd.s32 %s403, 1
      %p407 = scmp.eq.s32.totalorder %s86, 1
      %p408 = scmp.ne.s32.totalorder %s403, %s405
      %p409 = scmp.eq.s32.totalorder %s86, 0
      %p410 = por %p408, %p409
      %p411 = scmp.ne.s32.totalorder %s403, %s405
      %p412 = scmp.eq.s32.totalorder %s91, 1
      %p413 = por %p411, %p412
      %p414 = scmp.ne.s32.totalorder %s405, %s406
      %p415 = scmp.eq.s32.totalorder %s91, 0
      %p416 = por %p414, %p415
      %p417 = scmp.ne.s32.totalorder %s405, %s406
      %p418 = scmp.eq.s32.totalorder %s92, 1
      %p419 = por %p417, %p418
      %p421 = scmp.ne.s32.totalorder %s406, %s420
      %p422 = scmp.eq.s32.totalorder %s92, 0
      %p423 = por %p421, %p422
      %s425 = sadd.s32 %s424, 1
      %p428 = scmp.eq.s32.totalorder %s86, 1
      %p429 = scmp.ne.s32.totalorder %s424, %s426
      %p430 = scmp.eq.s32.totalorder %s86, 0
      %p431 = por %p429, %p430
      %p432 = scmp.ne.s32.totalorder %s424, %s426
      %p433 = scmp.eq.s32.totalorder %s91, 1
      %p434 = por %p432, %p433
      %p435 = scmp.ne.s32.totalorder %s426, %s427
      %p436 = scmp.eq.s32.totalorder %s91, 0
      %p437 = por %p435, %p436
      %p438 = scmp.ne.s32.totalorder %s426, %s427
      %p439 = scmp.eq.s32.totalorder %s92, 1
      %p440 = por %p438, %p439
      %p442 = scmp.ne.s32.totalorder %s427, %s441
      %p443 = scmp.eq.s32.totalorder %s92, 0
      %p444 = por %p442, %p443
      %s446 = sadd.s32 %s445, 1
      %p449 = scmp.eq.s32.totalorder %s86, 1
      %p450 = scmp.ne.s32.totalorder %s445, %s447
      %p451 = scmp.eq.s32.totalorder %s86, 0
      %p452 = por %p450, %p451
      %p453 = scmp.ne.s32.totalorder %s445, %s447
      %p454 = scmp.eq.s32.totalorder %s91, 1
      %p455 = por %p453, %p454
      %p456 = scmp.ne.s32.totalorder %s447, %s448
      %p457 = scmp.eq.s32.totalorder %s91, 0
      %p458 = por %p456, %p457
      %p459 = scmp.ne.s32.totalorder %s447, %s448
      %p460 = scmp.eq.s32.totalorder %s92, 1
      %p461 = por %p459, %p460
      %p463 = scmp.ne.s32.totalorder %s448, %s462
      %p464 = scmp.eq.s32.totalorder %s92, 0
      %p465 = por %p463, %p464
      %s467 = sadd.s32 %s466, 1
      %p470 = scmp.eq.s32.totalorder %s86, 1
      %p471 = scmp.ne.s32.totalorder %s466, %s468
      %p472 = scmp.eq.s32.totalorder %s86, 0
      %p473 = por %p471, %p472
      %p474 = scmp.ne.s32.totalorder %s466, %s468
      %p475 = scmp.eq.s32.totalorder %s91, 1
      %p476 = por %p474, %p475
      %p477 = scmp.ne.s32.totalorder %s468, %s469
      %p478 = scmp.eq.s32.totalorder %s91, 0
      %p479 = por %p477, %p478
      %p480 = scmp.ne.s32.totalorder %s468, %s469
      %p481 = scmp.eq.s32.totalorder %s92, 1
      %p482 = por %p480, %p481
      %p484 = scmp.ne.s32.totalorder %s469, %s483
      %p485 = scmp.eq.s32.totalorder %s92, 0
      %p486 = por %p484, %p485
      %s488 = sadd.s32 %s487, 1
      %p491 = scmp.eq.s32.totalorder %s86, 1
      %p492 = scmp.ne.s32.totalorder %s487, %s489
      %p493 = scmp.eq.s32.totalorder %s86, 0
      %p494 = por %p492, %p493
      %p495 = scmp.ne.s32.totalorder %s487, %s489
      %p496 = scmp.eq.s32.totalorder %s91, 1
      %p497 = por %p495, %p496
      %p498 = scmp.ne.s32.totalorder %s489, %s490
      %p499 = scmp.eq.s32.totalorder %s91, 0
      %p500 = por %p498, %p499
      %p501 = scmp.ne.s32.totalorder %s489, %s490
      %p502 = scmp.eq.s32.totalorder %s92, 1
      %p503 = por %p501, %p502
      %p505 = scmp.ne.s32.totalorder %s490, %s504
      %p506 = scmp.eq.s32.totalorder %s92, 0
      %p507 = por %p505, %p506
      %s509 = sadd.s32 %s508, 1
      %p512 = scmp.eq.s32.totalorder %s86, 1
      %p513 = scmp.ne.s32.totalorder %s508, %s510
      %p514 = scmp.eq.s32.totalorder %s86, 0
      %p515 = por %p513, %p514
      %p516 = scmp.ne.s32.totalorder %s508, %s510
      %p517 = scmp.eq.s32.totalorder %s91, 1
      %p518 = por %p516, %p517
      %p519 = scmp.ne.s32.totalorder %s510, %s511
      %p520 = scmp.eq.s32.totalorder %s91, 0
      %p521 = por %p519, %p520
      %p522 = scmp.ne.s32.totalorder %s510, %s511
      %p523 = scmp.eq.s32.totalorder %s92, 1
      %p524 = por %p522, %p523
      %p526 = scmp.ne.s32.totalorder %s511, %s525
      %p527 = scmp.eq.s32.totalorder %s92, 0
      %p528 = por %p526, %p527
      %s530 = sadd.s32 %s529, 1
      %p533 = scmp.eq.s32.totalorder %s86, 1
      %p534 = scmp.ne.s32.totalorder %s529, %s531
      %p535 = scmp.eq.s32.totalorder %s86, 0
      %p536 = por %p534, %p535
      %p537 = scmp.ne.s32.totalorder %s529, %s531
      %p538 = scmp.eq.s32.totalorder %s91, 1
      %p539 = por %p537, %p538
      %p540 = scmp.ne.s32.totalorder %s531, %s532
      %p541 = scmp.eq.s32.totalorder %s91, 0
      %p542 = por %p540, %p541
      %p543 = scmp.ne.s32.totalorder %s531, %s532
      %p544 = scmp.eq.s32.totalorder %s92, 1
      %p545 = por %p543, %p544
      %p547 = scmp.ne.s32.totalorder %s532, %s546
      %p548 = scmp.eq.s32.totalorder %s92, 0
      %p549 = por %p547, %p548
      %s551 = sadd.s32 %s550, 1
      %p554 = scmp.eq.s32.totalorder %s86, 1
      %p555 = scmp.ne.s32.totalorder %s550, %s552
      %p556 = scmp.eq.s32.totalorder %s86, 0
      %p557 = por %p555, %p556
      %p558 = scmp.ne.s32.totalorder %s550, %s552
      %p559 = scmp.eq.s32.totalorder %s91, 1
      %p560 = por %p558, %p559
      %p561 = scmp.ne.s32.totalorder %s552, %s553
      %p562 = scmp.eq.s32.totalorder %s91, 0
      %p563 = por %p561, %p562
      %p564 = scmp.ne.s32.totalorder %s552, %s553
      %p565 = scmp.eq.s32.totalorder %s92, 1
      %p566 = por %p564, %p565
      %p568 = scmp.ne.s32.totalorder %s553, %s567
      %p569 = scmp.eq.s32.totalorder %s92, 0
      %p570 = por %p568, %p569
      %s572 = sadd.s32 %s571, 1
      %p575 = scmp.eq.s32.totalorder %s86, 1
      %p576 = scmp.ne.s32.totalorder %s571, %s573
      %p577 = scmp.eq.s32.totalorder %s86, 0
      %p578 = por %p576, %p577
      %p579 = scmp.ne.s32.totalorder %s571, %s573
      %p580 = scmp.eq.s32.totalorder %s91, 1
      %p581 = por %p579, %p580
      %p582 = scmp.ne.s32.totalorder %s573, %s574
      %p583 = scmp.eq.s32.totalorder %s91, 0
      %p584 = por %p582, %p583
      %p585 = scmp.ne.s32.totalorder %s573, %s574
      %p586 = scmp.eq.s32.totalorder %s92, 1
      %p587 = por %p585, %p586
      %p589 = scmp.ne.s32.totalorder %s574, %s588
      %p590 = scmp.eq.s32.totalorder %s92, 0
      %p591 = por %p589, %p590
      %s593 = sadd.s32 %s592, 1
      %p596 = scmp.eq.s32.totalorder %s86, 1
      %p597 = scmp.ne.s32.totalorder %s592, %s594
      %p598 = scmp.eq.s32.totalorder %s86, 0
      %p599 = por %p597, %p598
      %p600 = scmp.ne.s32.totalorder %s592, %s594
      %p601 = scmp.eq.s32.totalorder %s91, 1
      %p602 = por %p600, %p601
      %p603 = scmp.ne.s32.totalorder %s594, %s595
      %p604 = scmp.eq.s32.totalorder %s91, 0
      %p605 = por %p603, %p604
      %p606 = scmp.ne.s32.totalorder %s594, %s595
      %p607 = scmp.eq.s32.totalorder %s92, 1
      %p608 = por %p606, %p607
      %p610 = scmp.ne.s32.totalorder %s595, %s609
      %p611 = scmp.eq.s32.totalorder %s92, 0
      %p612 = por %p610, %p611
      %s614 = sadd.s32 %s613, 1
      %p617 = scmp.eq.s32.totalorder %s86, 1
      %p618 = scmp.ne.s32.totalorder %s613, %s615
      %p619 = scmp.eq.s32.totalorder %s86, 0
      %p620 = por %p618, %p619
      %p621 = scmp.ne.s32.totalorder %s613, %s615
      %p622 = scmp.eq.s32.totalorder %s91, 1
      %p623 = por %p621, %p622
      %p624 = scmp.ne.s32.totalorder %s615, %s616
      %p625 = scmp.eq.s32.totalorder %s91, 0
      %p626 = por %p624, %p625
      %p627 = scmp.ne.s32.totalorder %s615, %s616
      %p628 = scmp.eq.s32.totalorder %s92, 1
      %p629 = por %p627, %p628
      %p631 = scmp.ne.s32.totalorder %s616, %s630
      %p632 = scmp.eq.s32.totalorder %s92, 0
      %p633 = por %p631, %p632
      %s635 = sadd.s32 %s634, 1
      %p638 = scmp.eq.s32.totalorder %s86, 1
      %p639 = scmp.ne.s32.totalorder %s634, %s636
      %p640 = scmp.eq.s32.totalorder %s86, 0
      %p641 = por %p639, %p640
      %p642 = scmp.ne.s32.totalorder %s634, %s636
      %p643 = scmp.eq.s32.totalorder %s91, 1
      %p644 = por %p642, %p643
      %p645 = scmp.ne.s32.totalorder %s636, %s637
      %p646 = scmp.eq.s32.totalorder %s91, 0
      %p647 = por %p645, %p646
      %p648 = scmp.ne.s32.totalorder %s636, %s637
      %p649 = scmp.eq.s32.totalorder %s92, 1
      %p650 = por %p648, %p649
      %p652 = scmp.ne.s32.totalorder %s637, %s651
      %p653 = scmp.eq.s32.totalorder %s92, 0
      %p654 = por %p652, %p653
      %s656 = sadd.s32 %s655, 1
      %p659 = scmp.eq.s32.totalorder %s86, 1
      %p660 = scmp.ne.s32.totalorder %s655, %s657
      %p661 = scmp.eq.s32.totalorder %s86, 0
      %p662 = por %p660, %p661
      %p663 = scmp.ne.s32.totalorder %s655, %s657
      %p664 = scmp.eq.s32.totalorder %s91, 1
      %p665 = por %p663, %p664
      %p666 = scmp.ne.s32.totalorder %s657, %s658
      %p667 = scmp.eq.s32.totalorder %s91, 0
      %p668 = por %p666, %p667
      %p669 = scmp.ne.s32.totalorder %s657, %s658
      %p670 = scmp.eq.s32.totalorder %s92, 1
      %p671 = por %p669, %p670
      %p673 = scmp.ne.s32.totalorder %s658, %s672
      %p674 = scmp.eq.s32.totalorder %s92, 0
      %p675 = por %p673, %p674
      %s677 = sadd.s32 %s676, 1
      %p680 = scmp.eq.s32.totalorder %s86, 1
      %p681 = scmp.ne.s32.totalorder %s676, %s678
      %p682 = scmp.eq.s32.totalorder %s86, 0
      %p683 = por %p681, %p682
      %p684 = scmp.ne.s32.totalorder %s676, %s678
      %p685 = scmp.eq.s32.totalorder %s91, 1
      %p686 = por %p684, %p685
      %p687 = scmp.ne.s32.totalorder %s678, %s679
      %p688 = scmp.eq.s32.totalorder %s91, 0
      %p689 = por %p687, %p688
      %p690 = scmp.ne.s32.totalorder %s678, %s679
      %p691 = scmp.eq.s32.totalorder %s92, 1
      %p692 = por %p690, %p691
      %p694 = scmp.ne.s32.totalorder %s679, %s693
      %p695 = scmp.eq.s32.totalorder %s92, 0
      %p696 = por %p694, %p695
      %s698 = sadd.s32 %s697, 1
      %p701 = scmp.eq.s32.totalorder %s86, 1
      %p702 = scmp.ne.s32.totalorder %s697, %s699
      %p703 = scmp.eq.s32.totalorder %s86, 0
      %p704 = por %p702, %p703
      %p705 = scmp.ne.s32.totalorder %s697, %s699
      %p706 = scmp.eq.s32.totalorder %s91, 1
      %p707 = por %p705, %p706
      %p708 = scmp.ne.s32.totalorder %s699, %s700
      %p709 = scmp.eq.s32.totalorder %s91, 0
      %p710 = por %p708, %p709
      %p711 = scmp.ne.s32.totalorder %s699, %s700
      %p712 = scmp.eq.s32.totalorder %s92, 1
      %p713 = por %p711, %p712
      %p715 = scmp.ne.s32.totalorder %s700, %s714
      %p716 = scmp.eq.s32.totalorder %s92, 0
      %p717 = por %p715, %p716
      %s719 = sadd.s32 %s718, 1
      %p722 = scmp.eq.s32.totalorder %s86, 1
      %p723 = scmp.ne.s32.totalorder %s718, %s720
      %p724 = scmp.eq.s32.totalorder %s86, 0
      %p725 = por %p723, %p724
      %p726 = scmp.ne.s32.totalorder %s718, %s720
      %p727 = scmp.eq.s32.totalorder %s91, 1
      %p728 = por %p726, %p727
      %p729 = scmp.ne.s32.totalorder %s720, %s721
      %p730 = scmp.eq.s32.totalorder %s91, 0
      %p731 = por %p729, %p730
      %p732 = scmp.ne.s32.totalorder %s720, %s721
      %p733 = scmp.eq.s32.totalorder %s92, 1
      %p734 = por %p732, %p733
      %p736 = scmp.ne.s32.totalorder %s721, %s735
      %p737 = scmp.eq.s32.totalorder %s92, 0
      %p738 = por %p736, %p737
      %s739 = ssub.s32 %s86, %s93
      %p740 = scmp.eq.s32.totalorder %s739, 0
      %s742 = sadd.s32 %s741, 1
      %s743 = scalar_select %p740, %s741, %s742
      %p746 = pneg %p740
      %p747 = scmp.eq.s32.totalorder %s86, 1
      %p748 = por %p746, %p747
      %p749 = scmp.ne.s32.totalorder %s741, %s744
      %p750 = scmp.eq.s32.totalorder %s86, 0
      %p751 = por %p749, %p750
      %p752 = scmp.ne.s32.totalorder %s741, %s744
      %p753 = scmp.eq.s32.totalorder %s91, 1
      %p754 = por %p752, %p753
      %p755 = scmp.ne.s32.totalorder %s744, %s745
      %p756 = scmp.eq.s32.totalorder %s91, 0
      %p757 = por %p755, %p756
      %p758 = scmp.ne.s32.totalorder %s744, %s745
      %p759 = scmp.eq.s32.totalorder %s92, 1
      %p760 = por %p758, %p759
      %p762 = scmp.ne.s32.totalorder %s745, %s761
      %p763 = scmp.eq.s32.totalorder %s92, 0
      %p764 = por %p762, %p763
      %p765 = scmp.le.s32.totalorder 1, %s86
      %p766 = scmp.lt.s32.totalorder %s86, 3
      %p767 = pnand %p765, %p766
      %p768 = pneg %p767
      // Predicated region
      $region9: #{tpu_custom_call.1} parent=5 // pred_check
        _
      $region10: #{tpu_custom_call.1} parent=5 // pred_check_branch
        %770 = sbr.rel (%p767) target = $region12
      $region11: #{tpu_custom_call.1} parent=5 // pred_region
        %s771 = ssub.s32 %s86, 1
        // Predicated region
        $region13: #{tpu_custom_call.1} parent=11 // pred_check
          %p772 = pneg %p185
        $region14: #{tpu_custom_call.1} parent=11 // pred_check_branch
          %774 = sbr.rel (%p772) target = $region16
        $region15: #{tpu_custom_call.1} parent=11 // pred_region
          %s776 = ssub.s32 4096, 4096
          %777 = vsyncadd [#allocation9], %s776
          %s778 = sshll.u32 [#allocation8], 4
          %s779 = int_to_ptr.vmem [resolvable:$true] %s778
          %784 = dma.hbm_to_vmem [thread:$0]  %s7, 4096, %s779, [#allocation9], 128, 128, 8
        $region16: #{tpu_custom_call.1} parent=11 // pred_fallthru
          _
        // Predicated region
        $region17: #{tpu_custom_call.1} parent=11 // pred_check
          %p785 = pneg %p206
        $region18: #{tpu_custom_call.1} parent=11 // pred_check_branch
          %787 = sbr.rel (%p785) target = $region20
        $region19: #{tpu_custom_call.1} parent=11 // pred_region
          %s789 = ssub.s32 32, 32
          %790 = vsyncadd [#allocation9], %s789
          %s792 = sshll.u32 [#allocation10], 4
          %s793 = int_to_ptr.vmem [resolvable:$true] %s792
          %795 = dma.hbm_to_vmem [thread:$0]  %s9, 32, %s793, [#allocation9]
        $region20: #{tpu_custom_call.1} parent=11 // pred_fallthru
          _
        // Predicated region
        $region21: #{tpu_custom_call.1} parent=11 // pred_check
          %p796 = pneg %p227
        $region22: #{tpu_custom_call.1} parent=11 // pred_check_branch
          %798 = sbr.rel (%p796) target = $region24
        $region23: #{tpu_custom_call.1} parent=11 // pred_region
          %s800 = ssub.s32 4096, 4096
          %801 = vsyncadd [#allocation12], %s800
          %s802 = sshll.u32 [#allocation11], 4
          %s803 = int_to_ptr.vmem [resolvable:$true] %s802
          %808 = dma.hbm_to_vmem [thread:$0]  %s11, 4096, %s803, [#allocation12], 128, 128, 8
        $region24: #{tpu_custom_call.1} parent=11 // pred_fallthru
          _
        // Predicated region
        $region25: #{tpu_custom_call.1} parent=11 // pred_check
          %p809 = pneg %p248
        $region26: #{tpu_custom_call.1} parent=11 // pred_check_branch
          %811 = sbr.rel (%p809) target = $region28
        $region27: #{tpu_custom_call.1} parent=11 // pred_region
          %s813 = ssub.s32 32, 32
          %814 = vsyncadd [#allocation12], %s813
          %s816 = sshll.u32 [#allocation13], 4
          %s817 = int_to_ptr.vmem [resolvable:$true] %s816
          %819 = dma.hbm_to_vmem [thread:$0]  %s13, 32, %s817, [#allocation12]
        $region28: #{tpu_custom_call.1} parent=11 // pred_fallthru
          _
        // Predicated region
        $region29: #{tpu_custom_call.1} parent=11 // pred_check
          %p820 = pneg %p269
        $region30: #{tpu_custom_call.1} parent=11 // pred_check_branch
          %822 = sbr.rel (%p820) target = $region32
        $region31: #{tpu_custom_call.1} parent=11 // pred_region
          %s824 = ssub.s32 32, 32
          %825 = vsyncadd [#allocation15], %s824
          %s827 = sshll.u32 [#allocation14], 4
          %s828 = int_to_ptr.vmem [resolvable:$true] %s827
          %830 = dma.hbm_to_vmem [thread:$0]  %s15, 32, %s828, [#allocation15]
        $region32: #{tpu_custom_call.1} parent=11 // pred_fallthru
          _
        // Predicated region
        $region33: #{tpu_custom_call.1} parent=11 // pred_check
          %p831 = pneg %p290
        $region34: #{tpu_custom_call.1} parent=11 // pred_check_branch
          %833 = sbr.rel (%p831) target = $region36
        $region35: #{tpu_custom_call.1} parent=11 // pred_region
          %s835 = ssub.s32 32, 32
          %836 = vsyncadd [#allocation15], %s835
          %s838 = sshll.u32 [#allocation16], 4
          %s839 = int_to_ptr.vmem [resolvable:$true] %s838
          %841 = dma.hbm_to_vmem [thread:$0]  %s17, 32, %s839, [#allocation15]
        $region36: #{tpu_custom_call.1} parent=11 // pred_fallthru
          _
        // Predicated region
        $region37: #{tpu_custom_call.1} parent=11 // pred_check
          %p842 = pneg %p311
        $region38: #{tpu_custom_call.1} parent=11 // pred_check_branch
          %844 = sbr.rel (%p842) target = $region40
        $region39: #{tpu_custom_call.1} parent=11 // pred_region
          %s846 = ssub.s32 2048, 2048
          %847 = vsyncadd [#allocation18], %s846
          %s848 = sshll.u32 [#allocation17], 4
          %s849 = int_to_ptr.vmem [resolvable:$true] %s848
          %854 = dma.hbm_to_vmem [thread:$0]  %s19, 2048, %s849, [#allocation18], 64, 64, 4
        $region40: #{tpu_custom_call.1} parent=11 // pred_fallthru
          _
        // Predicated region
        $region41: #{tpu_custom_call.1} parent=11 // pred_check
          %p855 = pneg %p332
        $region42: #{tpu_custom_call.1} parent=11 // pred_check_branch
          %857 = sbr.rel (%p855) target = $region44
        $region43: #{tpu_custom_call.1} parent=11 // pred_region
          %s859 = ssub.s32 16, 16
          %860 = vsyncadd [#allocation18], %s859
          %s862 = sshll.u32 [#allocation19], 4
          %s863 = int_to_ptr.vmem [resolvable:$true] %s862
          %865 = dma.hbm_to_vmem [thread:$0]  %s21, 16, %s863, [#allocation18]
        $region44: #{tpu_custom_call.1} parent=11 // pred_fallthru
          _
        // Predicated region
        $region45: #{tpu_custom_call.1} parent=11 // pred_check
          %p866 = pneg %p353
        $region46: #{tpu_custom_call.1} parent=11 // pred_check_branch
          %868 = sbr.rel (%p866) target = $region48
        $region47: #{tpu_custom_call.1} parent=11 // pred_region
          %s870 = ssub.s32 1024, 1024
          %871 = vsyncadd [#allocation21], %s870
          %s872 = sshll.u32 [#allocation20], 4
          %s873 = int_to_ptr.vmem [resolvable:$true] %s872
          %878 = dma.hbm_to_vmem [thread:$0]  %s23, 1024, %s873, [#allocation21], 64, 64, 4
        $region48: #{tpu_custom_call.1} parent=11 // pred_fallthru
          _
        // Predicated region
        $region49: #{tpu_custom_call.1} parent=11 // pred_check
          %p879 = pneg %p374
        $region50: #{tpu_custom_call.1} parent=11 // pred_check_branch
          %881 = sbr.rel (%p879) target = $region52
        $region51: #{tpu_custom_call.1} parent=11 // pred_region
          %s883 = ssub.s32 16, 16
          %884 = vsyncadd [#allocation21], %s883
          %s886 = sshll.u32 [#allocation22], 4
          %s887 = int_to_ptr.vmem [resolvable:$true] %s886
          %889 = dma.hbm_to_vmem [thread:$0]  %s25, 16, %s887, [#allocation21]
        $region52: #{tpu_custom_call.1} parent=11 // pred_fallthru
          _
        // Predicated region
        $region53: #{tpu_custom_call.1} parent=11 // pred_check
          %p890 = pneg %p395
        $region54: #{tpu_custom_call.1} parent=11 // pred_check_branch
          %892 = sbr.rel (%p890) target = $region56
        $region55: #{tpu_custom_call.1} parent=11 // pred_region
          %s894 = ssub.s32 16, 16
          %895 = vsyncadd [#allocation24], %s894
          %s897 = sshll.u32 [#allocation23], 4
          %s898 = int_to_ptr.vmem [resolvable:$true] %s897
          %900 = dma.hbm_to_vmem [thread:$0]  %s27, 16, %s898, [#allocation24]
        $region56: #{tpu_custom_call.1} parent=11 // pred_fallthru
          _
        // Predicated region
        $region57: #{tpu_custom_call.1} parent=11 // pred_check
          %p901 = pneg %p416
        $region58: #{tpu_custom_call.1} parent=11 // pred_check_branch
          %903 = sbr.rel (%p901) target = $region60
        $region59: #{tpu_custom_call.1} parent=11 // pred_region
          %s905 = ssub.s32 16, 16
          %906 = vsyncadd [#allocation24], %s905
          %s908 = sshll.u32 [#allocation25], 4
          %s909 = int_to_ptr.vmem [resolvable:$true] %s908
          %911 = dma.hbm_to_vmem [thread:$0]  %s29, 16, %s909, [#allocation24]
        $region60: #{tpu_custom_call.1} parent=11 // pred_fallthru
          _
        // Predicated region
        $region61: #{tpu_custom_call.1} parent=11 // pred_check
          %p912 = pneg %p437
        $region62: #{tpu_custom_call.1} parent=11 // pred_check_branch
          %914 = sbr.rel (%p912) target = $region64
        $region63: #{tpu_custom_call.1} parent=11 // pred_region
          %s916 = ssub.s32 1024, 1024
          %917 = vsyncadd [#allocation27], %s916
          %s918 = sshll.u32 [#allocation26], 4
          %s919 = int_to_ptr.vmem [resolvable:$true] %s918
          %924 = dma.hbm_to_vmem [thread:$0]  %s31, 1024, %s919, [#allocation27], 64, 64, 4
        $region64: #{tpu_custom_call.1} parent=11 // pred_fallthru
          _
        // Predicated region
        $region65: #{tpu_custom_call.1} parent=11 // pred_check
          %p925 = pneg %p458
        $region66: #{tpu_custom_call.1} parent=11 // pred_check_branch
          %927 = sbr.rel (%p925) target = $region68
        $region67: #{tpu_custom_call.1} parent=11 // pred_region
          %s929 = ssub.s32 16, 16
          %930 = vsyncadd [#allocation27], %s929
          %s932 = sshll.u32 [#allocation28], 4
          %s933 = int_to_ptr.vmem [resolvable:$true] %s932
          %935 = dma.hbm_to_vmem [thread:$0]  %s33, 16, %s933, [#allocation27]
        $region68: #{tpu_custom_call.1} parent=11 // pred_fallthru
          _
        // Predicated region
        $region69: #{tpu_custom_call.1} parent=11 // pred_check
          %p936 = pneg %p479
        $region70: #{tpu_custom_call.1} parent=11 // pred_check_branch
          %938 = sbr.rel (%p936) target = $region72
        $region71: #{tpu_custom_call.1} parent=11 // pred_region
          _
        $region72: #{tpu_custom_call.1} parent=11 // pred_fallthru
          _
        // Predicated region
        $region73: #{tpu_custom_call.1} parent=11 // pred_check
          %p939 = pneg %p500
        $region74: #{tpu_custom_call.1} parent=11 // pred_check_branch
          %941 = sbr.rel (%p939) target = $region76
        $region75: #{tpu_custom_call.1} parent=11 // pred_region
          %s943 = ssub.s32 16, 16
          %944 = vsyncadd [#allocation30], %s943
          %s946 = sshll.u32 [#allocation29], 4
          %s947 = int_to_ptr.vmem [resolvable:$true] %s946
          %949 = dma.hbm_to_vmem [thread:$0]  %s37, 16, %s947, [#allocation30]
        $region76: #{tpu_custom_call.1} parent=11 // pred_fallthru
          _
        // Predicated region
        $region77: #{tpu_custom_call.1} parent=11 // pred_check
          %p950 = pneg %p521
        $region78: #{tpu_custom_call.1} parent=11 // pred_check_branch
          %952 = sbr.rel (%p950) target = $region80
        $region79: #{tpu_custom_call.1} parent=11 // pred_region
          _
        $region80: #{tpu_custom_call.1} parent=11 // pred_fallthru
          _
        // Predicated region
        $region81: #{tpu_custom_call.1} parent=11 // pred_check
          %p953 = pneg %p542
        $region82: #{tpu_custom_call.1} parent=11 // pred_check_branch
          %955 = sbr.rel (%p953) target = $region84
        $region83: #{tpu_custom_call.1} parent=11 // pred_region
          _
        $region84: #{tpu_custom_call.1} parent=11 // pred_fallthru
          _
        // Predicated region
        $region85: #{tpu_custom_call.1} parent=11 // pred_check
          %p956 = pneg %p563
        $region86: #{tpu_custom_call.1} parent=11 // pred_check_branch
          %958 = sbr.rel (%p956) target = $region88
        $region87: #{tpu_custom_call.1} parent=11 // pred_region
          %s960 = ssub.s32 2048, 2048
          %961 = vsyncadd [#allocation30], %s960
          %s962 = sshll.u32 [#allocation31], 4
          %s963 = int_to_ptr.vmem [resolvable:$true] %s962
          %968 = dma.hbm_to_vmem [thread:$0]  %s43, 2048, %s963, [#allocation30], 128, 128, 8
        $region88: #{tpu_custom_call.1} parent=11 // pred_fallthru
          _
        // Predicated region
        $region89: #{tpu_custom_call.1} parent=11 // pred_check
          %p969 = pneg %p584
        $region90: #{tpu_custom_call.1} parent=11 // pred_check_branch
          %971 = sbr.rel (%p969) target = $region92
        $region91: #{tpu_custom_call.1} parent=11 // pred_region
          _
        $region92: #{tpu_custom_call.1} parent=11 // pred_fallthru
          _
        // Predicated region
        $region93: #{tpu_custom_call.1} parent=11 // pred_check
          %p972 = pneg %p605
        $region94: #{tpu_custom_call.1} parent=11 // pred_check_branch
          %974 = sbr.rel (%p972) target = $region96
        $region95: #{tpu_custom_call.1} parent=11 // pred_region
          %s976 = ssub.s32 4096, 4096
          %977 = vsyncadd [#allocation33], %s976
          %s978 = sshll.u32 [#allocation32], 4
          %s979 = int_to_ptr.vmem [resolvable:$true] %s978
          %984 = dma.hbm_to_vmem [thread:$0]  %s47, 4096, %s979, [#allocation33], 128, 128, 8
        $region96: #{tpu_custom_call.1} parent=11 // pred_fallthru
          _
        // Predicated region
        $region97: #{tpu_custom_call.1} parent=11 // pred_check
          %p985 = pneg %p626
        $region98: #{tpu_custom_call.1} parent=11 // pred_check_branch
          %987 = sbr.rel (%p985) target = $region100
        $region99: #{tpu_custom_call.1} parent=11 // pred_region
          _
        $region100: #{tpu_custom_call.1} parent=11 // pred_fallthru
          _
        // Predicated region
        $region101: #{tpu_custom_call.1} parent=11 // pred_check
          %p988 = pneg %p647
        $region102: #{tpu_custom_call.1} parent=11 // pred_check_branch
          %990 = sbr.rel (%p988) target = $region104
        $region103: #{tpu_custom_call.1} parent=11 // pred_region
          _
        $region104: #{tpu_custom_call.1} parent=11 // pred_fallthru
          _
        // Predicated region
        $region105: #{tpu_custom_call.1} parent=11 // pred_check
          %p991 = pneg %p668
        $region106: #{tpu_custom_call.1} parent=11 // pred_check_branch
          %993 = sbr.rel (%p991) target = $region108
        $region107: #{tpu_custom_call.1} parent=11 // pred_region
          _
        $region108: #{tpu_custom_call.1} parent=11 // pred_fallthru
          _
        // Predicated region
        $region109: #{tpu_custom_call.1} parent=11 // pred_check
          %p994 = pneg %p689
        $region110: #{tpu_custom_call.1} parent=11 // pred_check_branch
          %996 = sbr.rel (%p994) target = $region112
        $region111: #{tpu_custom_call.1} parent=11 // pred_region
          %s998 = ssub.s32 1024, 1024
          %999 = vsyncadd [#allocation33], %s998
          %s1000 = sshll.u32 [#allocation34], 4
          %s1001 = int_to_ptr.vmem [resolvable:$true] %s1000
          %1006 = dma.hbm_to_vmem [thread:$0]  %s55, 1024, %s1001, [#allocation33], 64, 64, 4
        $region112: #{tpu_custom_call.1} parent=11 // pred_fallthru
          _
        // Predicated region
        $region113: #{tpu_custom_call.1} parent=11 // pred_check
          %p1007 = pneg %p710
        $region114: #{tpu_custom_call.1} parent=11 // pred_check_branch
          %1009 = sbr.rel (%p1007) target = $region116
        $region115: #{tpu_custom_call.1} parent=11 // pred_region
          %s1011 = ssub.s32 2048, 2048
          %1012 = vsyncadd [#allocation36], %s1011
          %s1013 = sshll.u32 [#allocation35], 4
          %s1014 = int_to_ptr.vmem [resolvable:$true] %s1013
          %1019 = dma.hbm_to_vmem [thread:$0]  %s57, 2048, %s1014, [#allocation36], 64, 64, 4
        $region116: #{tpu_custom_call.1} parent=11 // pred_fallthru
          _
        // Predicated region
        $region117: #{tpu_custom_call.1} parent=11 // pred_check
          %p1020 = pneg %p731
        $region118: #{tpu_custom_call.1} parent=11 // pred_check_branch
          %1022 = sbr.rel (%p1020) target = $region120
        $region119: #{tpu_custom_call.1} parent=11 // pred_region
          _
        $region120: #{tpu_custom_call.1} parent=11 // pred_fallthru
          _
      $region12: #{tpu_custom_call.1} parent=5 // pred_fallthru
        _
      %p1023 = scmp.lt.s32.totalorder %s86, 2
      // Predicated region
      $region121: #{tpu_custom_call.1} parent=5 // pred_check
        %p1024 = pneg %p1023
      $region122: #{tpu_custom_call.1} parent=5 // pred_check_branch
        %1026 = sbr.rel (%p1024) target = $region124
      $region123: #{tpu_custom_call.1} parent=5 // pred_region
        // Predicated region
        $region125: #{tpu_custom_call.1} parent=123 // pred_check
          %p1027 = pneg %p106
        $region126: #{tpu_custom_call.1} parent=123 // pred_check_branch
          %1029 = sbr.rel (%p1027) target = $region128
        $region127: #{tpu_custom_call.1} parent=123 // pred_region
          %s1030 = sand.u32 %s96, 1
          %s1031 = scalar_lea.sflag [#allocation3], %s1030
          %s1032 = sand.u32 %s96, 1
          %s1033 = smul.addr %s1032, 16
          %s1034 = scalar_lea.vmem [#allocation2], %s1033
          %s1036 = ssub.s32 256, 256
          %1037 = vsyncadd %s1031, %s1036
          %s1038 = smul.addr %s86, 2
          %s1039 = smul.addr %s1038, 128
          %s1040 = scalar_lea.hbm %s1, %s1039
          %s1042 = sshll.u32 %s1034, 4
          %s1043 = int_to_ptr.vmem [resolvable:$true] %s1042
          %1045 = dma.hbm_to_vmem [thread:$0]  %s1040, 256, %s1043, %s1031
        $region128: #{tpu_custom_call.1} parent=123 // pred_fallthru
          _
        // Predicated region
        $region129: #{tpu_custom_call.1} parent=123 // pred_check
          %p1046 = pneg %p132
        $region130: #{tpu_custom_call.1} parent=123 // pred_check_branch
          %1048 = sbr.rel (%p1046) target = $region132
        $region131: #{tpu_custom_call.1} parent=123 // pred_region
          %s1049 = sand.u32 %s86, 1
          %s1050 = scalar_lea.sflag [#allocation6], %s1049
          %s1051 = sand.u32 %s122, 1
          %s1052 = smul.addr %s1051, 8
          %s1053 = scalar_lea.vmem [#allocation5], %s1052
          %s1055 = ssub.s32 128, 128
          %1056 = vsyncadd %s1050, %s1055
          %s1057 = smul.addr %s86, 128
          %s1058 = scalar_lea.hbm %s3, %s1057
          %s1060 = sshll.u32 %s1053, 4
          %s1061 = int_to_ptr.vmem [resolvable:$true] %s1060
          %1063 = dma.hbm_to_vmem [thread:$0]  %s1058, 128, %s1061, %s1050
        $region132: #{tpu_custom_call.1} parent=123 // pred_fallthru
          _
        // Predicated region
        $region133: #{tpu_custom_call.1} parent=123 // pred_check
          %p1064 = pneg %p158
        $region134: #{tpu_custom_call.1} parent=123 // pred_check_branch
          %1066 = sbr.rel (%p1064) target = $region136
        $region135: #{tpu_custom_call.1} parent=123 // pred_region
          %s1067 = sand.u32 %s86, 1
          %s1068 = scalar_lea.sflag [#allocation6], %s1067
          %s1069 = sand.u32 %s148, 1
          %s1070 = smul.addr %s1069, 8
          %s1071 = scalar_lea.vmem [#allocation7], %s1070
          %s1073 = ssub.s32 128, 128
          %1074 = vsyncadd %s1068, %s1073
          %s1075 = smul.addr %s86, 128
          %s1076 = scalar_lea.hbm %s5, %s1075
          %s1078 = sshll.u32 %s1071, 4
          %s1079 = int_to_ptr.vmem [resolvable:$true] %s1078
          %1081 = dma.hbm_to_vmem [thread:$0]  %s1076, 128, %s1079, %s1068
        $region136: #{tpu_custom_call.1} parent=123 // pred_fallthru
          _
      $region124: #{tpu_custom_call.1} parent=5 // pred_fallthru
        _
      %p1082 = scmp.le.s32.totalorder 1, %s86
      %p1083 = scmp.lt.s32.totalorder %s86, 3
      %p1084 = pnand %p1082, %p1083
      %p1085 = pneg %p1084
      // Predicated region
      $region137: #{tpu_custom_call.1} parent=5 // pred_check
        _
      $region138: #{tpu_custom_call.1} parent=5 // pred_check_branch
        %1087 = sbr.rel (%p1084) target = $region140
      $region139: #{tpu_custom_call.1} parent=5 // pred_region
        %s1088 = ssub.s32 %s86, 1
        %s1089 = sand.u32 %s99, 1
        %s1090 = scalar_lea.sflag [#allocation3], %s1089
        %s1091 = sand.u32 %s99, 1
        %s1092 = smul.addr %s1091, 16
        %s1093 = scalar_lea.vmem [#allocation2], %s1092
        // Predicated region
        $region141: #{tpu_custom_call.1} parent=139 // pred_check
          %p1094 = pneg %p112
        $region142: #{tpu_custom_call.1} parent=139 // pred_check_branch
          %1096 = sbr.rel (%p1094) target = $region144
        $region143: #{tpu_custom_call.1} parent=139 // pred_region
          %1097 = dma.done %s1090, 256
        $region144: #{tpu_custom_call.1} parent=139 // pred_fallthru
          _
        %s1098 = sand.u32 %s91, 1
        %s1099 = scalar_lea.sflag [#allocation6], %s1098
        %s1100 = sand.u32 %s125, 1
        %s1101 = smul.addr %s1100, 8
        %s1102 = scalar_lea.vmem [#allocation5], %s1101
        // Predicated region
        $region145: #{tpu_custom_call.1} parent=139 // pred_check
          %p1103 = pneg %p138
        $region146: #{tpu_custom_call.1} parent=139 // pred_check_branch
          %1105 = sbr.rel (%p1103) target = $region148
        $region147: #{tpu_custom_call.1} parent=139 // pred_region
          %1106 = dma.done %s1099, 128
        $region148: #{tpu_custom_call.1} parent=139 // pred_fallthru
          _
        %s1107 = sand.u32 %s91, 1
        %s1108 = scalar_lea.sflag [#allocation6], %s1107
        %s1109 = sand.u32 %s151, 1
        %s1110 = smul.addr %s1109, 8
        %s1111 = scalar_lea.vmem [#allocation7], %s1110
        // Predicated region
        $region149: #{tpu_custom_call.1} parent=139 // pred_check
          %p1112 = pneg %p164
        $region150: #{tpu_custom_call.1} parent=139 // pred_check_branch
          %1114 = sbr.rel (%p1112) target = $region152
        $region151: #{tpu_custom_call.1} parent=139 // pred_region
          %1115 = dma.done %s1108, 128
        $region152: #{tpu_custom_call.1} parent=139 // pred_fallthru
          _
        // Predicated region
        $region153: #{tpu_custom_call.1} parent=139 // pred_check
          %p1116 = pneg %p185
        $region154: #{tpu_custom_call.1} parent=139 // pred_check_branch
          %1118 = sbr.rel (%p1116) target = $region156
        $region155: #{tpu_custom_call.1} parent=139 // pred_region
          %1119 = dma.done [#allocation9], 4096
        $region156: #{tpu_custom_call.1} parent=139 // pred_fallthru
          _
        // Predicated region
        $region157: #{tpu_custom_call.1} parent=139 // pred_check
          %p1120 = pneg %p206
        $region158: #{tpu_custom_call.1} parent=139 // pred_check_branch
          %1122 = sbr.rel (%p1120) target = $region160
        $region159: #{tpu_custom_call.1} parent=139 // pred_region
          %1123 = dma.done [#allocation9], 32
        $region160: #{tpu_custom_call.1} parent=139 // pred_fallthru
          _
        // Predicated region
        $region161: #{tpu_custom_call.1} parent=139 // pred_check
          %p1124 = pneg %p227
        $region162: #{tpu_custom_call.1} parent=139 // pred_check_branch
          %1126 = sbr.rel (%p1124) target = $region164
        $region163: #{tpu_custom_call.1} parent=139 // pred_region
          %1127 = dma.done [#allocation12], 4096
        $region164: #{tpu_custom_call.1} parent=139 // pred_fallthru
          _
        // Predicated region
        $region165: #{tpu_custom_call.1} parent=139 // pred_check
          %p1128 = pneg %p248
        $region166: #{tpu_custom_call.1} parent=139 // pred_check_branch
          %1130 = sbr.rel (%p1128) target = $region168
        $region167: #{tpu_custom_call.1} parent=139 // pred_region
          %1131 = dma.done [#allocation12], 32
        $region168: #{tpu_custom_call.1} parent=139 // pred_fallthru
          _
        // Predicated region
        $region169: #{tpu_custom_call.1} parent=139 // pred_check
          %p1132 = pneg %p269
        $region170: #{tpu_custom_call.1} parent=139 // pred_check_branch
          %1134 = sbr.rel (%p1132) target = $region172
        $region171: #{tpu_custom_call.1} parent=139 // pred_region
          %1135 = dma.done [#allocation15], 32
        $region172: #{tpu_custom_call.1} parent=139 // pred_fallthru
          _
        // Predicated region
        $region173: #{tpu_custom_call.1} parent=139 // pred_check
          %p1136 = pneg %p290
        $region174: #{tpu_custom_call.1} parent=139 // pred_check_branch
          %1138 = sbr.rel (%p1136) target = $region176
        $region175: #{tpu_custom_call.1} parent=139 // pred_region
          %1139 = dma.done [#allocation15], 32
        $region176: #{tpu_custom_call.1} parent=139 // pred_fallthru
          _
        // Predicated region
        $region177: #{tpu_custom_call.1} parent=139 // pred_check
          %p1140 = pneg %p311
        $region178: #{tpu_custom_call.1} parent=139 // pred_check_branch
          %1142 = sbr.rel (%p1140) target = $region180
        $region179: #{tpu_custom_call.1} parent=139 // pred_region
          %1143 = dma.done [#allocation18], 2048
        $region180: #{tpu_custom_call.1} parent=139 // pred_fallthru
          _
        // Predicated region
        $region181: #{tpu_custom_call.1} parent=139 // pred_check
          %p1144 = pneg %p332
        $region182: #{tpu_custom_call.1} parent=139 // pred_check_branch
          %1146 = sbr.rel (%p1144) target = $region184
        $region183: #{tpu_custom_call.1} parent=139 // pred_region
          %1147 = dma.done [#allocation18], 16
        $region184: #{tpu_custom_call.1} parent=139 // pred_fallthru
          _
        // Predicated region
        $region185: #{tpu_custom_call.1} parent=139 // pred_check
          %p1148 = pneg %p353
        $region186: #{tpu_custom_call.1} parent=139 // pred_check_branch
          %1150 = sbr.rel (%p1148) target = $region188
        $region187: #{tpu_custom_call.1} parent=139 // pred_region
          %1151 = dma.done [#allocation21], 1024
        $region188: #{tpu_custom_call.1} parent=139 // pred_fallthru
          _
        // Predicated region
        $region189: #{tpu_custom_call.1} parent=139 // pred_check
          %p1152 = pneg %p374
        $region190: #{tpu_custom_call.1} parent=139 // pred_check_branch
          %1154 = sbr.rel (%p1152) target = $region192
        $region191: #{tpu_custom_call.1} parent=139 // pred_region
          %1155 = dma.done [#allocation21], 16
        $region192: #{tpu_custom_call.1} parent=139 // pred_fallthru
          _
        // Predicated region
        $region193: #{tpu_custom_call.1} parent=139 // pred_check
          %p1156 = pneg %p395
        $region194: #{tpu_custom_call.1} parent=139 // pred_check_branch
          %1158 = sbr.rel (%p1156) target = $region196
        $region195: #{tpu_custom_call.1} parent=139 // pred_region
          %1159 = dma.done [#allocation24], 16
        $region196: #{tpu_custom_call.1} parent=139 // pred_fallthru
          _
        // Predicated region
        $region197: #{tpu_custom_call.1} parent=139 // pred_check
          %p1160 = pneg %p416
        $region198: #{tpu_custom_call.1} parent=139 // pred_check_branch
          %1162 = sbr.rel (%p1160) target = $region200
        $region199: #{tpu_custom_call.1} parent=139 // pred_region
          %1163 = dma.done [#allocation24], 16
        $region200: #{tpu_custom_call.1} parent=139 // pred_fallthru
          _
        // Predicated region
        $region201: #{tpu_custom_call.1} parent=139 // pred_check
          %p1164 = pneg %p437
        $region202: #{tpu_custom_call.1} parent=139 // pred_check_branch
          %1166 = sbr.rel (%p1164) target = $region204
        $region203: #{tpu_custom_call.1} parent=139 // pred_region
          %1167 = dma.done [#allocation27], 1024
        $region204: #{tpu_custom_call.1} parent=139 // pred_fallthru
          _
        // Predicated region
        $region205: #{tpu_custom_call.1} parent=139 // pred_check
          %p1168 = pneg %p458
        $region206: #{tpu_custom_call.1} parent=139 // pred_check_branch
          %1170 = sbr.rel (%p1168) target = $region208
        $region207: #{tpu_custom_call.1} parent=139 // pred_region
          %1171 = dma.done [#allocation27], 16
        $region208: #{tpu_custom_call.1} parent=139 // pred_fallthru
          _
        // Predicated region
        $region209: #{tpu_custom_call.1} parent=139 // pred_check
          %p1172 = pneg %p500
        $region210: #{tpu_custom_call.1} parent=139 // pred_check_branch
          %1174 = sbr.rel (%p1172) target = $region212
        $region211: #{tpu_custom_call.1} parent=139 // pred_region
          %1175 = dma.done [#allocation30], 16
        $region212: #{tpu_custom_call.1} parent=139 // pred_fallthru
          _
        // Predicated region
        $region213: #{tpu_custom_call.1} parent=139 // pred_check
          %p1176 = pneg %p563
        $region214: #{tpu_custom_call.1} parent=139 // pred_check_branch
          %1178 = sbr.rel (%p1176) target = $region216
        $region215: #{tpu_custom_call.1} parent=139 // pred_region
          %1179 = dma.done [#allocation30], 2048
        $region216: #{tpu_custom_call.1} parent=139 // pred_fallthru
          _
        // Predicated region
        $region217: #{tpu_custom_call.1} parent=139 // pred_check
          %p1180 = pneg %p605
        $region218: #{tpu_custom_call.1} parent=139 // pred_check_branch
          %1182 = sbr.rel (%p1180) target = $region220
        $region219: #{tpu_custom_call.1} parent=139 // pred_region
          %1183 = dma.done [#allocation33], 4096
        $region220: #{tpu_custom_call.1} parent=139 // pred_fallthru
          _
        // Predicated region
        $region221: #{tpu_custom_call.1} parent=139 // pred_check
          %p1184 = pneg %p689
        $region222: #{tpu_custom_call.1} parent=139 // pred_check_branch
          %1186 = sbr.rel (%p1184) target = $region224
        $region223: #{tpu_custom_call.1} parent=139 // pred_region
          %1187 = dma.done [#allocation33], 1024
        $region224: #{tpu_custom_call.1} parent=139 // pred_fallthru
          _
        // Predicated region
        $region225: #{tpu_custom_call.1} parent=139 // pred_check
          %p1188 = pneg %p710
        $region226: #{tpu_custom_call.1} parent=139 // pred_check_branch
          %1190 = sbr.rel (%p1188) target = $region228
        $region227: #{tpu_custom_call.1} parent=139 // pred_region
          %1191 = dma.done [#allocation36], 2048
        $region228: #{tpu_custom_call.1} parent=139 // pred_fallthru
          _
        %s1192 = sand.u32 %s99, 1
        %s1193 = scalar_lea.sflag [#allocation3], %s1192
        %s1194 = sand.u32 %s99, 1
        %s1195 = smul.addr %s1194, 16
        %s1196 = scalar_lea.vmem [#allocation2], %s1195
        %p1197 = pneg %p112
        %p1198 = pneg %p109
        %s1199 = sand.u32 %s91, 1
        %s1200 = scalar_lea.sflag [#allocation6], %s1199
        %s1201 = sand.u32 %s125, 1
        %s1202 = smul.addr %s1201, 8
        %s1203 = scalar_lea.vmem [#allocation5], %s1202
        %p1204 = pneg %p138
        %p1205 = pneg %p135
        %s1206 = sand.u32 %s91, 1
        %s1207 = scalar_lea.sflag [#allocation6], %s1206
        %s1208 = sand.u32 %s151, 1
        %s1209 = smul.addr %s1208, 8
        %s1210 = scalar_lea.vmem [#allocation7], %s1209
        %p1211 = pneg %p164
        %p1212 = pneg %p161
        %p1213 = pneg %p185
        %p1214 = pneg %p182
        %p1215 = pneg %p206
        %p1216 = pneg %p203
        %p1217 = pneg %p227
        %p1218 = pneg %p224
        %p1219 = pneg %p248
        %p1220 = pneg %p245
        %p1221 = pneg %p269
        %p1222 = pneg %p266
        %p1223 = pneg %p290
        %p1224 = pneg %p287
        %p1225 = pneg %p311
        %p1226 = pneg %p308
        %p1227 = pneg %p332
        %p1228 = pneg %p329
        %p1229 = pneg %p353
        %p1230 = pneg %p350
        %p1231 = pneg %p374
        %p1232 = pneg %p371
        %p1233 = pneg %p395
        %p1234 = pneg %p392
        %p1235 = pneg %p416
        %p1236 = pneg %p413
        %p1237 = pneg %p437
        %p1238 = pneg %p434
        %p1239 = pneg %p458
        %p1240 = pneg %p455
        %p1241 = pneg %p479
        %p1242 = pneg %p476
        %p1243 = pneg %p500
        %p1244 = pneg %p497
        %p1245 = pneg %p521
        %p1246 = pneg %p518
        %p1247 = pneg %p542
        %p1248 = pneg %p539
        %p1249 = pneg %p563
        %p1250 = pneg %p560
        %p1251 = pneg %p584
        %p1252 = pneg %p581
        %p1253 = pneg %p605
        %p1254 = pneg %p602
        %p1255 = pneg %p626
        %p1256 = pneg %p623
        %p1257 = pneg %p647
        %p1258 = pneg %p644
        %p1259 = pneg %p668
        %p1260 = pneg %p665
        %p1261 = pneg %p689
        %p1262 = pneg %p686
        %p1263 = pneg %p710
        %p1264 = pneg %p707
        %p1265 = pneg %p731
        %p1266 = pneg %p728
        %p1267 = pneg %p757
        %p1268 = pneg %p754
        %s1269 = sand.u32 %s744, 1
        %s1270 = scalar_lea.sflag [#allocation4], %s1269
        %s1271 = sand.u32 %s744, 1
        %s1272 = smul.addr %s1271, 8
        %s1273 = scalar_lea.vmem [#allocation37], %s1272
        %v1275 = vld [vmem:[%s1093] sm:$0xff]
        %v1276 = vld [vmem:[%s1093 + $0x8] sm:$0xff]
        %v1277 = vpack.c.bf16 %v1275, %v1275
        %v1278 = vpack.c.bf16 %v1276, %v1276
        %v1279 = vld [vmem:[#allocation8] sm:$0xff]
        %v1280 = vld [vmem:[#allocation8 + $0x8] sm:$0xff]
        %v1281 = vld [vmem:[#allocation8 + $0x10] sm:$0xff]
        %v1282 = vld [vmem:[#allocation8 + $0x18] sm:$0xff]
        %v1283 = vld [vmem:[#allocation8 + $0x20] sm:$0xff]
        %v1284 = vld [vmem:[#allocation8 + $0x28] sm:$0xff]
        %v1285 = vld [vmem:[#allocation8 + $0x30] sm:$0xff]
        %v1286 = vld [vmem:[#allocation8 + $0x38] sm:$0xff]
        %v1287 = vld [vmem:[#allocation8 + $0x40] sm:$0xff]
        %v1288 = vld [vmem:[#allocation8 + $0x48] sm:$0xff]
        %v1289 = vld [vmem:[#allocation8 + $0x50] sm:$0xff]
        %v1290 = vld [vmem:[#allocation8 + $0x58] sm:$0xff]
        %v1291 = vld [vmem:[#allocation8 + $0x60] sm:$0xff]
        %v1292 = vld [vmem:[#allocation8 + $0x68] sm:$0xff]
        %v1293 = vld [vmem:[#allocation8 + $0x70] sm:$0xff]
        %v1294 = vld [vmem:[#allocation8 + $0x78] sm:$0xff]
        %v1295 = vld [vmem:[#allocation8 + $0x80] sm:$0xff]
        %v1296 = vld [vmem:[#allocation8 + $0x88] sm:$0xff]
        %v1297 = vld [vmem:[#allocation8 + $0x90] sm:$0xff]
        %v1298 = vld [vmem:[#allocation8 + $0x98] sm:$0xff]
        %v1299 = vld [vmem:[#allocation8 + $0xa0] sm:$0xff]
        %v1300 = vld [vmem:[#allocation8 + $0xa8] sm:$0xff]
        %v1301 = vld [vmem:[#allocation8 + $0xb0] sm:$0xff]
        %v1302 = vld [vmem:[#allocation8 + $0xb8] sm:$0xff]
        %v1303 = vld [vmem:[#allocation8 + $0xc0] sm:$0xff]
        %v1304 = vld [vmem:[#allocation8 + $0xc8] sm:$0xff]
        %v1305 = vld [vmem:[#allocation8 + $0xd0] sm:$0xff]
        %v1306 = vld [vmem:[#allocation8 + $0xd8] sm:$0xff]
        %v1307 = vld [vmem:[#allocation8 + $0xe0] sm:$0xff]
        %v1308 = vld [vmem:[#allocation8 + $0xe8] sm:$0xff]
        %v1309 = vld [vmem:[#allocation8 + $0xf0] sm:$0xff]
        %v1310 = vld [vmem:[#allocation8 + $0xf8] sm:$0xff]
        %v1311 = vld [vmem:[#allocation10] sm:$0x3]
        %v1313 = vlaneseq
        %v1314 = vshrl.u32 %v1313, 7
        %v1315 = vsub.s32 0, %v1314
        %v1316 = vrot.slane %v1311, %v1315
        %v1317 = vlaneseq
        %v1318 = vshrl.u32 %v1317, 7
        %v1319 = vsub.s32 1, %v1318
        %v1320 = vrot.slane %v1311, %v1319
        %v1355 = vunpack.c.l.b16 %v1279
        %v1356 = vunpack.c.h.b16 %v1279
        %v1357 = vunpack.c.l.b16 %v1280
        %v1358 = vunpack.c.h.b16 %v1280
        %v1359 = vunpack.c.l.b16 %v1281
        %v1360 = vunpack.c.h.b16 %v1281
        %v1361 = vunpack.c.l.b16 %v1282
        %v1362 = vunpack.c.h.b16 %v1282
        %v1363 = vunpack.c.l.b16 %v1283
        %v1364 = vunpack.c.h.b16 %v1283
        %v1365 = vunpack.c.l.b16 %v1284
        %v1366 = vunpack.c.h.b16 %v1284
        %v1367 = vunpack.c.l.b16 %v1285
        %v1368 = vunpack.c.h.b16 %v1285
        %v1369 = vunpack.c.l.b16 %v1286
        %v1370 = vunpack.c.h.b16 %v1286
        %v1371 = vunpack.c.l.b16 %v1287
        %v1372 = vunpack.c.h.b16 %v1287
        %v1373 = vunpack.c.l.b16 %v1288
        %v1374 = vunpack.c.h.b16 %v1288
        %v1375 = vunpack.c.l.b16 %v1289
        %v1376 = vunpack.c.h.b16 %v1289
        %v1377 = vunpack.c.l.b16 %v1290
        %v1378 = vunpack.c.h.b16 %v1290
        %v1379 = vunpack.c.l.b16 %v1291
        %v1380 = vunpack.c.h.b16 %v1291
        %v1381 = vunpack.c.l.b16 %v1292
        %v1382 = vunpack.c.h.b16 %v1292
        %v1383 = vunpack.c.l.b16 %v1293
        %v1384 = vunpack.c.h.b16 %v1293
        %v1385 = vunpack.c.l.b16 %v1294
        %v1386 = vunpack.c.h.b16 %v1294
        %v1387 = vunpack.c.l.b16 %v1295
        %v1388 = vunpack.c.h.b16 %v1295
        %v1389 = vunpack.c.l.b16 %v1296
        %v1390 = vunpack.c.h.b16 %v1296
        %v1391 = vunpack.c.l.b16 %v1297
        %v1392 = vunpack.c.h.b16 %v1297
        %v1393 = vunpack.c.l.b16 %v1298
        %v1394 = vunpack.c.h.b16 %v1298
        %v1395 = vunpack.c.l.b16 %v1299
        %v1396 = vunpack.c.h.b16 %v1299
        %v1397 = vunpack.c.l.b16 %v1300
        %v1398 = vunpack.c.h.b16 %v1300
        %v1399 = vunpack.c.l.b16 %v1301
        %v1400 = vunpack.c.h.b16 %v1301
        %v1401 = vunpack.c.l.b16 %v1302
        %v1402 = vunpack.c.h.b16 %v1302
        %v1403 = vunpack.c.l.b16 %v1303
        %v1404 = vunpack.c.h.b16 %v1303
        %v1405 = vunpack.c.l.b16 %v1304
        %v1406 = vunpack.c.h.b16 %v1304
        %v1407 = vunpack.c.l.b16 %v1305
        %v1408 = vunpack.c.h.b16 %v1305
        %v1409 = vunpack.c.l.b16 %v1306
        %v1410 = vunpack.c.h.b16 %v1306
        %v1411 = vunpack.c.l.b16 %v1307
        %v1412 = vunpack.c.h.b16 %v1307
        %v1413 = vunpack.c.l.b16 %v1308
        %v1414 = vunpack.c.h.b16 %v1308
        %v1415 = vunpack.c.l.b16 %v1309
        %v1416 = vunpack.c.h.b16 %v1309
        %v1417 = vunpack.c.l.b16 %v1310
        %v1418 = vunpack.c.h.b16 %v1310
        %v1419 = vpack.c.b16 %v1357, %v1355
        %v1420 = vpack.c.b16 %v1358, %v1356
        %v1421 = vpack.c.b16 %v1361, %v1359
        %v1422 = vpack.c.b16 %v1362, %v1360
        %v1423 = vpack.c.b16 %v1365, %v1363
        %v1424 = vpack.c.b16 %v1366, %v1364
        %v1425 = vpack.c.b16 %v1369, %v1367
        %v1426 = vpack.c.b16 %v1370, %v1368
        %v1427 = vpack.c.b16 %v1373, %v1371
        %v1428 = vpack.c.b16 %v1374, %v1372
        %v1429 = vpack.c.b16 %v1377, %v1375
        %v1430 = vpack.c.b16 %v1378, %v1376
        %v1431 = vpack.c.b16 %v1381, %v1379
        %v1432 = vpack.c.b16 %v1382, %v1380
        %v1433 = vpack.c.b16 %v1385, %v1383
        %v1434 = vpack.c.b16 %v1386, %v1384
        %v1435 = vpack.c.b16 %v1389, %v1387
        %v1436 = vpack.c.b16 %v1390, %v1388
        %v1437 = vpack.c.b16 %v1393, %v1391
        %v1438 = vpack.c.b16 %v1394, %v1392
        %v1439 = vpack.c.b16 %v1397, %v1395
        %v1440 = vpack.c.b16 %v1398, %v1396
        %v1441 = vpack.c.b16 %v1401, %v1399
        %v1442 = vpack.c.b16 %v1402, %v1400
        %v1443 = vpack.c.b16 %v1405, %v1403
        %v1444 = vpack.c.b16 %v1406, %v1404
        %v1445 = vpack.c.b16 %v1409, %v1407
        %v1446 = vpack.c.b16 %v1410, %v1408
        %v1447 = vpack.c.b16 %v1413, %v1411
        %v1448 = vpack.c.b16 %v1414, %v1412
        %v1449 = vpack.c.b16 %v1417, %v1415
        %v1450 = vpack.c.b16 %v1418, %v1416
        %1483 = vmatprep.subr.bf16.mxu0 %v1420
        %1484 = vmatpush1.bf16.msra.mxu0 %v1419
        %1485 = vmatprep.subr.bf16.mxu0 %v1422
        %1486 = vmatpush1.bf16.msra.mxu0 %v1421
        %1487 = vmatprep.subr.bf16.mxu0 %v1424
        %1488 = vmatpush1.bf16.msra.mxu0 %v1423
        %1489 = vmatprep.subr.bf16.mxu0 %v1426
        %1490 = vmatpush1.bf16.msra.mxu0 %v1425
        %1491 = vmatprep.subr.bf16.mxu0 %v1428
        %1492 = vmatpush1.bf16.msra.mxu0 %v1427
        %1493 = vmatprep.subr.bf16.mxu0 %v1430
        %1494 = vmatpush1.bf16.msra.mxu0 %v1429
        %1495 = vmatprep.subr.bf16.mxu0 %v1432
        %1496 = vmatpush1.bf16.msra.mxu0 %v1431
        %1497 = vmatprep.subr.bf16.mxu0 %v1434
        %1498 = vmatpush1.bf16.msra.mxu0 %v1433
        %1499 = vmatprep.subr.bf16.mxu0 %v1436
        %1500 = vmatpush1.bf16.msra.mxu0 %v1435
        %1501 = vmatprep.subr.bf16.mxu0 %v1438
        %1502 = vmatpush1.bf16.msra.mxu0 %v1437
        %1503 = vmatprep.subr.bf16.mxu0 %v1440
        %1504 = vmatpush1.bf16.msra.mxu0 %v1439
        %1505 = vmatprep.subr.bf16.mxu0 %v1442
        %1506 = vmatpush1.bf16.msra.mxu0 %v1441
        %1507 = vmatprep.subr.bf16.mxu0 %v1444
        %1508 = vmatpush1.bf16.msra.mxu0 %v1443
        %1509 = vmatprep.subr.bf16.mxu0 %v1446
        %1510 = vmatpush1.bf16.msra.mxu0 %v1445
        %1511 = vmatprep.subr.bf16.mxu0 %v1448
        %1512 = vmatpush1.bf16.msra.mxu0 %v1447
        %1513 = vmatprep.subr.bf16.mxu0 %v1450
        %1514 = vmatpush1.bf16.msra.mxu0 %v1449
        %1515 = vmatprep.mubr.bf16.mxu0 %v1278
        %1516 = vmatmul.mubr.bf16.gmra.mrb[0].mxu0 %v1277
        %v1517 = vpop.f32.mrb[0].mxu0
        %v1518 = vadd.f32 %v1316, %v1517
        %v1519 = vpop.f32.mrb[0].mxu0
        %v1520 = vadd.f32 %v1320, %v1519
        %v1521 = vpop.f32.mrb[0].mxu0
        %v1522 = vpop.f32.mrb[0].mxu0
        %1523 = vdwg.mxu0
        %v1524 = vmul.f32 %v1518, 0.5
        %v1525 = vmul.f32 %v1520, 0.5
        %v1526 = vmul.f32 %v1518, 0.044715
        %v1527 = vmul.f32 %v1520, 0.044715
        %v1528 = vmul.f32 %v1526, %v1518
        %v1529 = vmul.f32 %v1527, %v1520
        %v1530 = vmul.f32 %v1528, %v1518
        %v1531 = vmul.f32 %v1529, %v1520
        %v1532 = vadd.f32 %v1518, %v1530
        %v1533 = vadd.f32 %v1520, %v1531
        %v1534 = vmul.f32 %v1532, 0.7978846
        %v1535 = vmul.f32 %v1533, 0.7978846
        %v1536 = vtanh.pop %v1534
        %v1537 = vtanh.pop %v1535
        %v1538 = vadd.f32 %v1536, 1.0
        %v1539 = vadd.f32 %v1537, 1.0
        %v1540 = vmul.f32 %v1524, %v1538
        %v1541 = vmul.f32 %v1525, %v1539
        %v1542 = vpack.c.bf16 %v1540, %v1540
        %v1543 = vpack.c.bf16 %v1541, %v1541
        %v1544 = vld [vmem:[#allocation11] sm:$0xff]
        %v1545 = vld [vmem:[#allocation11 + $0x8] sm:$0xff]
        %v1546 = vld [vmem:[#allocation11 + $0x10] sm:$0xff]
        %v1547 = vld [vmem:[#allocation11 + $0x18] sm:$0xff]
        %v1548 = vld [vmem:[#allocation11 + $0x20] sm:$0xff]
        %v1549 = vld [vmem:[#allocation11 + $0x28] sm:$0xff]
        %v1550 = vld [vmem:[#allocation11 + $0x30] sm:$0xff]
        %v1551 = vld [vmem:[#allocation11 + $0x38] sm:$0xff]
        %v1552 = vld [vmem:[#allocation11 + $0x40] sm:$0xff]
        %v1553 = vld [vmem:[#allocation11 + $0x48] sm:$0xff]
        %v1554 = vld [vmem:[#allocation11 + $0x50] sm:$0xff]
        %v1555 = vld [vmem:[#allocation11 + $0x58] sm:$0xff]
        %v1556 = vld [vmem:[#allocation11 + $0x60] sm:$0xff]
        %v1557 = vld [vmem:[#allocation11 + $0x68] sm:$0xff]
        %v1558 = vld [vmem:[#allocation11 + $0x70] sm:$0xff]
        %v1559 = vld [vmem:[#allocation11 + $0x78] sm:$0xff]
        %v1560 = vld [vmem:[#allocation11 + $0x80] sm:$0xff]
        %v1561 = vld [vmem:[#allocation11 + $0x88] sm:$0xff]
        %v1562 = vld [vmem:[#allocation11 + $0x90] sm:$0xff]
        %v1563 = vld [vmem:[#allocation11 + $0x98] sm:$0xff]
        %v1564 = vld [vmem:[#allocation11 + $0xa0] sm:$0xff]
        %v1565 = vld [vmem:[#allocation11 + $0xa8] sm:$0xff]
        %v1566 = vld [vmem:[#allocation11 + $0xb0] sm:$0xff]
        %v1567 = vld [vmem:[#allocation11 + $0xb8] sm:$0xff]
        %v1568 = vld [vmem:[#allocation11 + $0xc0] sm:$0xff]
        %v1569 = vld [vmem:[#allocation11 + $0xc8] sm:$0xff]
        %v1570 = vld [vmem:[#allocation11 + $0xd0] sm:$0xff]
        %v1571 = vld [vmem:[#allocation11 + $0xd8] sm:$0xff]
        %v1572 = vld [vmem:[#allocation11 + $0xe0] sm:$0xff]
        %v1573 = vld [vmem:[#allocation11 + $0xe8] sm:$0xff]
        %v1574 = vld [vmem:[#allocation11 + $0xf0] sm:$0xff]
        %v1575 = vld [vmem:[#allocation11 + $0xf8] sm:$0xff]
        %v1576 = vld [vmem:[#allocation13] sm:$0x3]
        %v1578 = vlaneseq
        %v1579 = vshrl.u32 %v1578, 7
        %v1580 = vsub.s32 0, %v1579
        %v1581 = vrot.slane %v1576, %v1580
        %v1582 = vlaneseq
        %v1583 = vshrl.u32 %v1582, 7
        %v1584 = vsub.s32 1, %v1583
        %v1585 = vrot.slane %v1576, %v1584
        %v1620 = vunpack.c.l.b16 %v1544
        %v1621 = vunpack.c.h.b16 %v1544
        %v1622 = vunpack.c.l.b16 %v1545
        %v1623 = vunpack.c.h.b16 %v1545
        %v1624 = vunpack.c.l.b16 %v1546
        %v1625 = vunpack.c.h.b16 %v1546
        %v1626 = vunpack.c.l.b16 %v1547
        %v1627 = vunpack.c.h.b16 %v1547
        %v1628 = vunpack.c.l.b16 %v1548
        %v1629 = vunpack.c.h.b16 %v1548
        %v1630 = vunpack.c.l.b16 %v1549
        %v1631 = vunpack.c.h.b16 %v1549
        %v1632 = vunpack.c.l.b16 %v1550
        %v1633 = vunpack.c.h.b16 %v1550
        %v1634 = vunpack.c.l.b16 %v1551
        %v1635 = vunpack.c.h.b16 %v1551
        %v1636 = vunpack.c.l.b16 %v1552
        %v1637 = vunpack.c.h.b16 %v1552
        %v1638 = vunpack.c.l.b16 %v1553
        %v1639 = vunpack.c.h.b16 %v1553
        %v1640 = vunpack.c.l.b16 %v1554
        %v1641 = vunpack.c.h.b16 %v1554
        %v1642 = vunpack.c.l.b16 %v1555
        %v1643 = vunpack.c.h.b16 %v1555
        %v1644 = vunpack.c.l.b16 %v1556
        %v1645 = vunpack.c.h.b16 %v1556
        %v1646 = vunpack.c.l.b16 %v1557
        %v1647 = vunpack.c.h.b16 %v1557
        %v1648 = vunpack.c.l.b16 %v1558
        %v1649 = vunpack.c.h.b16 %v1558
        %v1650 = vunpack.c.l.b16 %v1559
        %v1651 = vunpack.c.h.b16 %v1559
        %v1652 = vunpack.c.l.b16 %v1560
        %v1653 = vunpack.c.h.b16 %v1560
        %v1654 = vunpack.c.l.b16 %v1561
        %v1655 = vunpack.c.h.b16 %v1561
        %v1656 = vunpack.c.l.b16 %v1562
        %v1657 = vunpack.c.h.b16 %v1562
        %v1658 = vunpack.c.l.b16 %v1563
        %v1659 = vunpack.c.h.b16 %v1563
        %v1660 = vunpack.c.l.b16 %v1564
        %v1661 = vunpack.c.h.b16 %v1564
        %v1662 = vunpack.c.l.b16 %v1565
        %v1663 = vunpack.c.h.b16 %v1565
        %v1664 = vunpack.c.l.b16 %v1566
        %v1665 = vunpack.c.h.b16 %v1566
        %v1666 = vunpack.c.l.b16 %v1567
        %v1667 = vunpack.c.h.b16 %v1567
        %v1668 = vunpack.c.l.b16 %v1568
        %v1669 = vunpack.c.h.b16 %v1568
        %v1670 = vunpack.c.l.b16 %v1569
        %v1671 = vunpack.c.h.b16 %v1569
        %v1672 = vunpack.c.l.b16 %v1570
        %v1673 = vunpack.c.h.b16 %v1570
        %v1674 = vunpack.c.l.b16 %v1571
        %v1675 = vunpack.c.h.b16 %v1571
        %v1676 = vunpack.c.l.b16 %v1572
        %v1677 = vunpack.c.h.b16 %v1572
        %v1678 = vunpack.c.l.b16 %v1573
        %v1679 = vunpack.c.h.b16 %v1573
        %v1680 = vunpack.c.l.b16 %v1574
        %v1681 = vunpack.c.h.b16 %v1574
        %v1682 = vunpack.c.l.b16 %v1575
        %v1683 = vunpack.c.h.b16 %v1575
        %v1684 = vpack.c.b16 %v1622, %v1620
        %v1685 = vpack.c.b16 %v1623, %v1621
        %v1686 = vpack.c.b16 %v1626, %v1624
        %v1687 = vpack.c.b16 %v1627, %v1625
        %v1688 = vpack.c.b16 %v1630, %v1628
        %v1689 = vpack.c.b16 %v1631, %v1629
        %v1690 = vpack.c.b16 %v1634, %v1632
        %v1691 = vpack.c.b16 %v1635, %v1633
        %v1692 = vpack.c.b16 %v1638, %v1636
        %v1693 = vpack.c.b16 %v1639, %v1637
        %v1694 = vpack.c.b16 %v1642, %v1640
        %v1695 = vpack.c.b16 %v1643, %v1641
        %v1696 = vpack.c.b16 %v1646, %v1644
        %v1697 = vpack.c.b16 %v1647, %v1645
        %v1698 = vpack.c.b16 %v1650, %v1648
        %v1699 = vpack.c.b16 %v1651, %v1649
        %v1700 = vpack.c.b16 %v1654, %v1652
        %v1701 = vpack.c.b16 %v1655, %v1653
        %v1702 = vpack.c.b16 %v1658, %v1656
        %v1703 = vpack.c.b16 %v1659, %v1657
        %v1704 = vpack.c.b16 %v1662, %v1660
        %v1705 = vpack.c.b16 %v1663, %v1661
        %v1706 = vpack.c.b16 %v1666, %v1664
        %v1707 = vpack.c.b16 %v1667, %v1665
        %v1708 = vpack.c.b16 %v1670, %v1668
        %v1709 = vpack.c.b16 %v1671, %v1669
        %v1710 = vpack.c.b16 %v1674, %v1672
        %v1711 = vpack.c.b16 %v1675, %v1673
        %v1712 = vpack.c.b16 %v1678, %v1676
        %v1713 = vpack.c.b16 %v1679, %v1677
        %v1714 = vpack.c.b16 %v1682, %v1680
        %v1715 = vpack.c.b16 %v1683, %v1681
        %1748 = vmatprep.subr.bf16.mxu0 %v1685
        %1749 = vmatpush1.bf16.msra.mxu0 %v1684
        %1750 = vmatprep.subr.bf16.mxu0 %v1687
        %1751 = vmatpush1.bf16.msra.mxu0 %v1686
        %1752 = vmatprep.subr.bf16.mxu0 %v1689
        %1753 = vmatpush1.bf16.msra.mxu0 %v1688
        %1754 = vmatprep.subr.bf16.mxu0 %v1691
        %1755 = vmatpush1.bf16.msra.mxu0 %v1690
        %1756 = vmatprep.subr.bf16.mxu0 %v1693
        %1757 = vmatpush1.bf16.msra.mxu0 %v1692
        %1758 = vmatprep.subr.bf16.mxu0 %v1695
        %1759 = vmatpush1.bf16.msra.mxu0 %v1694
        %1760 = vmatprep.subr.bf16.mxu0 %v1697
        %1761 = vmatpush1.bf16.msra.mxu0 %v1696
        %1762 = vmatprep.subr.bf16.mxu0 %v1699
        %1763 = vmatpush1.bf16.msra.mxu0 %v1698
        %1764 = vmatprep.subr.bf16.mxu0 %v1701
        %1765 = vmatpush1.bf16.msra.mxu0 %v1700
        %1766 = vmatprep.subr.bf16.mxu0 %v1703
        %1767 = vmatpush1.bf16.msra.mxu0 %v1702
        %1768 = vmatprep.subr.bf16.mxu0 %v1705
        %1769 = vmatpush1.bf16.msra.mxu0 %v1704
        %1770 = vmatprep.subr.bf16.mxu0 %v1707
        %1771 = vmatpush1.bf16.msra.mxu0 %v1706
        %1772 = vmatprep.subr.bf16.mxu0 %v1709
        %1773 = vmatpush1.bf16.msra.mxu0 %v1708
        %1774 = vmatprep.subr.bf16.mxu0 %v1711
        %1775 = vmatpush1.bf16.msra.mxu0 %v1710
        %1776 = vmatprep.subr.bf16.mxu0 %v1713
        %1777 = vmatpush1.bf16.msra.mxu0 %v1712
        %1778 = vmatprep.subr.bf16.mxu0 %v1715
        %1779 = vmatpush1.bf16.msra.mxu0 %v1714
        %1780 = vmatprep.mubr.bf16.mxu0 %v1543
        %1781 = vmatmul.mubr.bf16.gmra.mrb[0].mxu0 %v1542
        %v1782 = vpop.f32.mrb[0].mxu0
        %v1783 = vadd.f32 %v1581, %v1782
        %v1784 = vpop.f32.mrb[0].mxu0
        %v1785 = vadd.f32 %v1585, %v1784
        %v1786 = vpop.f32.mrb[0].mxu0
        %v1787 = vpop.f32.mrb[0].mxu0
        %1788 = vdwg.mxu0
        %v1789 = vadd.f32 %v1783, %v1518
        %v1790 = vadd.f32 %v1785, %v1520
        %v1791 = vadd.f32 %v1789, %v1790
        %1792 = vadd.xlane.f32.xlu0 %v1791
        %v1793 = vpop.xlane.xlu0 %1792
        %v1794 = vmul.f32 %v1793, 0.00390625
        %v1795 = vmul.f32 %v1789, %v1789
        %v1796 = vmul.f32 %v1790, %v1790
        %v1797 = vadd.f32 %v1795, %v1796
        %1798 = vadd.xlane.f32.xlu0 %v1797
        %v1799 = vpop.xlane.xlu0 %1798
        %v1800 = vmul.f32 %v1799, 0.00390625
        %v1801 = vmul.f32 %v1794, %v1794
        %v1802 = vsub.f32 %v1800, %v1801
        %v1803 = vadd.f32 %v1802, 1e-05
        %v1804 = vrsqrt.pop %v1803
        %v1805 = vsub.f32 %v1789, %v1794
        %v1806 = vsub.f32 %v1790, %v1794
        %v1807 = vmul.f32 %v1805, %v1804
        %v1808 = vmul.f32 %v1806, %v1804
        %v1809 = vld [vmem:[#allocation14] sm:$0x3]
        %v1811 = vlaneseq
        %v1812 = vshrl.u32 %v1811, 7
        %v1813 = vsub.s32 0, %v1812
        %v1814 = vrot.slane %v1809, %v1813
        %v1815 = vlaneseq
        %v1816 = vshrl.u32 %v1815, 7
        %v1817 = vsub.s32 1, %v1816
        %v1818 = vrot.slane %v1809, %v1817
        %v1821 = vmul.f32 %v1807, %v1814
        %v1822 = vmul.f32 %v1808, %v1818
        %v1823 = vld [vmem:[#allocation16] sm:$0x3]
        %v1825 = vlaneseq
        %v1826 = vshrl.u32 %v1825, 7
        %v1827 = vsub.s32 0, %v1826
        %v1828 = vrot.slane %v1823, %v1827
        %v1829 = vlaneseq
        %v1830 = vshrl.u32 %v1829, 7
        %v1831 = vsub.s32 1, %v1830
        %v1832 = vrot.slane %v1823, %v1831
        %v1835 = vadd.f32 %v1821, %v1828
        %v1836 = vadd.f32 %v1822, %v1832
        %v1837 = vpack.c.bf16 %v1835, %v1835
        %v1838 = vpack.c.bf16 %v1836, %v1836
        %v1839 = vld [vmem:[#allocation17] sm:$0xf]
        %v1840 = vld [vmem:[#allocation17 + $0x4] sm:$0xf]
        %v1841 = vld [vmem:[#allocation17 + $0x8] sm:$0xf]
        %v1842 = vld [vmem:[#allocation17 + $0xc] sm:$0xf]
        %v1843 = vld [vmem:[#allocation17 + $0x10] sm:$0xf]
        %v1844 = vld [vmem:[#allocation17 + $0x14] sm:$0xf]
        %v1845 = vld [vmem:[#allocation17 + $0x18] sm:$0xf]
        %v1846 = vld [vmem:[#allocation17 + $0x1c] sm:$0xf]
        %v1847 = vld [vmem:[#allocation17 + $0x20] sm:$0xf]
        %v1848 = vld [vmem:[#allocation17 + $0x24] sm:$0xf]
        %v1849 = vld [vmem:[#allocation17 + $0x28] sm:$0xf]
        %v1850 = vld [vmem:[#allocation17 + $0x2c] sm:$0xf]
        %v1851 = vld [vmem:[#allocation17 + $0x30] sm:$0xf]
        %v1852 = vld [vmem:[#allocation17 + $0x34] sm:$0xf]
        %v1853 = vld [vmem:[#allocation17 + $0x38] sm:$0xf]
        %v1854 = vld [vmem:[#allocation17 + $0x3c] sm:$0xf]
        %v1855 = vld [vmem:[#allocation17 + $0x40] sm:$0xf]
        %v1856 = vld [vmem:[#allocation17 + $0x44] sm:$0xf]
        %v1857 = vld [vmem:[#allocation17 + $0x48] sm:$0xf]
        %v1858 = vld [vmem:[#allocation17 + $0x4c] sm:$0xf]
        %v1859 = vld [vmem:[#allocation17 + $0x50] sm:$0xf]
        %v1860 = vld [vmem:[#allocation17 + $0x54] sm:$0xf]
        %v1861 = vld [vmem:[#allocation17 + $0x58] sm:$0xf]
        %v1862 = vld [vmem:[#allocation17 + $0x5c] sm:$0xf]
        %v1863 = vld [vmem:[#allocation17 + $0x60] sm:$0xf]
        %v1864 = vld [vmem:[#allocation17 + $0x64] sm:$0xf]
        %v1865 = vld [vmem:[#allocation17 + $0x68] sm:$0xf]
        %v1866 = vld [vmem:[#allocation17 + $0x6c] sm:$0xf]
        %v1867 = vld [vmem:[#allocation17 + $0x70] sm:$0xf]
        %v1868 = vld [vmem:[#allocation17 + $0x74] sm:$0xf]
        %v1869 = vld [vmem:[#allocation17 + $0x78] sm:$0xf]
        %v1870 = vld [vmem:[#allocation17 + $0x7c] sm:$0xf]
        %v1871 = vld [vmem:[#allocation19] sm:$0x1]
        %v1873 = vlaneseq
        %v1874 = vshrl.u32 %v1873, 7
        %v1875 = vsub.s32 0, %v1874
        %v1876 = vrot.slane %v1871, %v1875
        %v1910 = vunpack.c.l.b16 %v1839
        %v1911 = vunpack.c.l.b16 %v1840
        %v1912 = vunpack.c.l.b16 %v1841
        %v1913 = vunpack.c.l.b16 %v1842
        %v1914 = vunpack.c.l.b16 %v1843
        %v1915 = vunpack.c.l.b16 %v1844
        %v1916 = vunpack.c.l.b16 %v1845
        %v1917 = vunpack.c.l.b16 %v1846
        %v1918 = vunpack.c.l.b16 %v1847
        %v1919 = vunpack.c.l.b16 %v1848
        %v1920 = vunpack.c.l.b16 %v1849
        %v1921 = vunpack.c.l.b16 %v1850
        %v1922 = vunpack.c.l.b16 %v1851
        %v1923 = vunpack.c.l.b16 %v1852
        %v1924 = vunpack.c.l.b16 %v1853
        %v1925 = vunpack.c.l.b16 %v1854
        %v1926 = vunpack.c.l.b16 %v1855
        %v1927 = vunpack.c.l.b16 %v1856
        %v1928 = vunpack.c.l.b16 %v1857
        %v1929 = vunpack.c.l.b16 %v1858
        %v1930 = vunpack.c.l.b16 %v1859
        %v1931 = vunpack.c.l.b16 %v1860
        %v1932 = vunpack.c.l.b16 %v1861
        %v1933 = vunpack.c.l.b16 %v1862
        %v1934 = vunpack.c.l.b16 %v1863
        %v1935 = vunpack.c.l.b16 %v1864
        %v1936 = vunpack.c.l.b16 %v1865
        %v1937 = vunpack.c.l.b16 %v1866
        %v1938 = vunpack.c.l.b16 %v1867
        %v1939 = vunpack.c.l.b16 %v1868
        %v1940 = vunpack.c.l.b16 %v1869
        %v1941 = vunpack.c.l.b16 %v1870
        %v1942 = vpack.c.b16 %v1911, %v1910
        %v1943 = vpack.c.b16 %v1913, %v1912
        %v1944 = vpack.c.b16 %v1915, %v1914
        %v1945 = vpack.c.b16 %v1917, %v1916
        %v1946 = vpack.c.b16 %v1919, %v1918
        %v1947 = vpack.c.b16 %v1921, %v1920
        %v1948 = vpack.c.b16 %v1923, %v1922
        %v1949 = vpack.c.b16 %v1925, %v1924
        %v1950 = vpack.c.b16 %v1927, %v1926
        %v1951 = vpack.c.b16 %v1929, %v1928
        %v1952 = vpack.c.b16 %v1931, %v1930
        %v1953 = vpack.c.b16 %v1933, %v1932
        %v1954 = vpack.c.b16 %v1935, %v1934
        %v1955 = vpack.c.b16 %v1937, %v1936
        %v1956 = vpack.c.b16 %v1939, %v1938
        %v1957 = vpack.c.b16 %v1941, %v1940
        %1974 = vmatprep.subr.bf16.mxu0 0
        %1975 = vmatpush1.bf16.msra.mxu0 %v1942
        %1976 = vmatprep.subr.bf16.mxu0 0
        %1977 = vmatpush1.bf16.msra.mxu0 %v1943
        %1978 = vmatprep.subr.bf16.mxu0 0
        %1979 = vmatpush1.bf16.msra.mxu0 %v1944
        %1980 = vmatprep.subr.bf16.mxu0 0
        %1981 = vmatpush1.bf16.msra.mxu0 %v1945
        %1982 = vmatprep.subr.bf16.mxu0 0
        %1983 = vmatpush1.bf16.msra.mxu0 %v1946
        %1984 = vmatprep.subr.bf16.mxu0 0
        %1985 = vmatpush1.bf16.msra.mxu0 %v1947
        %1986 = vmatprep.subr.bf16.mxu0 0
        %1987 = vmatpush1.bf16.msra.mxu0 %v1948
        %1988 = vmatprep.subr.bf16.mxu0 0
        %1989 = vmatpush1.bf16.msra.mxu0 %v1949
        %1990 = vmatprep.subr.bf16.mxu0 0
        %1991 = vmatpush1.bf16.msra.mxu0 %v1950
        %1992 = vmatprep.subr.bf16.mxu0 0
        %1993 = vmatpush1.bf16.msra.mxu0 %v1951
        %1994 = vmatprep.subr.bf16.mxu0 0
        %1995 = vmatpush1.bf16.msra.mxu0 %v1952
        %1996 = vmatprep.subr.bf16.mxu0 0
        %1997 = vmatpush1.bf16.msra.mxu0 %v1953
        %1998 = vmatprep.subr.bf16.mxu0 0
        %1999 = vmatpush1.bf16.msra.mxu0 %v1954
        %2000 = vmatprep.subr.bf16.mxu0 0
        %2001 = vmatpush1.bf16.msra.mxu0 %v1955
        %2002 = vmatprep.subr.bf16.mxu0 0
        %2003 = vmatpush1.bf16.msra.mxu0 %v1956
        %2004 = vmatprep.subr.bf16.mxu0 0
        %2005 = vmatpush1.bf16.msra.mxu0 %v1957
        %2006 = vmatprep.mubr.bf16.mxu0 %v1838
        %2007 = vmatmul.mubr.bf16.gmra.mrb[0].mxu0 %v1837
        %v2008 = vpop.f32.mrb[0].mxu0
        %v2009 = vadd.f32 %v1876, %v2008
        %v2010 = vpop.f32.mrb[0].mxu0
        %v2011 = vpop.f32.mrb[0].mxu0
        %v2012 = vpop.f32.mrb[0].mxu0
        %2013 = vdwg.mxu0
        %v2014 = vmul.f32 %v2009, 0.5
        %v2015 = vmul.f32 %v2009, 0.044715
        %v2016 = vmul.f32 %v2015, %v2009
        %v2017 = vmul.f32 %v2016, %v2009
        %v2018 = vadd.f32 %v2009, %v2017
        %v2019 = vmul.f32 %v2018, 0.7978846
        %v2020 = vtanh.pop %v2019
        %v2021 = vadd.f32 %v2020, 1.0
        %v2022 = vmul.f32 %v2014, %v2021
        %v2023 = vpack.c.bf16 %v2022, %v2022
        %v2024 = vld [vmem:[#allocation20] sm:$0xf]
        %v2025 = vld [vmem:[#allocation20 + $0x4] sm:$0xf]
        %v2026 = vld [vmem:[#allocation20 + $0x8] sm:$0xf]
        %v2027 = vld [vmem:[#allocation20 + $0xc] sm:$0xf]
        %v2028 = vld [vmem:[#allocation20 + $0x10] sm:$0xf]
        %v2029 = vld [vmem:[#allocation20 + $0x14] sm:$0xf]
        %v2030 = vld [vmem:[#allocation20 + $0x18] sm:$0xf]
        %v2031 = vld [vmem:[#allocation20 + $0x1c] sm:$0xf]
        %v2032 = vld [vmem:[#allocation20 + $0x20] sm:$0xf]
        %v2033 = vld [vmem:[#allocation20 + $0x24] sm:$0xf]
        %v2034 = vld [vmem:[#allocation20 + $0x28] sm:$0xf]
        %v2035 = vld [vmem:[#allocation20 + $0x2c] sm:$0xf]
        %v2036 = vld [vmem:[#allocation20 + $0x30] sm:$0xf]
        %v2037 = vld [vmem:[#allocation20 + $0x34] sm:$0xf]
        %v2038 = vld [vmem:[#allocation20 + $0x38] sm:$0xf]
        %v2039 = vld [vmem:[#allocation20 + $0x3c] sm:$0xf]
        %v2040 = vld [vmem:[#allocation22] sm:$0x1]
        %v2042 = vlaneseq
        %v2043 = vshrl.u32 %v2042, 7
        %v2044 = vsub.s32 0, %v2043
        %v2045 = vrot.slane %v2040, %v2044
        %v2063 = vunpack.c.l.b16 %v2024
        %v2064 = vunpack.c.l.b16 %v2025
        %v2065 = vunpack.c.l.b16 %v2026
        %v2066 = vunpack.c.l.b16 %v2027
        %v2067 = vunpack.c.l.b16 %v2028
        %v2068 = vunpack.c.l.b16 %v2029
        %v2069 = vunpack.c.l.b16 %v2030
        %v2070 = vunpack.c.l.b16 %v2031
        %v2071 = vunpack.c.l.b16 %v2032
        %v2072 = vunpack.c.l.b16 %v2033
        %v2073 = vunpack.c.l.b16 %v2034
        %v2074 = vunpack.c.l.b16 %v2035
        %v2075 = vunpack.c.l.b16 %v2036
        %v2076 = vunpack.c.l.b16 %v2037
        %v2077 = vunpack.c.l.b16 %v2038
        %v2078 = vunpack.c.l.b16 %v2039
        %v2079 = vpack.c.b16 %v2064, %v2063
        %v2080 = vpack.c.b16 %v2066, %v2065
        %v2081 = vpack.c.b16 %v2068, %v2067
        %v2082 = vpack.c.b16 %v2070, %v2069
        %v2083 = vpack.c.b16 %v2072, %v2071
        %v2084 = vpack.c.b16 %v2074, %v2073
        %v2085 = vpack.c.b16 %v2076, %v2075
        %v2086 = vpack.c.b16 %v2078, %v2077
        %2095 = vmatprep.subr.bf16.mxu0 0
        %2096 = vmatpush1.bf16.msra.mxu0 %v2079
        %2097 = vmatprep.subr.bf16.mxu0 0
        %2098 = vmatpush1.bf16.msra.mxu0 %v2080
        %2099 = vmatprep.subr.bf16.mxu0 0
        %2100 = vmatpush1.bf16.msra.mxu0 %v2081
        %2101 = vmatprep.subr.bf16.mxu0 0
        %2102 = vmatpush1.bf16.msra.mxu0 %v2082
        %2103 = vmatprep.subr.bf16.mxu0 0
        %2104 = vmatpush1.bf16.msra.mxu0 %v2083
        %2105 = vmatprep.subr.bf16.mxu0 0
        %2106 = vmatpush1.bf16.msra.mxu0 %v2084
        %2107 = vmatprep.subr.bf16.mxu0 0
        %2108 = vmatpush1.bf16.msra.mxu0 %v2085
        %2109 = vmatprep.subr.bf16.mxu0 0
        %2110 = vmatpush1.bf16.msra.mxu0 %v2086
        %2111 = vmatprep.subr.bf16.mxu0 0
        %2112 = vmatpush1.bf16.msra.mxu0 0
        %2113 = vmatprep.subr.bf16.mxu0 0
        %2114 = vmatpush1.bf16.msra.mxu0 0
        %2115 = vmatprep.subr.bf16.mxu0 0
        %2116 = vmatpush1.bf16.msra.mxu0 0
        %2117 = vmatprep.subr.bf16.mxu0 0
        %2118 = vmatpush1.bf16.msra.mxu0 0
        %2119 = vmatprep.subr.bf16.mxu0 0
        %2120 = vmatpush1.bf16.msra.mxu0 0
        %2121 = vmatprep.subr.bf16.mxu0 0
        %2122 = vmatpush1.bf16.msra.mxu0 0
        %2123 = vmatprep.subr.bf16.mxu0 0
        %2124 = vmatpush1.bf16.msra.mxu0 0
        %2125 = vmatprep.subr.bf16.mxu0 0
        %2126 = vmatpush1.bf16.msra.mxu0 0
        %2127 = vmatprep.mubr.bf16.mxu0 0
        %2128 = vmatmul.mubr.bf16.gmra.mrb[0].mxu0 %v2023
        %v2129 = vpop.f32.mrb[0].mxu0
        %v2130 = vadd.f32 %v2045, %v2129
        %v2131 = vpop.f32.mrb[0].mxu0
        %v2132 = vpop.f32.mrb[0].mxu0
        %v2133 = vpop.f32.mrb[0].mxu0
        %2134 = vdwg.mxu0
        %v2135 = vadd.f32 %v2130, %v2009
        %2136 = vadd.xlane.f32.xlu0 %v2135
        %v2137 = vpop.xlane.xlu0 %2136
        %v2138 = vmul.f32 %v2137, 0.0078125
        %v2139 = vmul.f32 %v2135, %v2135
        %2140 = vadd.xlane.f32.xlu0 %v2139
        %v2141 = vpop.xlane.xlu0 %2140
        %v2142 = vmul.f32 %v2141, 0.0078125
        %v2143 = vmul.f32 %v2138, %v2138
        %v2144 = vsub.f32 %v2142, %v2143
        %v2145 = vadd.f32 %v2144, 1e-05
        %v2146 = vrsqrt.pop %v2145
        %v2147 = vsub.f32 %v2135, %v2138
        %v2148 = vmul.f32 %v2147, %v2146
        %v2149 = vld [vmem:[#allocation23] sm:$0x1]
        %v2151 = vlaneseq
        %v2152 = vshrl.u32 %v2151, 7
        %v2153 = vsub.s32 0, %v2152
        %v2154 = vrot.slane %v2149, %v2153
        %v2156 = vmul.f32 %v2148, %v2154
        %v2157 = vld [vmem:[#allocation25] sm:$0x1]
        %v2159 = vlaneseq
        %v2160 = vshrl.u32 %v2159, 7
        %v2161 = vsub.s32 0, %v2160
        %v2162 = vrot.slane %v2157, %v2161
        %v2164 = vadd.f32 %v2156, %v2162
        %v2165 = vpack.c.bf16 %v2164, %v2164
        %v2166 = vld [vmem:[#allocation26] sm:$0xf]
        %v2167 = vld [vmem:[#allocation26 + $0x4] sm:$0xf]
        %v2168 = vld [vmem:[#allocation26 + $0x8] sm:$0xf]
        %v2169 = vld [vmem:[#allocation26 + $0xc] sm:$0xf]
        %v2170 = vld [vmem:[#allocation26 + $0x10] sm:$0xf]
        %v2171 = vld [vmem:[#allocation26 + $0x14] sm:$0xf]
        %v2172 = vld [vmem:[#allocation26 + $0x18] sm:$0xf]
        %v2173 = vld [vmem:[#allocation26 + $0x1c] sm:$0xf]
        %v2174 = vld [vmem:[#allocation26 + $0x20] sm:$0xf]
        %v2175 = vld [vmem:[#allocation26 + $0x24] sm:$0xf]
        %v2176 = vld [vmem:[#allocation26 + $0x28] sm:$0xf]
        %v2177 = vld [vmem:[#allocation26 + $0x2c] sm:$0xf]
        %v2178 = vld [vmem:[#allocation26 + $0x30] sm:$0xf]
        %v2179 = vld [vmem:[#allocation26 + $0x34] sm:$0xf]
        %v2180 = vld [vmem:[#allocation26 + $0x38] sm:$0xf]
        %v2181 = vld [vmem:[#allocation26 + $0x3c] sm:$0xf]
        %v2182 = vld [vmem:[#allocation28] sm:$0x1]
        %v2184 = vlaneseq
        %v2185 = vshrl.u32 %v2184, 7
        %v2186 = vsub.s32 0, %v2185
        %v2187 = vrot.slane %v2182, %v2186
        %v2205 = vunpack.c.l.b16 %v2166
        %v2206 = vunpack.c.l.b16 %v2167
        %v2207 = vunpack.c.l.b16 %v2168
        %v2208 = vunpack.c.l.b16 %v2169
        %v2209 = vunpack.c.l.b16 %v2170
        %v2210 = vunpack.c.l.b16 %v2171
        %v2211 = vunpack.c.l.b16 %v2172
        %v2212 = vunpack.c.l.b16 %v2173
        %v2213 = vunpack.c.l.b16 %v2174
        %v2214 = vunpack.c.l.b16 %v2175
        %v2215 = vunpack.c.l.b16 %v2176
        %v2216 = vunpack.c.l.b16 %v2177
        %v2217 = vunpack.c.l.b16 %v2178
        %v2218 = vunpack.c.l.b16 %v2179
        %v2219 = vunpack.c.l.b16 %v2180
        %v2220 = vunpack.c.l.b16 %v2181
        %v2221 = vpack.c.b16 %v2206, %v2205
        %v2222 = vpack.c.b16 %v2208, %v2207
        %v2223 = vpack.c.b16 %v2210, %v2209
        %v2224 = vpack.c.b16 %v2212, %v2211
        %v2225 = vpack.c.b16 %v2214, %v2213
        %v2226 = vpack.c.b16 %v2216, %v2215
        %v2227 = vpack.c.b16 %v2218, %v2217
        %v2228 = vpack.c.b16 %v2220, %v2219
        %2237 = vmatprep.subr.bf16.mxu0 0
        %2238 = vmatpush1.bf16.msra.mxu0 %v2221
        %2239 = vmatprep.subr.bf16.mxu0 0
        %2240 = vmatpush1.bf16.msra.mxu0 %v2222
        %2241 = vmatprep.subr.bf16.mxu0 0
        %2242 = vmatpush1.bf16.msra.mxu0 %v2223
        %2243 = vmatprep.subr.bf16.mxu0 0
        %2244 = vmatpush1.bf16.msra.mxu0 %v2224
        %2245 = vmatprep.subr.bf16.mxu0 0
        %2246 = vmatpush1.bf16.msra.mxu0 %v2225
        %2247 = vmatprep.subr.bf16.mxu0 0
        %2248 = vmatpush1.bf16.msra.mxu0 %v2226
        %2249 = vmatprep.subr.bf16.mxu0 0
        %2250 = vmatpush1.bf16.msra.mxu0 %v2227
        %2251 = vmatprep.subr.bf16.mxu0 0
        %2252 = vmatpush1.bf16.msra.mxu0 %v2228
        %2253 = vmatprep.subr.bf16.mxu0 0
        %2254 = vmatpush1.bf16.msra.mxu0 0
        %2255 = vmatprep.subr.bf16.mxu0 0
        %2256 = vmatpush1.bf16.msra.mxu0 0
        %2257 = vmatprep.subr.bf16.mxu0 0
        %2258 = vmatpush1.bf16.msra.mxu0 0
        %2259 = vmatprep.subr.bf16.mxu0 0
        %2260 = vmatpush1.bf16.msra.mxu0 0
        %2261 = vmatprep.subr.bf16.mxu0 0
        %2262 = vmatpush1.bf16.msra.mxu0 0
        %2263 = vmatprep.subr.bf16.mxu0 0
        %2264 = vmatpush1.bf16.msra.mxu0 0
        %2265 = vmatprep.subr.bf16.mxu0 0
        %2266 = vmatpush1.bf16.msra.mxu0 0
        %2267 = vmatprep.subr.bf16.mxu0 0
        %2268 = vmatpush1.bf16.msra.mxu0 0
        %2269 = vmatprep.mubr.bf16.mxu0 0
        %2270 = vmatmul.mubr.bf16.gmra.mrb[0].mxu0 %v2165
        %v2271 = vpop.f32.mrb[0].mxu0
        %v2272 = vadd.f32 %v2187, %v2271
        %v2273 = vpop.f32.mrb[0].mxu0
        %v2274 = vpop.f32.mrb[0].mxu0
        %v2275 = vpop.f32.mrb[0].mxu0
        %2276 = vdwg.mxu0
        %v2277 = vmul.f32 %v2272, 0.5
        %v2278 = vmul.f32 %v2272, 0.044715
        %v2279 = vmul.f32 %v2278, %v2272
        %v2280 = vmul.f32 %v2279, %v2272
        %v2281 = vadd.f32 %v2272, %v2280
        %v2282 = vmul.f32 %v2281, 0.7978846
        %v2283 = vtanh.pop %v2282
        %v2284 = vadd.f32 %v2283, 1.0
        %v2285 = vmul.f32 %v2277, %v2284
        %v2286 = vpack.c.bf16 %v2285, %v2285
        %v2287 = vld [vmem:[%s35] sm:$0xf]
        %v2288 = vld [vmem:[%s35 + $0x4] sm:$0xf]
        %v2289 = vld [vmem:[%s35 + $0x8] sm:$0xf]
        %v2290 = vld [vmem:[%s35 + $0xc] sm:$0xf]
        %v2291 = vld [vmem:[%s35 + $0x10] sm:$0xf]
        %v2292 = vld [vmem:[%s35 + $0x14] sm:$0xf]
        %v2293 = vld [vmem:[%s35 + $0x18] sm:$0xf]
        %v2294 = vld [vmem:[%s35 + $0x1c] sm:$0xf]
        %v2295 = vld [vmem:[%s35 + $0x20] sm:$0xf]
        %v2296 = vld [vmem:[%s35 + $0x24] sm:$0xf]
        %v2297 = vld [vmem:[%s35 + $0x28] sm:$0xf]
        %v2298 = vld [vmem:[%s35 + $0x2c] sm:$0xf]
        %v2299 = vld [vmem:[%s35 + $0x30] sm:$0xf]
        %v2300 = vld [vmem:[%s35 + $0x34] sm:$0xf]
        %v2301 = vld [vmem:[%s35 + $0x38] sm:$0xf]
        %v2302 = vld [vmem:[%s35 + $0x3c] sm:$0xf]
        %v2303 = vld [vmem:[#allocation29] sm:$0x1]
        %v2305 = vlaneseq
        %v2306 = vshrl.u32 %v2305, 7
        %v2307 = vsub.s32 0, %v2306
        %v2308 = vrot.slane %v2303, %v2307
        %v2326 = vunpack.c.l.b16 %v2287
        %v2327 = vunpack.c.l.b16 %v2288
        %v2328 = vunpack.c.l.b16 %v2289
        %v2329 = vunpack.c.l.b16 %v2290
        %v2330 = vunpack.c.l.b16 %v2291
        %v2331 = vunpack.c.l.b16 %v2292
        %v2332 = vunpack.c.l.b16 %v2293
        %v2333 = vunpack.c.l.b16 %v2294
        %v2334 = vunpack.c.l.b16 %v2295
        %v2335 = vunpack.c.l.b16 %v2296
        %v2336 = vunpack.c.l.b16 %v2297
        %v2337 = vunpack.c.l.b16 %v2298
        %v2338 = vunpack.c.l.b16 %v2299
        %v2339 = vunpack.c.l.b16 %v2300
        %v2340 = vunpack.c.l.b16 %v2301
        %v2341 = vunpack.c.l.b16 %v2302
        %v2342 = vpack.c.b16 %v2327, %v2326
        %v2343 = vpack.c.b16 %v2329, %v2328
        %v2344 = vpack.c.b16 %v2331, %v2330
        %v2345 = vpack.c.b16 %v2333, %v2332
        %v2346 = vpack.c.b16 %v2335, %v2334
        %v2347 = vpack.c.b16 %v2337, %v2336
        %v2348 = vpack.c.b16 %v2339, %v2338
        %v2349 = vpack.c.b16 %v2341, %v2340
        %2358 = vmatprep.subr.bf16.mxu0 0
        %2359 = vmatpush1.bf16.msra.mxu0 %v2342
        %2360 = vmatprep.subr.bf16.mxu0 0
        %2361 = vmatpush1.bf16.msra.mxu0 %v2343
        %2362 = vmatprep.subr.bf16.mxu0 0
        %2363 = vmatpush1.bf16.msra.mxu0 %v2344
        %2364 = vmatprep.subr.bf16.mxu0 0
        %2365 = vmatpush1.bf16.msra.mxu0 %v2345
        %2366 = vmatprep.subr.bf16.mxu0 0
        %2367 = vmatpush1.bf16.msra.mxu0 %v2346
        %2368 = vmatprep.subr.bf16.mxu0 0
        %2369 = vmatpush1.bf16.msra.mxu0 %v2347
        %2370 = vmatprep.subr.bf16.mxu0 0
        %2371 = vmatpush1.bf16.msra.mxu0 %v2348
        %2372 = vmatprep.subr.bf16.mxu0 0
        %2373 = vmatpush1.bf16.msra.mxu0 %v2349
        %2374 = vmatprep.subr.bf16.mxu0 0
        %2375 = vmatpush1.bf16.msra.mxu0 0
        %2376 = vmatprep.subr.bf16.mxu0 0
        %2377 = vmatpush1.bf16.msra.mxu0 0
        %2378 = vmatprep.subr.bf16.mxu0 0
        %2379 = vmatpush1.bf16.msra.mxu0 0
        %2380 = vmatprep.subr.bf16.mxu0 0
        %2381 = vmatpush1.bf16.msra.mxu0 0
        %2382 = vmatprep.subr.bf16.mxu0 0
        %2383 = vmatpush1.bf16.msra.mxu0 0
        %2384 = vmatprep.subr.bf16.mxu0 0
        %2385 = vmatpush1.bf16.msra.mxu0 0
        %2386 = vmatprep.subr.bf16.mxu0 0
        %2387 = vmatpush1.bf16.msra.mxu0 0
        %2388 = vmatprep.subr.bf16.mxu0 0
        %2389 = vmatpush1.bf16.msra.mxu0 0
        %2390 = vmatprep.mubr.bf16.mxu0 0
        %2391 = vmatmul.mubr.bf16.gmra.mrb[0].mxu0 %v2286
        %v2392 = vpop.f32.mrb[0].mxu0
        %v2393 = vadd.f32 %v2308, %v2392
        %v2394 = vpop.f32.mrb[0].mxu0
        %v2395 = vpop.f32.mrb[0].mxu0
        %v2396 = vpop.f32.mrb[0].mxu0
        %2397 = vdwg.mxu0
        %v2398 = vadd.f32 %v2393, %v2272
        %2399 = vadd.xlane.f32.xlu0 %v2398
        %v2400 = vpop.xlane.xlu0 %2399
        %v2401 = vmul.f32 %v2400, 0.0078125
        %v2402 = vmul.f32 %v2398, %v2398
        %2403 = vadd.xlane.f32.xlu0 %v2402
        %v2404 = vpop.xlane.xlu0 %2403
        %v2405 = vmul.f32 %v2404, 0.0078125
        %v2406 = vmul.f32 %v2401, %v2401
        %v2407 = vsub.f32 %v2405, %v2406
        %v2408 = vadd.f32 %v2407, 1e-05
        %v2409 = vrsqrt.pop %v2408
        %v2410 = vsub.f32 %v2398, %v2401
        %v2411 = vmul.f32 %v2410, %v2409
        %v2412 = vld [vmem:[%s39] sm:$0x1]
        %v2414 = vlaneseq
        %v2415 = vshrl.u32 %v2414, 7
        %v2416 = vsub.s32 0, %v2415
        %v2417 = vrot.slane %v2412, %v2416
        %v2419 = vmul.f32 %v2411, %v2417
        %v2420 = vld [vmem:[%s41] sm:$0x1]
        %v2422 = vlaneseq
        %v2423 = vshrl.u32 %v2422, 7
        %v2424 = vsub.s32 0, %v2423
        %v2425 = vrot.slane %v2420, %v2424
        %v2427 = vadd.f32 %v2419, %v2425
        %v2428 = vpack.c.bf16 %v2427, %v2427
        %v2429 = vld [vmem:[#allocation31] sm:$0xff]
        %v2430 = vld [vmem:[#allocation31 + $0x8] sm:$0xff]
        %v2431 = vld [vmem:[#allocation31 + $0x10] sm:$0xff]
        %v2432 = vld [vmem:[#allocation31 + $0x18] sm:$0xff]
        %v2433 = vld [vmem:[#allocation31 + $0x20] sm:$0xff]
        %v2434 = vld [vmem:[#allocation31 + $0x28] sm:$0xff]
        %v2435 = vld [vmem:[#allocation31 + $0x30] sm:$0xff]
        %v2436 = vld [vmem:[#allocation31 + $0x38] sm:$0xff]
        %v2437 = vld [vmem:[#allocation31 + $0x40] sm:$0xff]
        %v2438 = vld [vmem:[#allocation31 + $0x48] sm:$0xff]
        %v2439 = vld [vmem:[#allocation31 + $0x50] sm:$0xff]
        %v2440 = vld [vmem:[#allocation31 + $0x58] sm:$0xff]
        %v2441 = vld [vmem:[#allocation31 + $0x60] sm:$0xff]
        %v2442 = vld [vmem:[#allocation31 + $0x68] sm:$0xff]
        %v2443 = vld [vmem:[#allocation31 + $0x70] sm:$0xff]
        %v2444 = vld [vmem:[#allocation31 + $0x78] sm:$0xff]
        %v2445 = vld [vmem:[%s45] sm:$0x3]
        %v2447 = vlaneseq
        %v2448 = vshrl.u32 %v2447, 7
        %v2449 = vsub.s32 0, %v2448
        %v2450 = vrot.slane %v2445, %v2449
        %v2451 = vlaneseq
        %v2452 = vshrl.u32 %v2451, 7
        %v2453 = vsub.s32 1, %v2452
        %v2454 = vrot.slane %v2445, %v2453
        %v2473 = vunpack.c.l.b16 %v2429
        %v2474 = vunpack.c.h.b16 %v2429
        %v2475 = vunpack.c.l.b16 %v2430
        %v2476 = vunpack.c.h.b16 %v2430
        %v2477 = vunpack.c.l.b16 %v2431
        %v2478 = vunpack.c.h.b16 %v2431
        %v2479 = vunpack.c.l.b16 %v2432
        %v2480 = vunpack.c.h.b16 %v2432
        %v2481 = vunpack.c.l.b16 %v2433
        %v2482 = vunpack.c.h.b16 %v2433
        %v2483 = vunpack.c.l.b16 %v2434
        %v2484 = vunpack.c.h.b16 %v2434
        %v2485 = vunpack.c.l.b16 %v2435
        %v2486 = vunpack.c.h.b16 %v2435
        %v2487 = vunpack.c.l.b16 %v2436
        %v2488 = vunpack.c.h.b16 %v2436
        %v2489 = vunpack.c.l.b16 %v2437
        %v2490 = vunpack.c.h.b16 %v2437
        %v2491 = vunpack.c.l.b16 %v2438
        %v2492 = vunpack.c.h.b16 %v2438
        %v2493 = vunpack.c.l.b16 %v2439
        %v2494 = vunpack.c.h.b16 %v2439
        %v2495 = vunpack.c.l.b16 %v2440
        %v2496 = vunpack.c.h.b16 %v2440
        %v2497 = vunpack.c.l.b16 %v2441
        %v2498 = vunpack.c.h.b16 %v2441
        %v2499 = vunpack.c.l.b16 %v2442
        %v2500 = vunpack.c.h.b16 %v2442
        %v2501 = vunpack.c.l.b16 %v2443
        %v2502 = vunpack.c.h.b16 %v2443
        %v2503 = vunpack.c.l.b16 %v2444
        %v2504 = vunpack.c.h.b16 %v2444
        %v2505 = vpack.c.b16 %v2475, %v2473
        %v2506 = vpack.c.b16 %v2476, %v2474
        %v2507 = vpack.c.b16 %v2479, %v2477
        %v2508 = vpack.c.b16 %v2480, %v2478
        %v2509 = vpack.c.b16 %v2483, %v2481
        %v2510 = vpack.c.b16 %v2484, %v2482
        %v2511 = vpack.c.b16 %v2487, %v2485
        %v2512 = vpack.c.b16 %v2488, %v2486
        %v2513 = vpack.c.b16 %v2491, %v2489
        %v2514 = vpack.c.b16 %v2492, %v2490
        %v2515 = vpack.c.b16 %v2495, %v2493
        %v2516 = vpack.c.b16 %v2496, %v2494
        %v2517 = vpack.c.b16 %v2499, %v2497
        %v2518 = vpack.c.b16 %v2500, %v2498
        %v2519 = vpack.c.b16 %v2503, %v2501
        %v2520 = vpack.c.b16 %v2504, %v2502
        %2537 = vmatprep.subr.bf16.mxu0 %v2506
        %2538 = vmatpush1.bf16.msra.mxu0 %v2505
        %2539 = vmatprep.subr.bf16.mxu0 %v2508
        %2540 = vmatpush1.bf16.msra.mxu0 %v2507
        %2541 = vmatprep.subr.bf16.mxu0 %v2510
        %2542 = vmatpush1.bf16.msra.mxu0 %v2509
        %2543 = vmatprep.subr.bf16.mxu0 %v2512
        %2544 = vmatpush1.bf16.msra.mxu0 %v2511
        %2545 = vmatprep.subr.bf16.mxu0 %v2514
        %2546 = vmatpush1.bf16.msra.mxu0 %v2513
        %2547 = vmatprep.subr.bf16.mxu0 %v2516
        %2548 = vmatpush1.bf16.msra.mxu0 %v2515
        %2549 = vmatprep.subr.bf16.mxu0 %v2518
        %2550 = vmatpush1.bf16.msra.mxu0 %v2517
        %2551 = vmatprep.subr.bf16.mxu0 %v2520
        %2552 = vmatpush1.bf16.msra.mxu0 %v2519
        %2553 = vmatprep.subr.bf16.mxu0 0
        %2554 = vmatpush1.bf16.msra.mxu0 0
        %2555 = vmatprep.subr.bf16.mxu0 0
        %2556 = vmatpush1.bf16.msra.mxu0 0
        %2557 = vmatprep.subr.bf16.mxu0 0
        %2558 = vmatpush1.bf16.msra.mxu0 0
        %2559 = vmatprep.subr.bf16.mxu0 0
        %2560 = vmatpush1.bf16.msra.mxu0 0
        %2561 = vmatprep.subr.bf16.mxu0 0
        %2562 = vmatpush1.bf16.msra.mxu0 0
        %2563 = vmatprep.subr.bf16.mxu0 0
        %2564 = vmatpush1.bf16.msra.mxu0 0
        %2565 = vmatprep.subr.bf16.mxu0 0
        %2566 = vmatpush1.bf16.msra.mxu0 0
        %2567 = vmatprep.subr.bf16.mxu0 0
        %2568 = vmatpush1.bf16.msra.mxu0 0
        %2569 = vmatprep.mubr.bf16.mxu0 0
        %2570 = vmatmul.mubr.bf16.gmra.mrb[0].mxu0 %v2428
        %v2571 = vpop.f32.mrb[0].mxu0
        %v2572 = vadd.f32 %v2450, %v2571
        %v2573 = vpop.f32.mrb[0].mxu0
        %v2574 = vadd.f32 %v2454, %v2573
        %v2575 = vpop.f32.mrb[0].mxu0
        %v2576 = vpop.f32.mrb[0].mxu0
        %2577 = vdwg.mxu0
        %v2578 = vmul.f32 %v2572, 0.5
        %v2579 = vmul.f32 %v2574, 0.5
        %v2580 = vmul.f32 %v2572, 0.044715
        %v2581 = vmul.f32 %v2574, 0.044715
        %v2582 = vmul.f32 %v2580, %v2572
        %v2583 = vmul.f32 %v2581, %v2574
        %v2584 = vmul.f32 %v2582, %v2572
        %v2585 = vmul.f32 %v2583, %v2574
        %v2586 = vadd.f32 %v2572, %v2584
        %v2587 = vadd.f32 %v2574, %v2585
        %v2588 = vmul.f32 %v2586, 0.7978846
        %v2589 = vmul.f32 %v2587, 0.7978846
        %v2590 = vtanh.pop %v2588
        %v2591 = vtanh.pop %v2589
        %v2592 = vadd.f32 %v2590, 1.0
        %v2593 = vadd.f32 %v2591, 1.0
        %v2594 = vmul.f32 %v2578, %v2592
        %v2595 = vmul.f32 %v2579, %v2593
        %v2596 = vpack.c.bf16 %v2594, %v2594
        %v2597 = vpack.c.bf16 %v2595, %v2595
        %v2598 = vld [vmem:[#allocation32] sm:$0xff]
        %v2599 = vld [vmem:[#allocation32 + $0x8] sm:$0xff]
        %v2600 = vld [vmem:[#allocation32 + $0x10] sm:$0xff]
        %v2601 = vld [vmem:[#allocation32 + $0x18] sm:$0xff]
        %v2602 = vld [vmem:[#allocation32 + $0x20] sm:$0xff]
        %v2603 = vld [vmem:[#allocation32 + $0x28] sm:$0xff]
        %v2604 = vld [vmem:[#allocation32 + $0x30] sm:$0xff]
        %v2605 = vld [vmem:[#allocation32 + $0x38] sm:$0xff]
        %v2606 = vld [vmem:[#allocation32 + $0x40] sm:$0xff]
        %v2607 = vld [vmem:[#allocation32 + $0x48] sm:$0xff]
        %v2608 = vld [vmem:[#allocation32 + $0x50] sm:$0xff]
        %v2609 = vld [vmem:[#allocation32 + $0x58] sm:$0xff]
        %v2610 = vld [vmem:[#allocation32 + $0x60] sm:$0xff]
        %v2611 = vld [vmem:[#allocation32 + $0x68] sm:$0xff]
        %v2612 = vld [vmem:[#allocation32 + $0x70] sm:$0xff]
        %v2613 = vld [vmem:[#allocation32 + $0x78] sm:$0xff]
        %v2614 = vld [vmem:[#allocation32 + $0x80] sm:$0xff]
        %v2615 = vld [vmem:[#allocation32 + $0x88] sm:$0xff]
        %v2616 = vld [vmem:[#allocation32 + $0x90] sm:$0xff]
        %v2617 = vld [vmem:[#allocation32 + $0x98] sm:$0xff]
        %v2618 = vld [vmem:[#allocation32 + $0xa0] sm:$0xff]
        %v2619 = vld [vmem:[#allocation32 + $0xa8] sm:$0xff]
        %v2620 = vld [vmem:[#allocation32 + $0xb0] sm:$0xff]
        %v2621 = vld [vmem:[#allocation32 + $0xb8] sm:$0xff]
        %v2622 = vld [vmem:[#allocation32 + $0xc0] sm:$0xff]
        %v2623 = vld [vmem:[#allocation32 + $0xc8] sm:$0xff]
        %v2624 = vld [vmem:[#allocation32 + $0xd0] sm:$0xff]
        %v2625 = vld [vmem:[#allocation32 + $0xd8] sm:$0xff]
        %v2626 = vld [vmem:[#allocation32 + $0xe0] sm:$0xff]
        %v2627 = vld [vmem:[#allocation32 + $0xe8] sm:$0xff]
        %v2628 = vld [vmem:[#allocation32 + $0xf0] sm:$0xff]
        %v2629 = vld [vmem:[#allocation32 + $0xf8] sm:$0xff]
        %v2630 = vld [vmem:[%s49] sm:$0x3]
        %v2632 = vlaneseq
        %v2633 = vshrl.u32 %v2632, 7
        %v2634 = vsub.s32 0, %v2633
        %v2635 = vrot.slane %v2630, %v2634
        %v2636 = vlaneseq
        %v2637 = vshrl.u32 %v2636, 7
        %v2638 = vsub.s32 1, %v2637
        %v2639 = vrot.slane %v2630, %v2638
        %v2674 = vunpack.c.l.b16 %v2598
        %v2675 = vunpack.c.h.b16 %v2598
        %v2676 = vunpack.c.l.b16 %v2599
        %v2677 = vunpack.c.h.b16 %v2599
        %v2678 = vunpack.c.l.b16 %v2600
        %v2679 = vunpack.c.h.b16 %v2600
        %v2680 = vunpack.c.l.b16 %v2601
        %v2681 = vunpack.c.h.b16 %v2601
        %v2682 = vunpack.c.l.b16 %v2602
        %v2683 = vunpack.c.h.b16 %v2602
        %v2684 = vunpack.c.l.b16 %v2603
        %v2685 = vunpack.c.h.b16 %v2603
        %v2686 = vunpack.c.l.b16 %v2604
        %v2687 = vunpack.c.h.b16 %v2604
        %v2688 = vunpack.c.l.b16 %v2605
        %v2689 = vunpack.c.h.b16 %v2605
        %v2690 = vunpack.c.l.b16 %v2606
        %v2691 = vunpack.c.h.b16 %v2606
        %v2692 = vunpack.c.l.b16 %v2607
        %v2693 = vunpack.c.h.b16 %v2607
        %v2694 = vunpack.c.l.b16 %v2608
        %v2695 = vunpack.c.h.b16 %v2608
        %v2696 = vunpack.c.l.b16 %v2609
        %v2697 = vunpack.c.h.b16 %v2609
        %v2698 = vunpack.c.l.b16 %v2610
        %v2699 = vunpack.c.h.b16 %v2610
        %v2700 = vunpack.c.l.b16 %v2611
        %v2701 = vunpack.c.h.b16 %v2611
        %v2702 = vunpack.c.l.b16 %v2612
        %v2703 = vunpack.c.h.b16 %v2612
        %v2704 = vunpack.c.l.b16 %v2613
        %v2705 = vunpack.c.h.b16 %v2613
        %v2706 = vunpack.c.l.b16 %v2614
        %v2707 = vunpack.c.h.b16 %v2614
        %v2708 = vunpack.c.l.b16 %v2615
        %v2709 = vunpack.c.h.b16 %v2615
        %v2710 = vunpack.c.l.b16 %v2616
        %v2711 = vunpack.c.h.b16 %v2616
        %v2712 = vunpack.c.l.b16 %v2617
        %v2713 = vunpack.c.h.b16 %v2617
        %v2714 = vunpack.c.l.b16 %v2618
        %v2715 = vunpack.c.h.b16 %v2618
        %v2716 = vunpack.c.l.b16 %v2619
        %v2717 = vunpack.c.h.b16 %v2619
        %v2718 = vunpack.c.l.b16 %v2620
        %v2719 = vunpack.c.h.b16 %v2620
        %v2720 = vunpack.c.l.b16 %v2621
        %v2721 = vunpack.c.h.b16 %v2621
        %v2722 = vunpack.c.l.b16 %v2622
        %v2723 = vunpack.c.h.b16 %v2622
        %v2724 = vunpack.c.l.b16 %v2623
        %v2725 = vunpack.c.h.b16 %v2623
        %v2726 = vunpack.c.l.b16 %v2624
        %v2727 = vunpack.c.h.b16 %v2624
        %v2728 = vunpack.c.l.b16 %v2625
        %v2729 = vunpack.c.h.b16 %v2625
        %v2730 = vunpack.c.l.b16 %v2626
        %v2731 = vunpack.c.h.b16 %v2626
        %v2732 = vunpack.c.l.b16 %v2627
        %v2733 = vunpack.c.h.b16 %v2627
        %v2734 = vunpack.c.l.b16 %v2628
        %v2735 = vunpack.c.h.b16 %v2628
        %v2736 = vunpack.c.l.b16 %v2629
        %v2737 = vunpack.c.h.b16 %v2629
        %v2738 = vpack.c.b16 %v2676, %v2674
        %v2739 = vpack.c.b16 %v2677, %v2675
        %v2740 = vpack.c.b16 %v2680, %v2678
        %v2741 = vpack.c.b16 %v2681, %v2679
        %v2742 = vpack.c.b16 %v2684, %v2682
        %v2743 = vpack.c.b16 %v2685, %v2683
        %v2744 = vpack.c.b16 %v2688, %v2686
        %v2745 = vpack.c.b16 %v2689, %v2687
        %v2746 = vpack.c.b16 %v2692, %v2690
        %v2747 = vpack.c.b16 %v2693, %v2691
        %v2748 = vpack.c.b16 %v2696, %v2694
        %v2749 = vpack.c.b16 %v2697, %v2695
        %v2750 = vpack.c.b16 %v2700, %v2698
        %v2751 = vpack.c.b16 %v2701, %v2699
        %v2752 = vpack.c.b16 %v2704, %v2702
        %v2753 = vpack.c.b16 %v2705, %v2703
        %v2754 = vpack.c.b16 %v2708, %v2706
        %v2755 = vpack.c.b16 %v2709, %v2707
        %v2756 = vpack.c.b16 %v2712, %v2710
        %v2757 = vpack.c.b16 %v2713, %v2711
        %v2758 = vpack.c.b16 %v2716, %v2714
        %v2759 = vpack.c.b16 %v2717, %v2715
        %v2760 = vpack.c.b16 %v2720, %v2718
        %v2761 = vpack.c.b16 %v2721, %v2719
        %v2762 = vpack.c.b16 %v2724, %v2722
        %v2763 = vpack.c.b16 %v2725, %v2723
        %v2764 = vpack.c.b16 %v2728, %v2726
        %v2765 = vpack.c.b16 %v2729, %v2727
        %v2766 = vpack.c.b16 %v2732, %v2730
        %v2767 = vpack.c.b16 %v2733, %v2731
        %v2768 = vpack.c.b16 %v2736, %v2734
        %v2769 = vpack.c.b16 %v2737, %v2735
        %2802 = vmatprep.subr.bf16.mxu0 %v2739
        %2803 = vmatpush1.bf16.msra.mxu0 %v2738
        %2804 = vmatprep.subr.bf16.mxu0 %v2741
        %2805 = vmatpush1.bf16.msra.mxu0 %v2740
        %2806 = vmatprep.subr.bf16.mxu0 %v2743
        %2807 = vmatpush1.bf16.msra.mxu0 %v2742
        %2808 = vmatprep.subr.bf16.mxu0 %v2745
        %2809 = vmatpush1.bf16.msra.mxu0 %v2744
        %2810 = vmatprep.subr.bf16.mxu0 %v2747
        %2811 = vmatpush1.bf16.msra.mxu0 %v2746
        %2812 = vmatprep.subr.bf16.mxu0 %v2749
        %2813 = vmatpush1.bf16.msra.mxu0 %v2748
        %2814 = vmatprep.subr.bf16.mxu0 %v2751
        %2815 = vmatpush1.bf16.msra.mxu0 %v2750
        %2816 = vmatprep.subr.bf16.mxu0 %v2753
        %2817 = vmatpush1.bf16.msra.mxu0 %v2752
        %2818 = vmatprep.subr.bf16.mxu0 %v2755
        %2819 = vmatpush1.bf16.msra.mxu0 %v2754
        %2820 = vmatprep.subr.bf16.mxu0 %v2757
        %2821 = vmatpush1.bf16.msra.mxu0 %v2756
        %2822 = vmatprep.subr.bf16.mxu0 %v2759
        %2823 = vmatpush1.bf16.msra.mxu0 %v2758
        %2824 = vmatprep.subr.bf16.mxu0 %v2761
        %2825 = vmatpush1.bf16.msra.mxu0 %v2760
        %2826 = vmatprep.subr.bf16.mxu0 %v2763
        %2827 = vmatpush1.bf16.msra.mxu0 %v2762
        %2828 = vmatprep.subr.bf16.mxu0 %v2765
        %2829 = vmatpush1.bf16.msra.mxu0 %v2764
        %2830 = vmatprep.subr.bf16.mxu0 %v2767
        %2831 = vmatpush1.bf16.msra.mxu0 %v2766
        %2832 = vmatprep.subr.bf16.mxu0 %v2769
        %2833 = vmatpush1.bf16.msra.mxu0 %v2768
        %2834 = vmatprep.mubr.bf16.mxu0 %v2597
        %2835 = vmatmul.mubr.bf16.gmra.mrb[0].mxu0 %v2596
        %v2836 = vpop.f32.mrb[0].mxu0
        %v2837 = vadd.f32 %v2635, %v2836
        %v2838 = vpop.f32.mrb[0].mxu0
        %v2839 = vadd.f32 %v2639, %v2838
        %v2840 = vpop.f32.mrb[0].mxu0
        %v2841 = vpop.f32.mrb[0].mxu0
        %2842 = vdwg.mxu0
        %v2843 = vadd.f32 %v2837, %v2572
        %v2844 = vadd.f32 %v2839, %v2574
        %v2845 = vadd.f32 %v2843, %v2844
        %2846 = vadd.xlane.f32.xlu0 %v2845
        %v2847 = vpop.xlane.xlu0 %2846
        %v2848 = vmul.f32 %v2847, 0.00390625
        %v2849 = vmul.f32 %v2843, %v2843
        %v2850 = vmul.f32 %v2844, %v2844
        %v2851 = vadd.f32 %v2849, %v2850
        %2852 = vadd.xlane.f32.xlu0 %v2851
        %v2853 = vpop.xlane.xlu0 %2852
        %v2854 = vmul.f32 %v2853, 0.00390625
        %v2855 = vmul.f32 %v2848, %v2848
        %v2856 = vsub.f32 %v2854, %v2855
        %v2857 = vadd.f32 %v2856, 1e-05
        %v2858 = vrsqrt.pop %v2857
        %v2859 = vsub.f32 %v2843, %v2848
        %v2860 = vsub.f32 %v2844, %v2848
        %v2861 = vmul.f32 %v2859, %v2858
        %v2862 = vmul.f32 %v2860, %v2858
        %v2863 = vld [vmem:[%s51] sm:$0x3]
        %v2865 = vlaneseq
        %v2866 = vshrl.u32 %v2865, 7
        %v2867 = vsub.s32 0, %v2866
        %v2868 = vrot.slane %v2863, %v2867
        %v2869 = vlaneseq
        %v2870 = vshrl.u32 %v2869, 7
        %v2871 = vsub.s32 1, %v2870
        %v2872 = vrot.slane %v2863, %v2871
        %v2875 = vmul.f32 %v2861, %v2868
        %v2876 = vmul.f32 %v2862, %v2872
        %v2877 = vld [vmem:[%s53] sm:$0x3]
        %v2879 = vlaneseq
        %v2880 = vshrl.u32 %v2879, 7
        %v2881 = vsub.s32 0, %v2880
        %v2882 = vrot.slane %v2877, %v2881
        %v2883 = vlaneseq
        %v2884 = vshrl.u32 %v2883, 7
        %v2885 = vsub.s32 1, %v2884
        %v2886 = vrot.slane %v2877, %v2885
        %v2889 = vadd.f32 %v2875, %v2882
        %v2890 = vadd.f32 %v2876, %v2886
        %v2891 = vld [vmem:[%s1102] sm:$0xff]
        %v2892 = vpack.c.bf16 %v2891, %v2891
        %v2893 = vld [vmem:[#allocation34] sm:$0xf]
        %v2894 = vld [vmem:[#allocation34 + $0x4] sm:$0xf]
        %v2895 = vld [vmem:[#allocation34 + $0x8] sm:$0xf]
        %v2896 = vld [vmem:[#allocation34 + $0xc] sm:$0xf]
        %v2897 = vld [vmem:[#allocation34 + $0x10] sm:$0xf]
        %v2898 = vld [vmem:[#allocation34 + $0x14] sm:$0xf]
        %v2899 = vld [vmem:[#allocation34 + $0x18] sm:$0xf]
        %v2900 = vld [vmem:[#allocation34 + $0x1c] sm:$0xf]
        %v2901 = vld [vmem:[#allocation34 + $0x20] sm:$0xf]
        %v2902 = vld [vmem:[#allocation34 + $0x24] sm:$0xf]
        %v2903 = vld [vmem:[#allocation34 + $0x28] sm:$0xf]
        %v2904 = vld [vmem:[#allocation34 + $0x2c] sm:$0xf]
        %v2905 = vld [vmem:[#allocation34 + $0x30] sm:$0xf]
        %v2906 = vld [vmem:[#allocation34 + $0x34] sm:$0xf]
        %v2907 = vld [vmem:[#allocation34 + $0x38] sm:$0xf]
        %v2908 = vld [vmem:[#allocation34 + $0x3c] sm:$0xf]
        %v2909 = vpack.c.bf16 %v2889, %v2889
        %v2910 = vpack.c.bf16 %v2890, %v2890
        %v2911 = vld [vmem:[#allocation35] sm:$0xf]
        %v2912 = vld [vmem:[#allocation35 + $0x4] sm:$0xf]
        %v2913 = vld [vmem:[#allocation35 + $0x8] sm:$0xf]
        %v2914 = vld [vmem:[#allocation35 + $0xc] sm:$0xf]
        %v2915 = vld [vmem:[#allocation35 + $0x10] sm:$0xf]
        %v2916 = vld [vmem:[#allocation35 + $0x14] sm:$0xf]
        %v2917 = vld [vmem:[#allocation35 + $0x18] sm:$0xf]
        %v2918 = vld [vmem:[#allocation35 + $0x1c] sm:$0xf]
        %v2919 = vld [vmem:[#allocation35 + $0x20] sm:$0xf]
        %v2920 = vld [vmem:[#allocation35 + $0x24] sm:$0xf]
        %v2921 = vld [vmem:[#allocation35 + $0x28] sm:$0xf]
        %v2922 = vld [vmem:[#allocation35 + $0x2c] sm:$0xf]
        %v2923 = vld [vmem:[#allocation35 + $0x30] sm:$0xf]
        %v2924 = vld [vmem:[#allocation35 + $0x34] sm:$0xf]
        %v2925 = vld [vmem:[#allocation35 + $0x38] sm:$0xf]
        %v2926 = vld [vmem:[#allocation35 + $0x3c] sm:$0xf]
        %v2927 = vld [vmem:[#allocation35 + $0x40] sm:$0xf]
        %v2928 = vld [vmem:[#allocation35 + $0x44] sm:$0xf]
        %v2929 = vld [vmem:[#allocation35 + $0x48] sm:$0xf]
        %v2930 = vld [vmem:[#allocation35 + $0x4c] sm:$0xf]
        %v2931 = vld [vmem:[#allocation35 + $0x50] sm:$0xf]
        %v2932 = vld [vmem:[#allocation35 + $0x54] sm:$0xf]
        %v2933 = vld [vmem:[#allocation35 + $0x58] sm:$0xf]
        %v2934 = vld [vmem:[#allocation35 + $0x5c] sm:$0xf]
        %v2935 = vld [vmem:[#allocation35 + $0x60] sm:$0xf]
        %v2936 = vld [vmem:[#allocation35 + $0x64] sm:$0xf]
        %v2937 = vld [vmem:[#allocation35 + $0x68] sm:$0xf]
        %v2938 = vld [vmem:[#allocation35 + $0x6c] sm:$0xf]
        %v2939 = vld [vmem:[#allocation35 + $0x70] sm:$0xf]
        %v2940 = vld [vmem:[#allocation35 + $0x74] sm:$0xf]
        %v2941 = vld [vmem:[#allocation35 + $0x78] sm:$0xf]
        %v2942 = vld [vmem:[#allocation35 + $0x7c] sm:$0xf]
        %v2975 = vunpack.c.l.b16 %v2911
        %v2976 = vunpack.c.l.b16 %v2912
        %v2977 = vunpack.c.l.b16 %v2913
        %v2978 = vunpack.c.l.b16 %v2914
        %v2979 = vunpack.c.l.b16 %v2915
        %v2980 = vunpack.c.l.b16 %v2916
        %v2981 = vunpack.c.l.b16 %v2917
        %v2982 = vunpack.c.l.b16 %v2918
        %v2983 = vunpack.c.l.b16 %v2919
        %v2984 = vunpack.c.l.b16 %v2920
        %v2985 = vunpack.c.l.b16 %v2921
        %v2986 = vunpack.c.l.b16 %v2922
        %v2987 = vunpack.c.l.b16 %v2923
        %v2988 = vunpack.c.l.b16 %v2924
        %v2989 = vunpack.c.l.b16 %v2925
        %v2990 = vunpack.c.l.b16 %v2926
        %v2991 = vunpack.c.l.b16 %v2927
        %v2992 = vunpack.c.l.b16 %v2928
        %v2993 = vunpack.c.l.b16 %v2929
        %v2994 = vunpack.c.l.b16 %v2930
        %v2995 = vunpack.c.l.b16 %v2931
        %v2996 = vunpack.c.l.b16 %v2932
        %v2997 = vunpack.c.l.b16 %v2933
        %v2998 = vunpack.c.l.b16 %v2934
        %v2999 = vunpack.c.l.b16 %v2935
        %v3000 = vunpack.c.l.b16 %v2936
        %v3001 = vunpack.c.l.b16 %v2937
        %v3002 = vunpack.c.l.b16 %v2938
        %v3003 = vunpack.c.l.b16 %v2939
        %v3004 = vunpack.c.l.b16 %v2940
        %v3005 = vunpack.c.l.b16 %v2941
        %v3006 = vunpack.c.l.b16 %v2942
        %v3007 = vpack.c.b16 %v2976, %v2975
        %v3008 = vpack.c.b16 %v2978, %v2977
        %v3009 = vpack.c.b16 %v2980, %v2979
        %v3010 = vpack.c.b16 %v2982, %v2981
        %v3011 = vpack.c.b16 %v2984, %v2983
        %v3012 = vpack.c.b16 %v2986, %v2985
        %v3013 = vpack.c.b16 %v2988, %v2987
        %v3014 = vpack.c.b16 %v2990, %v2989
        %v3015 = vpack.c.b16 %v2992, %v2991
        %v3016 = vpack.c.b16 %v2994, %v2993
        %v3017 = vpack.c.b16 %v2996, %v2995
        %v3018 = vpack.c.b16 %v2998, %v2997
        %v3019 = vpack.c.b16 %v3000, %v2999
        %v3020 = vpack.c.b16 %v3002, %v3001
        %v3021 = vpack.c.b16 %v3004, %v3003
        %v3022 = vpack.c.b16 %v3006, %v3005
        %3039 = vmatprep.subr.bf16.mxu0 0
        %3040 = vmatpush1.bf16.msra.mxu0 %v3007
        %3041 = vmatprep.subr.bf16.mxu0 0
        %3042 = vmatpush1.bf16.msra.mxu0 %v3008
        %3043 = vmatprep.subr.bf16.mxu0 0
        %3044 = vmatpush1.bf16.msra.mxu0 %v3009
        %3045 = vmatprep.subr.bf16.mxu0 0
        %3046 = vmatpush1.bf16.msra.mxu0 %v3010
        %3047 = vmatprep.subr.bf16.mxu0 0
        %3048 = vmatpush1.bf16.msra.mxu0 %v3011
        %3049 = vmatprep.subr.bf16.mxu0 0
        %3050 = vmatpush1.bf16.msra.mxu0 %v3012
        %3051 = vmatprep.subr.bf16.mxu0 0
        %3052 = vmatpush1.bf16.msra.mxu0 %v3013
        %3053 = vmatprep.subr.bf16.mxu0 0
        %3054 = vmatpush1.bf16.msra.mxu0 %v3014
        %3055 = vmatprep.subr.bf16.mxu0 0
        %3056 = vmatpush1.bf16.msra.mxu0 %v3015
        %3057 = vmatprep.subr.bf16.mxu0 0
        %3058 = vmatpush1.bf16.msra.mxu0 %v3016
        %3059 = vmatprep.subr.bf16.mxu0 0
        %3060 = vmatpush1.bf16.msra.mxu0 %v3017
        %3061 = vmatprep.subr.bf16.mxu0 0
        %3062 = vmatpush1.bf16.msra.mxu0 %v3018
        %3063 = vmatprep.subr.bf16.mxu0 0
        %3064 = vmatpush1.bf16.msra.mxu0 %v3019
        %3065 = vmatprep.subr.bf16.mxu0 0
        %3066 = vmatpush1.bf16.msra.mxu0 %v3020
        %3067 = vmatprep.subr.bf16.mxu0 0
        %3068 = vmatpush1.bf16.msra.mxu0 %v3021
        %3069 = vmatprep.subr.bf16.mxu0 0
        %3070 = vmatpush1.bf16.msra.mxu0 %v3022
        %3071 = vmatprep.mubr.bf16.mxu0 %v2910
        %3072 = vmatmul.mubr.bf16.gmra.mrb[0].mxu0 %v2909
        %v3073 = vpop.f32.mrb[0].mxu0
        %v3074 = vadd.f32 0.0, %v3073
        %v3075 = vpop.f32.mrb[0].mxu0
        %v3076 = vpop.f32.mrb[0].mxu0
        %v3077 = vpop.f32.mrb[0].mxu0
        %3078 = vdwg.mxu0
        %v3095 = vunpack.c.l.b16 %v2893
        %v3096 = vunpack.c.l.b16 %v2894
        %v3097 = vunpack.c.l.b16 %v2895
        %v3098 = vunpack.c.l.b16 %v2896
        %v3099 = vunpack.c.l.b16 %v2897
        %v3100 = vunpack.c.l.b16 %v2898
        %v3101 = vunpack.c.l.b16 %v2899
        %v3102 = vunpack.c.l.b16 %v2900
        %v3103 = vunpack.c.l.b16 %v2901
        %v3104 = vunpack.c.l.b16 %v2902
        %v3105 = vunpack.c.l.b16 %v2903
        %v3106 = vunpack.c.l.b16 %v2904
        %v3107 = vunpack.c.l.b16 %v2905
        %v3108 = vunpack.c.l.b16 %v2906
        %v3109 = vunpack.c.l.b16 %v2907
        %v3110 = vunpack.c.l.b16 %v2908
        %v3111 = vpack.c.b16 %v3096, %v3095
        %v3112 = vpack.c.b16 %v3098, %v3097
        %v3113 = vpack.c.b16 %v3100, %v3099
        %v3114 = vpack.c.b16 %v3102, %v3101
        %v3115 = vpack.c.b16 %v3104, %v3103
        %v3116 = vpack.c.b16 %v3106, %v3105
        %v3117 = vpack.c.b16 %v3108, %v3107
        %v3118 = vpack.c.b16 %v3110, %v3109
        %3127 = vmatprep.subr.bf16.mxu0 0
        %3128 = vmatpush1.bf16.msra.mxu0 %v3111
        %3129 = vmatprep.subr.bf16.mxu0 0
        %3130 = vmatpush1.bf16.msra.mxu0 %v3112
        %3131 = vmatprep.subr.bf16.mxu0 0
        %3132 = vmatpush1.bf16.msra.mxu0 %v3113
        %3133 = vmatprep.subr.bf16.mxu0 0
        %3134 = vmatpush1.bf16.msra.mxu0 %v3114
        %3135 = vmatprep.subr.bf16.mxu0 0
        %3136 = vmatpush1.bf16.msra.mxu0 %v3115
        %3137 = vmatprep.subr.bf16.mxu0 0
        %3138 = vmatpush1.bf16.msra.mxu0 %v3116
        %3139 = vmatprep.subr.bf16.mxu0 0
        %3140 = vmatpush1.bf16.msra.mxu0 %v3117
        %3141 = vmatprep.subr.bf16.mxu0 0
        %3142 = vmatpush1.bf16.msra.mxu0 %v3118
        %3143 = vmatprep.subr.bf16.mxu0 0
        %3144 = vmatpush1.bf16.msra.mxu0 0
        %3145 = vmatprep.subr.bf16.mxu0 0
        %3146 = vmatpush1.bf16.msra.mxu0 0
        %3147 = vmatprep.subr.bf16.mxu0 0
        %3148 = vmatpush1.bf16.msra.mxu0 0
        %3149 = vmatprep.subr.bf16.mxu0 0
        %3150 = vmatpush1.bf16.msra.mxu0 0
        %3151 = vmatprep.subr.bf16.mxu0 0
        %3152 = vmatpush1.bf16.msra.mxu0 0
        %3153 = vmatprep.subr.bf16.mxu0 0
        %3154 = vmatpush1.bf16.msra.mxu0 0
        %3155 = vmatprep.subr.bf16.mxu0 0
        %3156 = vmatpush1.bf16.msra.mxu0 0
        %3157 = vmatprep.subr.bf16.mxu0 0
        %3158 = vmatpush1.bf16.msra.mxu0 0
        %3159 = vmatprep.mubr.bf16.mxu0 0
        %3160 = vmatmul.mubr.bf16.gmra.mrb[0].mxu0 %v2892
        %v3161 = vpop.f32.mrb[0].mxu0
        %v3162 = vadd.f32 %v3074, %v3161
        %v3163 = vpop.f32.mrb[0].mxu0
        %v3164 = vpop.f32.mrb[0].mxu0
        %v3165 = vpop.f32.mrb[0].mxu0
        %3166 = vdwg.mxu0
        %v3167 = vld [vmem:[%s59] sm:$0x1]
        %v3169 = vlaneseq
        %v3170 = vshrl.u32 %v3169, 7
        %v3171 = vsub.s32 0, %v3170
        %v3172 = vrot.slane %v3167, %v3171
        %v3174 = vadd.f32 %v3162, %v3172
        %v3175 = vld [vmem:[%s1111] sm:$0xff]
        %v3176 = vadd.f32 %v3175, %v3174
        %3177 = vst [vmem:[%s1273] sm:$0xff] %v3176
        %s3178 = sand.u32 %s744, 1
        %s3179 = scalar_lea.sflag [#allocation4], %s3178
        %s3180 = sand.u32 %s744, 1
        %s3181 = smul.addr %s3180, 8
        %s3182 = scalar_lea.vmem [#allocation37], %s3181
        // Predicated region
        $region229: #{tpu_custom_call.1} parent=139 // pred_check
          %p3183 = pneg %p754
        $region230: #{tpu_custom_call.1} parent=139 // pred_check_branch
          %3185 = sbr.rel (%p3183) target = $region232
        $region231: #{tpu_custom_call.1} parent=139 // pred_region
          %s3187 = ssub.s32 128, 128
          %3188 = vsyncadd %s3179, %s3187
          %s3189 = smul.addr %s91, 128
          %s3190 = scalar_lea.hbm %s61, %s3189
          %s3192 = sshll.u32 %s3182, 4
          %s3193 = int_to_ptr.vmem [resolvable:$true] %s3192
          %3195 = dma.vmem_to_hbm [thread:$0]  %s3193, 128, %s3190, %s3179
        $region232: #{tpu_custom_call.1} parent=139 // pred_fallthru
          _
      $region140: #{tpu_custom_call.1} parent=5 // pred_fallthru
        _
      %p3196 = scmp.le.s32.totalorder 2, %s86
      // Predicated region
      $region233: #{tpu_custom_call.1} parent=5 // pred_check
        %p3197 = pneg %p3196
      $region234: #{tpu_custom_call.1} parent=5 // pred_check_branch
        %3199 = sbr.rel (%p3197) target = $region236
      $region235: #{tpu_custom_call.1} parent=5 // pred_region
        %s3200 = ssub.s32 %s86, 2
        // Predicated region
        $region237: #{tpu_custom_call.1} parent=235 // pred_check
          %p3201 = pneg %p760
        $region238: #{tpu_custom_call.1} parent=235 // pred_check_branch
          %3203 = sbr.rel (%p3201) target = $region240
        $region239: #{tpu_custom_call.1} parent=235 // pred_region
          %s3204 = sand.u32 %s745, 1
          %s3205 = scalar_lea.sflag [#allocation4], %s3204
          %s3206 = sand.u32 %s745, 1
          %s3207 = smul.addr %s3206, 8
          %s3208 = scalar_lea.vmem [#allocation37], %s3207
          %3209 = dma.done %s3205, 128
        $region240: #{tpu_custom_call.1} parent=235 // pred_fallthru
          _
      $region236: #{tpu_custom_call.1} parent=5 // pred_fallthru
        _
    $region6: #{tpu_custom_call.1} parent=1 // loop_footer
      %s90 = sadd.s32 1, %s86
    $region7: #{tpu_custom_call.1} parent=1 // loop_footer_branch
      %85 = sbr.rel target = $region3
    $region8: #{tpu_custom_call.1} parent=1 // loop_exit
      _
    %3210 = vsyncpa [#allocation3], 1
    %s3211 = scalar_lea.sflag [#allocation3], 1
    %3212 = vsyncpa %s3211, 1
    %3213 = vsyncpa [#allocation6], 1
    %s3214 = scalar_lea.sflag [#allocation6], 1
    %3215 = vsyncpa %s3214, 1
    %3216 = vsyncpa [#allocation9], 1
    %3217 = vsyncpa [#allocation12], 1
    %3218 = vsyncpa [#allocation15], 1
    %3219 = vsyncpa [#allocation18], 1
    %3220 = vsyncpa [#allocation21], 1
    %3221 = vsyncpa [#allocation24], 1
    %3222 = vsyncpa [#allocation27], 1
    %3223 = vsyncpa [#allocation30], 1
    %3224 = vsyncpa [#allocation33], 1
    %3225 = vsyncpa [#allocation36], 1
    %3226 = vsyncpa [#allocation4], 1
    %s3227 = scalar_lea.sflag [#allocation4], 1
    %3228 = vsyncpa %s3227, 1

</llo_original>
